<compile_context>
chip_gen: v7x
topology: tpu7x:2x2x1
jax: 0.10.0
libtpu: 0.0.40
codegen_flags: <defaults>
</compile_context>

<pallas_src>
import functools
import math

import jax
import jax.numpy as jnp
from jax import lax
from jax.experimental import pallas as pl
from jax.experimental.pallas import tpu as pltpu

_MASK_VALUE = -1e30  # big-but-finite: avoids (-inf) - (-inf) = NaN corners


# --------------------------------------------------------------------------
# Kernel 1: fused QKV projection, head-major output layout.
# --------------------------------------------------------------------------
def _qkv_proj_kernel(x_ref, w_ref, b_ref, q_ref, k_ref, v_ref, *, n_head: int):
    """x tile (rows, C) -> q/k/v tiles (n_head, rows, hd), bf16.

    One (rows, C) @ (C, 3C) bf16 matmul (f32 accumulation, bias in f32), then
    static per-head lane slices are stored into the head-major outputs.  The
    head split costs some relayout here, but it is paid once per element in a
    memory-bound kernel instead of once per k-tile in the attention kernel.
    """
    rows, C = x_ref.shape
    hd = C // n_head
    x_bf = x_ref[...].astype(jnp.bfloat16)
    qkv = jnp.dot(x_bf, w_ref[...], preferred_element_type=jnp.float32)
    qkv = (qkv + b_ref[...]).astype(jnp.bfloat16)            # (rows, 3C)
    for h in range(n_head):                                   # small, static
        q_ref[h, :, :] = qkv[:, h * hd:(h + 1) * hd]
        k_ref[h, :, :] = qkv[:, C + h * hd:C + (h + 1) * hd]
        v_ref[h, :, :] = qkv[:, 2 * C + h * hd:2 * C + (h + 1) * hd]


# --------------------------------------------------------------------------
# Kernel 2: causal flash attention (head-batched) + fused output projection.
# --------------------------------------------------------------------------
def _flash_attn_kernel(iq_tab_ref, ik_tab_ref,            # scalar prefetch
                       q_ref, k_ref, v_ref, wp_ref, bp_ref,  # inputs
                       o_ref,                                # output
                       m_sc, l_sc, acc_sc):                  # scratch
    """One (q-tile, k-tile) step, decoded from the flattened triangular grid.

    q_ref : (n_head, tq, hd) bf16 (pre-scaled by 1/sqrt(hd))
    k_ref/v_ref : (n_head, tk, hd) bf16
    wp_ref : (n_head, hd, C) bf16 (out-proj split per head, so no transpose
             of the accumulator is ever needed), bp_ref : (1, C) f32
    scratch: m_sc / l_sc (n_head, tq, 1) f32, acc_sc (n_head, tq, hd) f32
    """
    s_idx = pl.program_id(1)
    iq = iq_tab_ref[s_idx]
    ik = ik_tab_ref[s_idx]

    n_head, tq, hd = q_ref.shape
    tk = k_ref.shape[1]
    q_start = iq * tq          # absolute first row of this q tile
    k_start = ik * tk          # absolute first col of this k tile

    # Every causal run starts at ik == 0, so that is the init trigger.
    @pl.when(ik == 0)
    def _init():
        m_sc[...] = jnp.full_like(m_sc, _MASK_VALUE)
        l_sc[...] = jnp.zeros_like(l_sc)
        acc_sc[...] = jnp.zeros_like(acc_sc)

    def _process(apply_mask):
        qb = q_ref[...]                                   # (H, tq, hd)
        kb = k_ref[...]                                   # (H, tk, hd)
        vb = v_ref[...]                                   # (H, tk, hd)
        # Head-batched q @ k^T on the MXU (no transpose, no per-head loop).
        s = lax.dot_general(qb, kb, (((2,), (2,)), ((0,), (0,))),
                            preferred_element_type=jnp.float32)   # (H,tq,tk)
        if apply_mask:
            # Absolute-index causal mask: valid for any tq != tk.
            rows = q_start + lax.broadcasted_iota(jnp.int32, (tq, tk), 0)
            cols = k_start + lax.broadcasted_iota(jnp.int32, (tq, tk), 1)
            s = jnp.where((rows >= cols)[None, :, :], s, _MASK_VALUE)

        m_prev = m_sc[...]                                          # (H,tq,1)
        m_new = jnp.maximum(m_prev, jnp.max(s, axis=-1, keepdims=True))
        alpha = jnp.exp(m_prev - m_new)                             # (H,tq,1)
        p = jnp.exp(s - m_new)                                      # (H,tq,tk)
        l_sc[...] = alpha * l_sc[...] + jnp.sum(p, axis=-1, keepdims=True)
        m_sc[...] = m_new
        pv = lax.dot_general(p.astype(jnp.bfloat16), vb,
                             (((2,), (1,)), ((0,), (0,))),
                             preferred_element_type=jnp.float32)    # (H,tq,hd)
        acc_sc[...] = alpha * acc_sc[...] + pv

    # Masking is only needed when this key tile straddles the diagonal; tiles
    # fully above the diagonal never appear in the step table at all.
    straddles = (k_start + (tk - 1)) > q_start

    @pl.when(jnp.logical_not(straddles))
    def _below_diag():
        _process(apply_mask=False)

    @pl.when(straddles)
    def _on_diag():
        _process(apply_mask=True)

    # Last key tile of this q tile's run: normalize + fused output projection.
    is_last = (ik + 1) * tk >= (iq + 1) * tq

    @pl.when(is_last)
    def _finalize():
        inv_l = pl.reciprocal(l_sc[...], approx=True)       # EUP slot
        y = (acc_sc[...] * inv_l).astype(jnp.bfloat16)       # (H, tq, hd)
        # Per-head out-proj then a cheap elementwise sum over heads: avoids
        # any (H, tq, hd) -> (tq, C) transpose.
        out = lax.dot_general(y, wp_ref[...], (((2,), (1,)), ((0,), (0,))),
                              preferred_element_type=jnp.float32)   # (H,tq,C)
        o_ref[...] = (jnp.sum(out, axis=0) + bp_ref[...]).astype(o_ref.dtype)


# --------------------------------------------------------------------------
# Wrapper
# --------------------------------------------------------------------------
def causal_self_attention(x, w_attn, b_attn, w_proj, b_proj, *, n_head: int,
                          q_block: int = 256, kv_block: int = 128,
                          proj_block: int = 512):
    """x: (B, T, C); w_attn: (C, 3C); b_attn: (3C,); w_proj: (C, C); b_proj: (C,)."""
    B, T, C = x.shape
    assert C % n_head == 0
    hd = C // n_head
    f32 = jnp.float32

    tq = min(q_block, T)
    tk = min(kv_block, T)
    rows1 = min(proj_block, T)
    assert T % tq == 0, "T must be divisible by the q tile size"
    assert tq % tk == 0, "q tile must be a multiple of the k tile"
    assert T % rows1 == 0, "T must be divisible by the projection row tile"
    assert tq == T or tq % 8 == 0
    assert rows1 == T or rows1 % 8 == 0
    nq = T // tq
    scale = 1.0 / math.sqrt(hd)

    # Fold 1/sqrt(hd) into the q columns of the fused QKV weight and bias so
    # the scale never touches the (tq, tk) score matrix.
    col_scale = jnp.concatenate([jnp.full((C,), scale, f32),
                                 jnp.ones((2 * C,), f32)])
    w_qkv = (w_attn.astype(f32) * col_scale[None, :]).astype(jnp.bfloat16)
    b_qkv = (b_attn.astype(f32) * col_scale).reshape(1, 3 * C)
    w_proj_h = w_proj.astype(jnp.bfloat16).reshape(n_head, hd, C)
    b_proj2 = b_proj.astype(f32).reshape(1, C)

    # ---- kernel 1: fused QKV projection (head-major outputs) ---------------
    qkv_out_spec = pl.BlockSpec((None, n_head, rows1, hd),
                                lambda b, i: (b, 0, i, 0))
    q, k, v = pl.pallas_call(
        functools.partial(_qkv_proj_kernel, n_head=n_head),
        out_shape=[jax.ShapeDtypeStruct((B, n_head, T, hd), jnp.bfloat16)
                   for _ in range(3)],
        grid_spec=pltpu.PrefetchScalarGridSpec(
            num_scalar_prefetch=0,
            grid=(B, T // rows1),
            in_specs=[pl.BlockSpec((None, rows1, C), lambda b, i: (b, i, 0)),
                      pl.BlockSpec((C, 3 * C), lambda b, i: (0, 0)),
                      pl.BlockSpec((1, 3 * C), lambda b, i: (0, 0))],
            out_specs=[qkv_out_spec, qkv_out_spec, qkv_out_spec],
        ),
        compiler_params=pltpu.CompilerParams(
            dimension_semantics=("parallel", "parallel"),
            vmem_limit_bytes=32 * 1024 * 1024),
    )(x, w_qkv, b_qkv)

    # ---- flattened causal lower-triangle step table (scalar prefetch) ------
    # Only the (iq, ik) pairs that actually touch unmasked keys are scheduled,
    # so there are no dead upper-triangle grid steps.
    steps_iq, steps_ik = [], []
    for iq in range(nq):
        for ik in range((iq + 1) * tq // tk):
            steps_iq.append(iq)
            steps_ik.append(ik)
    iq_tab = jnp.asarray(steps_iq, jnp.int32)
    ik_tab = jnp.asarray(steps_ik, jnp.int32)
    n_steps = len(steps_iq)

    def q_map(b, s, iq_t, ik_t):
        return (b, 0, iq_t[s], 0)

    def kv_map(b, s, iq_t, ik_t):
        return (b, 0, ik_t[s], 0)

    def o_map(b, s, iq_t, ik_t):
        return (b, iq_t[s], 0)

    # ---- kernel 2: causal flash attention + fused output projection --------
    return pl.pallas_call(
        _flash_attn_kernel,
        out_shape=jax.ShapeDtypeStruct((B, T, C), x.dtype),
        grid_spec=pltpu.PrefetchScalarGridSpec(
            num_scalar_prefetch=2,
            grid=(B, n_steps),
            in_specs=[
                pl.BlockSpec((None, n_head, tq, hd), q_map),        # q
                pl.BlockSpec((None, n_head, tk, hd), kv_map),       # k
                pl.BlockSpec((None, n_head, tk, hd), kv_map),       # v
                pl.BlockSpec((n_head, hd, C), lambda b, s, a, c: (0, 0, 0)),
                pl.BlockSpec((1, C), lambda b, s, a, c: (0, 0)),
            ],
            out_specs=pl.BlockSpec((None, tq, C), o_map),
            scratch_shapes=[
                pltpu.VMEM((n_head, tq, 1), jnp.float32),    # running max m
                pltpu.VMEM((n_head, tq, 1), jnp.float32),    # running sum l
                pltpu.VMEM((n_head, tq, hd), jnp.float32),   # accumulator
            ],
        ),
        compiler_params=pltpu.CompilerParams(
            # Batch axis is parallel (megacore / v7x 2-TC sharding, balanced
            # because the causal triangle is flattened); the step axis carries
            # the online-softmax state -> arbitrary.
            dimension_semantics=("parallel", "arbitrary"),
            vmem_limit_bytes=32 * 1024 * 1024),
    )(iq_tab, ik_tab, q, k, v, w_proj_h, b_proj2)


# --------------------------------------------------------------------------
# Pure-JAX reference (mirrors the PyTorch forward, eval mode, dropout = 0).
# --------------------------------------------------------------------------
def _reference(x, w_attn, b_attn, w_proj, b_proj, n_head):
    hp = jax.lax.Precision.HIGHEST
    B, T, C = x.shape
    hd = C // n_head
    qkv = jnp.dot(x, w_attn, precision=hp) + b_attn
    q, k, v = jnp.split(qkv, 3, axis=-1)

    def heads(t):
        return t.reshape(B, T, n_head, hd).transpose(0, 2, 1, 3)

    q, k, v = heads(q), heads(k), heads(v)
    att = jnp.einsum("bhqd,bhkd->bhqk", q, k, precision=hp) / math.sqrt(hd)
    mask = jnp.tril(jnp.ones((T, T), bool))
    att = jnp.where(mask, att, -jnp.inf)
    att = jax.nn.softmax(att, axis=-1)
    y = jnp.einsum("bhqk,bhkd->bhqd", att, v, precision=hp)
    y = y.transpose(0, 2, 1, 3).reshape(B, T, C)
    return jnp.dot(y, w_proj, precision=hp) + b_proj


if __name__ == "__main__":
    # Small GPT-ish config.  T=512 with tq=256 / tk=128 exercises the
    # flattened triangular grid, the asymmetric-tile causal mask, and both
    # the masked (diagonal-straddling) and unmasked attention paths.
    B, T, C, n_head = 2, 512, 32, 4

    key = jax.random.PRNGKey(0)
    kx, kwa, kba, kwp, kbp = jax.random.split(key, 5)

    x = jax.random.normal(kx, (B, T, C), dtype=jnp.float32)

    # nn.Linear(C, 3C) weight is (3C, C) in torch; stored pre-transposed as
    # (C, 3C) so the kernels compute x @ W + b.
    scale_init = 1.0 / math.sqrt(C)
    w_attn = jax.random.uniform(kwa, (C, 3 * C), jnp.float32, -scale_init, scale_init)
    b_attn = jax.random.uniform(kba, (3 * C,), jnp.float32, -scale_init, scale_init)
    w_proj = jax.random.uniform(kwp, (C, C), jnp.float32, -scale_init, scale_init)
    b_proj = jax.random.uniform(kbp, (C,), jnp.float32, -scale_init, scale_init)

    out = causal_self_attention(x, w_attn, b_attn, w_proj, b_proj, n_head=n_head)
    out = jax.block_until_ready(out)

    ref = _reference(x, w_attn, b_attn, w_proj, b_proj, n_head)
    assert out.shape == (B, T, C)
    max_err = float(jnp.max(jnp.abs(out - ref)))
    # bf16 MXU operands + f32 accumulation: loosen tolerance vs the pure-f32 ref.
    assert jnp.allclose(out, ref, atol=2e-2, rtol=2e-2), \
        f"mismatch vs reference (max abs err {max_err})"

    print("KERNEL_OK")
</pallas_src>

<mosaic_0001>
module attributes {stable_mosaic.version = 11 : i64} {
  func.func @_qkv_proj_kernel(%arg0: i32, %arg1: i32, %arg2: memref<1x512x32xf32, #tpu.memory_space<vmem>>, %arg3: memref<32x96xbf16, #tpu.memory_space<vmem>>, %arg4: memref<1x96xf32, #tpu.memory_space<vmem>>, %arg5: memref<1x4x512x8xbf16, #tpu.memory_space<vmem>>, %arg6: memref<1x4x512x8xbf16, #tpu.memory_space<vmem>>, %arg7: memref<1x4x512x8xbf16, #tpu.memory_space<vmem>>) attributes {dimension_semantics = [#tpu.dimension_semantics<parallel>, #tpu.dimension_semantics<parallel>], iteration_bounds = array<i64: 2, 1>, scalar_prefetch = 0 : i64, scratch_operands = 0 : i64, tpu.core_type = #tpu.core_type<tc>, window_params = [{transform_indices = @transform_0, window_bounds = array<i64: 1, 512, 32>}, {pipeline_mode = #tpu.pipeline_mode<synchronous>, transform_indices = @transform_1, window_bounds = array<i64: 32, 96>}, {pipeline_mode = #tpu.pipeline_mode<synchronous>, transform_indices = @transform_2, window_bounds = array<i64: 1, 96>}, {transform_indices = @transform_3, window_bounds = array<i64: 1, 4, 512, 8>}, {transform_indices = @transform_4, window_bounds = array<i64: 1, 4, 512, 8>}, {transform_indices = @transform_5, window_bounds = array<i64: 1, 4, 512, 8>}]} {
    %c0 = arith.constant 0 : index
    %c0_0 = arith.constant 0 : index
    %c0_1 = arith.constant 0 : index
    %0 = vector.load %arg2[%c0, %c0_0, %c0_1] : memref<1x512x32xf32, #tpu.memory_space<vmem>>, vector<1x512x32xf32>
    %1 = vector.shape_cast %0 : vector<1x512x32xf32> to vector<512x32xf32>
    %2 = arith.truncf %1 : vector<512x32xf32> to vector<512x32xbf16>
    %c0_2 = arith.constant 0 : index
    %c0_3 = arith.constant 0 : index
    %3 = vector.load %arg3[%c0_2, %c0_3] : memref<32x96xbf16, #tpu.memory_space<vmem>>, vector<32x96xbf16>
    %cst = arith.constant dense<0.000000e+00> : vector<512x96xf32>
    %4 = tpu.matmul %2, %3, %cst {dimension_numbers = #tpu.dot_dimension_numbers<[1], [0], [0], [1], [0, 0, 1, 1], [], []>} : vector<512x32xbf16>, vector<32x96xbf16>, vector<512x96xf32> -> vector<512x96xf32>
    %c0_4 = arith.constant 0 : index
    %c0_5 = arith.constant 0 : index
    %5 = vector.load %arg4[%c0_4, %c0_5] : memref<1x96xf32, #tpu.memory_space<vmem>>, vector<1x96xf32>
    %6 = vector.broadcast %5 : vector<1x96xf32> to vector<512x96xf32>
    %7 = arith.addf %4, %6 : vector<512x96xf32>
    %8 = arith.truncf %7 : vector<512x96xf32> to vector<512x96xbf16>
    %9 = vector.extract_strided_slice %8 {offsets = [0, 0], sizes = [512, 8], strides = [1, 1]} : vector<512x96xbf16> to vector<512x8xbf16>
    %c0_6 = arith.constant 0 : index
    %c0_7 = arith.constant 0 : index
    %c0_8 = arith.constant 0 : index
    %c0_9 = arith.constant 0 : index
    %10 = vector.load %arg5[%c0_6, %c0_7, %c0_8, %c0_9] : memref<1x4x512x8xbf16, #tpu.memory_space<vmem>>, vector<1x1x512x8xbf16>
    %11 = vector.shape_cast %10 : vector<1x1x512x8xbf16> to vector<512x8xbf16>
    %12 = vector.shape_cast %9 : vector<512x8xbf16> to vector<1x1x512x8xbf16>
    tpu.vector_store %arg5[%c0_6, %c0_7, %c0_8, %c0_9], %12 {strides = array<i32>} : memref<1x4x512x8xbf16, #tpu.memory_space<vmem>>, vector<1x1x512x8xbf16>,
    %13 = vector.extract_strided_slice %8 {offsets = [0, 32], sizes = [512, 8], strides = [1, 1]} : vector<512x96xbf16> to vector<512x8xbf16>
    %c0_10 = arith.constant 0 : index
    %c0_11 = arith.constant 0 : index
    %c0_12 = arith.constant 0 : index
    %c0_13 = arith.constant 0 : index
    %14 = vector.load %arg6[%c0_10, %c0_11, %c0_12, %c0_13] : memref<1x4x512x8xbf16, #tpu.memory_space<vmem>>, vector<1x1x512x8xbf16>
    %15 = vector.shape_cast %14 : vector<1x1x512x8xbf16> to vector<512x8xbf16>
    %16 = vector.shape_cast %13 : vector<512x8xbf16> to vector<1x1x512x8xbf16>
    tpu.vector_store %arg6[%c0_10, %c0_11, %c0_12, %c0_13], %16 {strides = array<i32>} : memref<1x4x512x8xbf16, #tpu.memory_space<vmem>>, vector<1x1x512x8xbf16>,
    %17 = vector.extract_strided_slice %8 {offsets = [0, 64], sizes = [512, 8], strides = [1, 1]} : vector<512x96xbf16> to vector<512x8xbf16>
    %c0_14 = arith.constant 0 : index
    %c0_15 = arith.constant 0 : index
    %c0_16 = arith.constant 0 : index
    %c0_17 = arith.constant 0 : index
    %18 = vector.load %arg7[%c0_14, %c0_15, %c0_16, %c0_17] : memref<1x4x512x8xbf16, #tpu.memory_space<vmem>>, vector<1x1x512x8xbf16>
    %19 = vector.shape_cast %18 : vector<1x1x512x8xbf16> to vector<512x8xbf16>
    %20 = vector.shape_cast %17 : vector<512x8xbf16> to vector<1x1x512x8xbf16>
    tpu.vector_store %arg7[%c0_14, %c0_15, %c0_16, %c0_17], %20 {strides = array<i32>} : memref<1x4x512x8xbf16, #tpu.memory_space<vmem>>, vector<1x1x512x8xbf16>,
    %21 = vector.extract_strided_slice %8 {offsets = [0, 8], sizes = [512, 8], strides = [1, 1]} : vector<512x96xbf16> to vector<512x8xbf16>
    %c0_18 = arith.constant 0 : index
    %c1 = arith.constant 1 : index
    %c0_19 = arith.constant 0 : index
    %c0_20 = arith.constant 0 : index
    %22 = vector.load %arg5[%c0_18, %c1, %c0_19, %c0_20] : memref<1x4x512x8xbf16, #tpu.memory_space<vmem>>, vector<1x1x512x8xbf16>
    %23 = vector.shape_cast %22 : vector<1x1x512x8xbf16> to vector<512x8xbf16>
    %24 = vector.shape_cast %21 : vector<512x8xbf16> to vector<1x1x512x8xbf16>
    tpu.vector_store %arg5[%c0_18, %c1, %c0_19, %c0_20], %24 {strides = array<i32>} : memref<1x4x512x8xbf16, #tpu.memory_space<vmem>>, vector<1x1x512x8xbf16>,
    %25 = vector.extract_strided_slice %8 {offsets = [0, 40], sizes = [512, 8], strides = [1, 1]} : vector<512x96xbf16> to vector<512x8xbf16>
    %c0_21 = arith.constant 0 : index
    %c1_22 = arith.constant 1 : index
    %c0_23 = arith.constant 0 : index
    %c0_24 = arith.constant 0 : index
    %26 = vector.load %arg6[%c0_21, %c1_22, %c0_23, %c0_24] : memref<1x4x512x8xbf16, #tpu.memory_space<vmem>>, vector<1x1x512x8xbf16>
    %27 = vector.shape_cast %26 : vector<1x1x512x8xbf16> to vector<512x8xbf16>
    %28 = vector.shape_cast %25 : vector<512x8xbf16> to vector<1x1x512x8xbf16>
    tpu.vector_store %arg6[%c0_21, %c1_22, %c0_23, %c0_24], %28 {strides = array<i32>} : memref<1x4x512x8xbf16, #tpu.memory_space<vmem>>, vector<1x1x512x8xbf16>,
    %29 = vector.extract_strided_slice %8 {offsets = [0, 72], sizes = [512, 8], strides = [1, 1]} : vector<512x96xbf16> to vector<512x8xbf16>
    %c0_25 = arith.constant 0 : index
    %c1_26 = arith.constant 1 : index
    %c0_27 = arith.constant 0 : index
    %c0_28 = arith.constant 0 : index
    %30 = vector.load %arg7[%c0_25, %c1_26, %c0_27, %c0_28] : memref<1x4x512x8xbf16, #tpu.memory_space<vmem>>, vector<1x1x512x8xbf16>
    %31 = vector.shape_cast %30 : vector<1x1x512x8xbf16> to vector<512x8xbf16>
    %32 = vector.shape_cast %29 : vector<512x8xbf16> to vector<1x1x512x8xbf16>
    tpu.vector_store %arg7[%c0_25, %c1_26, %c0_27, %c0_28], %32 {strides = array<i32>} : memref<1x4x512x8xbf16, #tpu.memory_space<vmem>>, vector<1x1x512x8xbf16>,
    %33 = vector.extract_strided_slice %8 {offsets = [0, 16], sizes = [512, 8], strides = [1, 1]} : vector<512x96xbf16> to vector<512x8xbf16>
    %c0_29 = arith.constant 0 : index
    %c2 = arith.constant 2 : index
    %c0_30 = arith.constant 0 : index
    %c0_31 = arith.constant 0 : index
    %34 = vector.load %arg5[%c0_29, %c2, %c0_30, %c0_31] : memref<1x4x512x8xbf16, #tpu.memory_space<vmem>>, vector<1x1x512x8xbf16>
    %35 = vector.shape_cast %34 : vector<1x1x512x8xbf16> to vector<512x8xbf16>
    %36 = vector.shape_cast %33 : vector<512x8xbf16> to vector<1x1x512x8xbf16>
    tpu.vector_store %arg5[%c0_29, %c2, %c0_30, %c0_31], %36 {strides = array<i32>} : memref<1x4x512x8xbf16, #tpu.memory_space<vmem>>, vector<1x1x512x8xbf16>,
    %37 = vector.extract_strided_slice %8 {offsets = [0, 48], sizes = [512, 8], strides = [1, 1]} : vector<512x96xbf16> to vector<512x8xbf16>
    %c0_32 = arith.constant 0 : index
    %c2_33 = arith.constant 2 : index
    %c0_34 = arith.constant 0 : index
    %c0_35 = arith.constant 0 : index
    %38 = vector.load %arg6[%c0_32, %c2_33, %c0_34, %c0_35] : memref<1x4x512x8xbf16, #tpu.memory_space<vmem>>, vector<1x1x512x8xbf16>
    %39 = vector.shape_cast %38 : vector<1x1x512x8xbf16> to vector<512x8xbf16>
    %40 = vector.shape_cast %37 : vector<512x8xbf16> to vector<1x1x512x8xbf16>
    tpu.vector_store %arg6[%c0_32, %c2_33, %c0_34, %c0_35], %40 {strides = array<i32>} : memref<1x4x512x8xbf16, #tpu.memory_space<vmem>>, vector<1x1x512x8xbf16>,
    %41 = vector.extract_strided_slice %8 {offsets = [0, 80], sizes = [512, 8], strides = [1, 1]} : vector<512x96xbf16> to vector<512x8xbf16>
    %c0_36 = arith.constant 0 : index
    %c2_37 = arith.constant 2 : index
    %c0_38 = arith.constant 0 : index
    %c0_39 = arith.constant 0 : index
    %42 = vector.load %arg7[%c0_36, %c2_37, %c0_38, %c0_39] : memref<1x4x512x8xbf16, #tpu.memory_space<vmem>>, vector<1x1x512x8xbf16>
    %43 = vector.shape_cast %42 : vector<1x1x512x8xbf16> to vector<512x8xbf16>
    %44 = vector.shape_cast %41 : vector<512x8xbf16> to vector<1x1x512x8xbf16>
    tpu.vector_store %arg7[%c0_36, %c2_37, %c0_38, %c0_39], %44 {strides = array<i32>} : memref<1x4x512x8xbf16, #tpu.memory_space<vmem>>, vector<1x1x512x8xbf16>,
    %45 = vector.extract_strided_slice %8 {offsets = [0, 24], sizes = [512, 8], strides = [1, 1]} : vector<512x96xbf16> to vector<512x8xbf16>
    %c0_40 = arith.constant 0 : index
    %c3 = arith.constant 3 : index
    %c0_41 = arith.constant 0 : index
    %c0_42 = arith.constant 0 : index
    %46 = vector.load %arg5[%c0_40, %c3, %c0_41, %c0_42] : memref<1x4x512x8xbf16, #tpu.memory_space<vmem>>, vector<1x1x512x8xbf16>
    %47 = vector.shape_cast %46 : vector<1x1x512x8xbf16> to vector<512x8xbf16>
    %48 = vector.shape_cast %45 : vector<512x8xbf16> to vector<1x1x512x8xbf16>
    tpu.vector_store %arg5[%c0_40, %c3, %c0_41, %c0_42], %48 {strides = array<i32>} : memref<1x4x512x8xbf16, #tpu.memory_space<vmem>>, vector<1x1x512x8xbf16>,
    %49 = vector.extract_strided_slice %8 {offsets = [0, 56], sizes = [512, 8], strides = [1, 1]} : vector<512x96xbf16> to vector<512x8xbf16>
    %c0_43 = arith.constant 0 : index
    %c3_44 = arith.constant 3 : index
    %c0_45 = arith.constant 0 : index
    %c0_46 = arith.constant 0 : index
    %50 = vector.load %arg6[%c0_43, %c3_44, %c0_45, %c0_46] : memref<1x4x512x8xbf16, #tpu.memory_space<vmem>>, vector<1x1x512x8xbf16>
    %51 = vector.shape_cast %50 : vector<1x1x512x8xbf16> to vector<512x8xbf16>
    %52 = vector.shape_cast %49 : vector<512x8xbf16> to vector<1x1x512x8xbf16>
    tpu.vector_store %arg6[%c0_43, %c3_44, %c0_45, %c0_46], %52 {strides = array<i32>} : memref<1x4x512x8xbf16, #tpu.memory_space<vmem>>, vector<1x1x512x8xbf16>,
    %53 = vector.extract_strided_slice %8 {offsets = [0, 88], sizes = [512, 8], strides = [1, 1]} : vector<512x96xbf16> to vector<512x8xbf16>
    %c0_47 = arith.constant 0 : index
    %c3_48 = arith.constant 3 : index
    %c0_49 = arith.constant 0 : index
    %c0_50 = arith.constant 0 : index
    %54 = vector.load %arg7[%c0_47, %c3_48, %c0_49, %c0_50] : memref<1x4x512x8xbf16, #tpu.memory_space<vmem>>, vector<1x1x512x8xbf16>
    %55 = vector.shape_cast %54 : vector<1x1x512x8xbf16> to vector<512x8xbf16>
    %56 = vector.shape_cast %53 : vector<512x8xbf16> to vector<1x1x512x8xbf16>
    tpu.vector_store %arg7[%c0_47, %c3_48, %c0_49, %c0_50], %56 {strides = array<i32>} : memref<1x4x512x8xbf16, #tpu.memory_space<vmem>>, vector<1x1x512x8xbf16>,
    return
  }
  func.func @transform_0(%arg0: i32, %arg1: i32) -> (i32, i32, i32) {
    %c0_i32 = arith.constant 0 : i32
    %c0_i32_0 = arith.constant 0 : i32
    return %arg0, %arg1, %c0_i32 : i32, i32, i32
  }
  func.func @transform_1(%arg0: i32, %arg1: i32) -> (i32, i32) {
    %c0_i32 = arith.constant 0 : i32
    %c0_i32_0 = arith.constant 0 : i32
    %c0_i32_1 = arith.constant 0 : i32
    return %c0_i32, %c0_i32_0 : i32, i32
  }
  func.func @transform_2(%arg0: i32, %arg1: i32) -> (i32, i32) {
    %c0_i32 = arith.constant 0 : i32
    %c0_i32_0 = arith.constant 0 : i32
    %c0_i32_1 = arith.constant 0 : i32
    return %c0_i32, %c0_i32_0 : i32, i32
  }
  func.func @transform_3(%arg0: i32, %arg1: i32) -> (i32, i32, i32, i32) {
    %c0_i32 = arith.constant 0 : i32
    %c0_i32_0 = arith.constant 0 : i32
    %c0_i32_1 = arith.constant 0 : i32
    return %arg0, %c0_i32, %arg1, %c0_i32_0 : i32, i32, i32, i32
  }
  func.func @transform_4(%arg0: i32, %arg1: i32) -> (i32, i32, i32, i32) {
    %c0_i32 = arith.constant 0 : i32
    %c0_i32_0 = arith.constant 0 : i32
    %c0_i32_1 = arith.constant 0 : i32
    return %arg0, %c0_i32, %arg1, %c0_i32_0 : i32, i32, i32, i32
  }
  func.func @transform_5(%arg0: i32, %arg1: i32) -> (i32, i32, i32, i32) {
    %c0_i32 = arith.constant 0 : i32
    %c0_i32_0 = arith.constant 0 : i32
    %c0_i32_1 = arith.constant 0 : i32
    return %arg0, %c0_i32, %arg1, %c0_i32_0 : i32, i32, i32, i32
  }
}

</mosaic_0001>

<llo_original>
// kernel: tpu_custom_call.1
$region0: #{tpu_custom_call.1}
  #allocation0 [shape = 'u32[]', space=smem, size = 0x4, offset = 0x4, fixed_abs, tag = 'smem constant byte address 0x4 - core index']
  #allocation1 [shape = 'u32[144,128]{1,0:T(1,128)}', space=vmem, size = 0x12000, scoped, tag = 'internal scratch']
  %s0 = inlined_call_operand.vmem [shape: f32[2,512,32], index: 0, kind: input, shape index: {}]
  %s1 = inlined_call_operand.vmem [shape: bf16[32,96], index: 1, kind: input, shape index: {}]
  %s2 = inlined_call_operand.vmem [shape: f32[1,96], index: 2, kind: input, shape index: {}]
  %s3 = inlined_call_operand.vmem [shape: bf16[2,4,512,8], index: 3, kind: output, shape index: {0}]
  %s4 = inlined_call_operand.vmem [shape: bf16[2,4,512,8], index: 4, kind: output, shape index: {1}]
  %s5 = inlined_call_operand.vmem [shape: bf16[2,4,512,8], index: 5, kind: output, shape index: {2}]
  %6 = xla_tuple %s3, %s4, %s5
  %s7 = sld [smem:[#allocation0]]
  $region61: #{tpu_custom_call.1} parent=0
    _
  %s9 = ssub.s32 1, %s7
  %s10 = scalar_select 0, %s9, %s7
  loop: start=0, step=1, limit=4
  $region2: #{tpu_custom_call.1} parent=0 // loop_pre_header
    _
  $region3: #{tpu_custom_call.1} parent=0 // loop_header
    %s12 = sphi 0, %s16
    %p13 = scmp.ge.s32.totalorder %s12, 4
    %s19 = sphi 0, %s31
    %s20 = sphi 0, %s27
    %s21 = sphi 0, %s19
    %s22 = sphi 0, %s20
    %s23 = sphi 0, %s21
    %s24 = sphi 0, %s22
    %s36 = sphi 0, %s38
    %s39 = sphi 0, %s36
    %s40 = sphi 0, %s39
    %s56 = sphi 0, %s40
    %s60 = sphi 0, %s60
    %s62 = sphi 0, %s60
    %s63 = sphi 0, %s62
    %s77 = sphi 0, %s63
    %s81 = sphi 0, %s81
    %s83 = sphi 0, %s81
    %s84 = sphi 0, %s83
    %s98 = sphi 0, %s84
    %s106 = sphi 0, %s108
    %s109 = sphi 0, %s106
    %s110 = sphi 0, %s109
    %s126 = sphi 0, %s110
    %s134 = sphi 0, %s136
    %s137 = sphi 0, %s134
    %s138 = sphi 0, %s137
    %s154 = sphi 0, %s138
    %s162 = sphi 0, %s164
    %s165 = sphi 0, %s162
    %s166 = sphi 0, %s165
    %s182 = sphi 0, %s166
  $region4: #{tpu_custom_call.1} parent=0 // loop_header_branch
    %15 = sbr.rel (%p13) target = $region8
  $region5: #{tpu_custom_call.1} parent=0 // loop_body
    %s17 = ssub.s32 %s12, 1
    %s18 = ssub.s32 %s12, 2
    %s25 = sadd.s32 1, %s20
    %p26 = scmp.ge.s32.totalorder %s25, 1
    %s27 = scalar_select %p26, 0, %s25
    %s28 = sadd.s32 1, %s19
    %s29 = scalar_select %p26, %s28, %s19
    %p30 = scmp.ge.s32.totalorder %s29, 2
    %s31 = scalar_select %p30, 0, %s29
    %s32 = ssub.s32 %s19, %s31
    %s33 = ssub.s32 %s20, %s27
    %s34 = sor.u32 %s32, %s33
    %p35 = scmp.eq.s32.totalorder %s34, 0
    %s37 = sadd.s32 %s36, 1
    %s38 = scalar_select %p35, %s36, %s37
    %p41 = pneg %p35
    %p42 = scmp.eq.s32.totalorder %s12, 1
    %p43 = por %p41, %p42
    %p44 = scmp.ne.s32.totalorder %s36, %s39
    %p45 = scmp.eq.s32.totalorder %s12, 0
    %p46 = por %p44, %p45
    %p47 = scmp.ne.s32.totalorder %s36, %s39
    %p48 = scmp.eq.s32.totalorder %s17, 1
    %p49 = por %p47, %p48
    %p50 = scmp.ne.s32.totalorder %s39, %s40
    %p51 = scmp.eq.s32.totalorder %s17, 0
    %p52 = por %p50, %p51
    %p53 = scmp.ne.s32.totalorder %s39, %s40
    %p54 = scmp.eq.s32.totalorder %s18, 1
    %p55 = por %p53, %p54
    %p57 = scmp.ne.s32.totalorder %s40, %s56
    %p58 = scmp.eq.s32.totalorder %s18, 0
    %p59 = por %p57, %p58
    %s61 = sadd.s32 %s60, 1
    %p64 = scmp.eq.s32.totalorder %s12, 1
    %p65 = scmp.ne.s32.totalorder %s60, %s62
    %p66 = scmp.eq.s32.totalorder %s12, 0
    %p67 = por %p65, %p66
    %p68 = scmp.ne.s32.totalorder %s60, %s62
    %p69 = scmp.eq.s32.totalorder %s17, 1
    %p70 = por %p68, %p69
    %p71 = scmp.ne.s32.totalorder %s62, %s63
    %p72 = scmp.eq.s32.totalorder %s17, 0
    %p73 = por %p71, %p72
    %p74 = scmp.ne.s32.totalorder %s62, %s63
    %p75 = scmp.eq.s32.totalorder %s18, 1
    %p76 = por %p74, %p75
    %p78 = scmp.ne.s32.totalorder %s63, %s77
    %p79 = scmp.eq.s32.totalorder %s18, 0
    %p80 = por %p78, %p79
    %s82 = sadd.s32 %s81, 1
    %p85 = scmp.eq.s32.totalorder %s12, 1
    %p86 = scmp.ne.s32.totalorder %s81, %s83
    %p87 = scmp.eq.s32.totalorder %s12, 0
    %p88 = por %p86, %p87
    %p89 = scmp.ne.s32.totalorder %s81, %s83
    %p90 = scmp.eq.s32.totalorder %s17, 1
    %p91 = por %p89, %p90
    %p92 = scmp.ne.s32.totalorder %s83, %s84
    %p93 = scmp.eq.s32.totalorder %s17, 0
    %p94 = por %p92, %p93
    %p95 = scmp.ne.s32.totalorder %s83, %s84
    %p96 = scmp.eq.s32.totalorder %s18, 1
    %p97 = por %p95, %p96
    %p99 = scmp.ne.s32.totalorder %s84, %s98
    %p100 = scmp.eq.s32.totalorder %s18, 0
    %p101 = por %p99, %p100
    %s102 = ssub.s32 %s19, %s31
    %s103 = ssub.s32 %s20, %s27
    %s104 = sor.u32 %s102, %s103
    %p105 = scmp.eq.s32.totalorder %s104, 0
    %s107 = sadd.s32 %s106, 1
    %s108 = scalar_select %p105, %s106, %s107
    %p111 = pneg %p105
    %p112 = scmp.eq.s32.totalorder %s12, 1
    %p113 = por %p111, %p112
    %p114 = scmp.ne.s32.totalorder %s106, %s109
    %p115 = scmp.eq.s32.totalorder %s12, 0
    %p116 = por %p114, %p115
    %p117 = scmp.ne.s32.totalorder %s106, %s109
    %p118 = scmp.eq.s32.totalorder %s17, 1
    %p119 = por %p117, %p118
    %p120 = scmp.ne.s32.totalorder %s109, %s110
    %p121 = scmp.eq.s32.totalorder %s17, 0
    %p122 = por %p120, %p121
    %p123 = scmp.ne.s32.totalorder %s109, %s110
    %p124 = scmp.eq.s32.totalorder %s18, 1
    %p125 = por %p123, %p124
    %p127 = scmp.ne.s32.totalorder %s110, %s126
    %p128 = scmp.eq.s32.totalorder %s18, 0
    %p129 = por %p127, %p128
    %s130 = ssub.s32 %s19, %s31
    %s131 = ssub.s32 %s20, %s27
    %s132 = sor.u32 %s130, %s131
    %p133 = scmp.eq.s32.totalorder %s132, 0
    %s135 = sadd.s32 %s134, 1
    %s136 = scalar_select %p133, %s134, %s135
    %p139 = pneg %p133
    %p140 = scmp.eq.s32.totalorder %s12, 1
    %p141 = por %p139, %p140
    %p142 = scmp.ne.s32.totalorder %s134, %s137
    %p143 = scmp.eq.s32.totalorder %s12, 0
    %p144 = por %p142, %p143
    %p145 = scmp.ne.s32.totalorder %s134, %s137
    %p146 = scmp.eq.s32.totalorder %s17, 1
    %p147 = por %p145, %p146
    %p148 = scmp.ne.s32.totalorder %s137, %s138
    %p149 = scmp.eq.s32.totalorder %s17, 0
    %p150 = por %p148, %p149
    %p151 = scmp.ne.s32.totalorder %s137, %s138
    %p152 = scmp.eq.s32.totalorder %s18, 1
    %p153 = por %p151, %p152
    %p155 = scmp.ne.s32.totalorder %s138, %s154
    %p156 = scmp.eq.s32.totalorder %s18, 0
    %p157 = por %p155, %p156
    %s158 = ssub.s32 %s19, %s31
    %s159 = ssub.s32 %s20, %s27
    %s160 = sor.u32 %s158, %s159
    %p161 = scmp.eq.s32.totalorder %s160, 0
    %s163 = sadd.s32 %s162, 1
    %s164 = scalar_select %p161, %s162, %s163
    %p167 = pneg %p161
    %p168 = scmp.eq.s32.totalorder %s12, 1
    %p169 = por %p167, %p168
    %p170 = scmp.ne.s32.totalorder %s162, %s165
    %p171 = scmp.eq.s32.totalorder %s12, 0
    %p172 = por %p170, %p171
    %p173 = scmp.ne.s32.totalorder %s162, %s165
    %p174 = scmp.eq.s32.totalorder %s17, 1
    %p175 = por %p173, %p174
    %p176 = scmp.ne.s32.totalorder %s165, %s166
    %p177 = scmp.eq.s32.totalorder %s17, 0
    %p178 = por %p176, %p177
    %p179 = scmp.ne.s32.totalorder %s165, %s166
    %p180 = scmp.eq.s32.totalorder %s18, 1
    %p181 = por %p179, %p180
    %p183 = scmp.ne.s32.totalorder %s166, %s182
    %p184 = scmp.eq.s32.totalorder %s18, 0
    %p185 = por %p183, %p184
    %p186 = scmp.le.s32.totalorder 1, %s12
    %p187 = scmp.lt.s32.totalorder %s12, 3
    %p188 = pnand %p186, %p187
    %p189 = pneg %p188
    // Predicated region
    $region9: #{tpu_custom_call.1} parent=5 // pred_check
      _
    $region10: #{tpu_custom_call.1} parent=5 // pred_check_branch
      %191 = sbr.rel (%p188) target = $region12
    $region11: #{tpu_custom_call.1} parent=5 // pred_region
      %s192 = ssub.s32 %s12, 1
      // Predicated region
      $region13: #{tpu_custom_call.1} parent=11 // pred_check
        %p193 = pneg %p73
      $region14: #{tpu_custom_call.1} parent=11 // pred_check_branch
        %195 = sbr.rel (%p193) target = $region16
      $region15: #{tpu_custom_call.1} parent=11 // pred_region
        _
      $region16: #{tpu_custom_call.1} parent=11 // pred_fallthru
        _
      // Predicated region
      $region17: #{tpu_custom_call.1} parent=11 // pred_check
        %p196 = pneg %p94
      $region18: #{tpu_custom_call.1} parent=11 // pred_check_branch
        %198 = sbr.rel (%p196) target = $region20
      $region19: #{tpu_custom_call.1} parent=11 // pred_region
        _
      $region20: #{tpu_custom_call.1} parent=11 // pred_fallthru
        _
    $region12: #{tpu_custom_call.1} parent=5 // pred_fallthru
      _
    %p199 = scmp.lt.s32.totalorder %s12, 2
    // Predicated region
    $region21: #{tpu_custom_call.1} parent=5 // pred_check
      %p200 = pneg %p199
    $region22: #{tpu_custom_call.1} parent=5 // pred_check_branch
      %202 = sbr.rel (%p200) target = $region24
    $region23: #{tpu_custom_call.1} parent=5 // pred_region
      // Predicated region
      $region25: #{tpu_custom_call.1} parent=23 // pred_check
        %p203 = pneg %p46
      $region26: #{tpu_custom_call.1} parent=23 // pred_check_branch
        %205 = sbr.rel (%p203) target = $region28
      $region27: #{tpu_custom_call.1} parent=23 // pred_region
        %s206 = smul.u32 64, %s20
        %p207 = scmp.lt.s32.totalorder %s19, 1
        %s208 = scalar_select %p207, %s19, 1
        %p209 = scmp.lt.s32.totalorder %s206, 63
        %s210 = scalar_select %p209, %s206, 63
        %s211 = smul.addr %s208, 64
        %s212 = sadd.s32 %s210, %s211
        %s213 = smul.addr %s212, 8
        %s214 = scalar_lea.vmem %s0, %s213
        %s215 = smul.u32 64, %s20
      $region28: #{tpu_custom_call.1} parent=23 // pred_fallthru
        _
    $region24: #{tpu_custom_call.1} parent=5 // pred_fallthru
      _
    %p216 = scmp.le.s32.totalorder 1, %s12
    %p217 = scmp.lt.s32.totalorder %s12, 3
    %p218 = pnand %p216, %p217
    %p219 = pneg %p218
    // Predicated region
    $region29: #{tpu_custom_call.1} parent=5 // pred_check
      _
    $region30: #{tpu_custom_call.1} parent=5 // pred_check_branch
      %221 = sbr.rel (%p218) target = $region32
    $region31: #{tpu_custom_call.1} parent=5 // pred_region
      %s222 = ssub.s32 %s12, 1
      %s223 = smul.u32 64, %s22
      %p224 = scmp.lt.s32.totalorder %s21, 1
      %s225 = scalar_select %p224, %s21, 1
      %p226 = scmp.lt.s32.totalorder %s223, 63
      %s227 = scalar_select %p226, %s223, 63
      %s228 = smul.addr %s225, 64
      %s229 = sadd.s32 %s227, %s228
      %s230 = smul.addr %s229, 8
      %s231 = scalar_lea.vmem %s0, %s230
      %p232 = pneg %p52
      %p233 = pneg %p49
      %p234 = pneg %p73
      %p235 = pneg %p70
      %p236 = pneg %p94
      %p237 = pneg %p91
      %p238 = pneg %p122
      %p239 = pneg %p119
      %s240 = smul.u32 64, %s22
      %p241 = scmp.lt.s32.totalorder %s21, 1
      %s242 = scalar_select %p241, %s21, 1
      %p243 = scmp.lt.s32.totalorder %s240, 63
      %s244 = scalar_select %p243, %s240, 63
      %s245 = smul.addr %s242, 256
      %s246 = sadd.s32 %s244, %s245
      %s247 = smul.addr %s246, 4
      %s248 = scalar_lea.vmem %s3, %s247
      %p249 = pneg %p150
      %p250 = pneg %p147
      %s251 = smul.u32 64, %s22
      %p252 = scmp.lt.s32.totalorder %s21, 1
      %s253 = scalar_select %p252, %s21, 1
      %p254 = scmp.lt.s32.totalorder %s251, 63
      %s255 = scalar_select %p254, %s251, 63
      %s256 = smul.addr %s253, 256
      %s257 = sadd.s32 %s255, %s256
      %s258 = smul.addr %s257, 4
      %s259 = scalar_lea.vmem %s4, %s258
      %p260 = pneg %p178
      %p261 = pneg %p175
      %s262 = smul.u32 64, %s22
      %p263 = scmp.lt.s32.totalorder %s21, 1
      %s264 = scalar_select %p263, %s21, 1
      %p265 = scmp.lt.s32.totalorder %s262, 63
      %s266 = scalar_select %p265, %s262, 63
      %s267 = smul.addr %s264, 256
      %s268 = sadd.s32 %s266, %s267
      %s269 = smul.addr %s268, 4
      %s270 = scalar_lea.vmem %s5, %s269
      %s271 = smul.u32 64, %s22
      %p272 = scmp.lt.s32.totalorder %s21, 1
      %s273 = scalar_select %p272, %s21, 1
      %p274 = scmp.lt.s32.totalorder %s271, 63
      %s275 = scalar_select %p274, %s271, 63
      %s276 = smul.addr %s273, 64
      %s277 = sadd.s32 %s275, %s276
      %s278 = smul.addr %s277, 8
      %s279 = scalar_lea.vmem %s0, %s278
      %s280 = smul.u32 64, %s22
      %s281 = smul.u32 64, %s22
      %p282 = scmp.lt.s32.totalorder %s21, 1
      %s283 = scalar_select %p282, %s21, 1
      %p284 = scmp.lt.s32.totalorder %s281, 63
      %s285 = scalar_select %p284, %s281, 63
      %s286 = smul.addr %s283, 256
      %s287 = sadd.s32 %s285, %s286
      %s288 = smul.addr %s287, 4
      %s289 = scalar_lea.vmem %s3, %s288
      %s290 = smul.u32 64, %s22
      %s291 = smul.u32 64, %s22
      %p292 = scmp.lt.s32.totalorder %s21, 1
      %s293 = scalar_select %p292, %s21, 1
      %p294 = scmp.lt.s32.totalorder %s291, 63
      %s295 = scalar_select %p294, %s291, 63
      %s296 = smul.addr %s293, 256
      %s297 = sadd.s32 %s295, %s296
      %s298 = smul.addr %s297, 4
      %s299 = scalar_lea.vmem %s4, %s298
      %s300 = smul.u32 64, %s22
      %s301 = smul.u32 64, %s22
      %p302 = scmp.lt.s32.totalorder %s21, 1
      %s303 = scalar_select %p302, %s21, 1
      %p304 = scmp.lt.s32.totalorder %s301, 63
      %s305 = scalar_select %p304, %s301, 63
      %s306 = smul.addr %s303, 256
      %s307 = sadd.s32 %s305, %s306
      %s308 = smul.addr %s307, 4
      %s309 = scalar_lea.vmem %s5, %s308
      %s310 = smul.u32 64, %s22
      %v312 = vld [vmem:[%s279] sm:$0xff]
      %v313 = vld [vmem:[%s279 + $0x8] sm:$0xff]
      %v314 = vld [vmem:[%s279 + $0x10] sm:$0xff]
      %v315 = vld [vmem:[%s279 + $0x18] sm:$0xff]
      %v316 = vld [vmem:[%s279 + $0x20] sm:$0xff]
      %v317 = vld [vmem:[%s279 + $0x28] sm:$0xff]
      %v318 = vld [vmem:[%s279 + $0x30] sm:$0xff]
      %v319 = vld [vmem:[%s279 + $0x38] sm:$0xff]
      %v320 = vld [vmem:[%s279 + $0x40] sm:$0xff]
      %v321 = vld [vmem:[%s279 + $0x48] sm:$0xff]
      %v322 = vld [vmem:[%s279 + $0x50] sm:$0xff]
      %v323 = vld [vmem:[%s279 + $0x58] sm:$0xff]
      %v324 = vld [vmem:[%s279 + $0x60] sm:$0xff]
      %v325 = vld [vmem:[%s279 + $0x68] sm:$0xff]
      %v326 = vld [vmem:[%s279 + $0x70] sm:$0xff]
      %v327 = vld [vmem:[%s279 + $0x78] sm:$0xff]
      %v328 = vld [vmem:[%s279 + $0x80] sm:$0xff]
      %v329 = vld [vmem:[%s279 + $0x88] sm:$0xff]
      %v330 = vld [vmem:[%s279 + $0x90] sm:$0xff]
      %v331 = vld [vmem:[%s279 + $0x98] sm:$0xff]
      %v332 = vld [vmem:[%s279 + $0xa0] sm:$0xff]
      %v333 = vld [vmem:[%s279 + $0xa8] sm:$0xff]
      %v334 = vld [vmem:[%s279 + $0xb0] sm:$0xff]
      %v335 = vld [vmem:[%s279 + $0xb8] sm:$0xff]
      %v336 = vld [vmem:[%s279 + $0xc0] sm:$0xff]
      %v337 = vld [vmem:[%s279 + $0xc8] sm:$0xff]
      %v338 = vld [vmem:[%s279 + $0xd0] sm:$0xff]
      %v339 = vld [vmem:[%s279 + $0xd8] sm:$0xff]
      %v340 = vld [vmem:[%s279 + $0xe0] sm:$0xff]
      %v341 = vld [vmem:[%s279 + $0xe8] sm:$0xff]
      %v342 = vld [vmem:[%s279 + $0xf0] sm:$0xff]
      %v343 = vld [vmem:[%s279 + $0xf8] sm:$0xff]
      %v344 = vld [vmem:[%s279 + $0x100] sm:$0xff]
      %v345 = vld [vmem:[%s279 + $0x108] sm:$0xff]
      %v346 = vld [vmem:[%s279 + $0x110] sm:$0xff]
      %v347 = vld [vmem:[%s279 + $0x118] sm:$0xff]
      %v348 = vld [vmem:[%s279 + $0x120] sm:$0xff]
      %v349 = vld [vmem:[%s279 + $0x128] sm:$0xff]
      %v350 = vld [vmem:[%s279 + $0x130] sm:$0xff]
      %v351 = vld [vmem:[%s279 + $0x138] sm:$0xff]
      %v352 = vld [vmem:[%s279 + $0x140] sm:$0xff]
      %v353 = vld [vmem:[%s279 + $0x148] sm:$0xff]
      %v354 = vld [vmem:[%s279 + $0x150] sm:$0xff]
      %v355 = vld [vmem:[%s279 + $0x158] sm:$0xff]
      %v356 = vld [vmem:[%s279 + $0x160] sm:$0xff]
      %v357 = vld [vmem:[%s279 + $0x168] sm:$0xff]
      %v358 = vld [vmem:[%s279 + $0x170] sm:$0xff]
      %v359 = vld [vmem:[%s279 + $0x178] sm:$0xff]
      %v360 = vld [vmem:[%s279 + $0x180] sm:$0xff]
      %v361 = vld [vmem:[%s279 + $0x188] sm:$0xff]
      %v362 = vld [vmem:[%s279 + $0x190] sm:$0xff]
      %v363 = vld [vmem:[%s279 + $0x198] sm:$0xff]
      %v364 = vld [vmem:[%s279 + $0x1a0] sm:$0xff]
      %v365 = vld [vmem:[%s279 + $0x1a8] sm:$0xff]
      %v366 = vld [vmem:[%s279 + $0x1b0] sm:$0xff]
      %v367 = vld [vmem:[%s279 + $0x1b8] sm:$0xff]
      %v368 = vld [vmem:[%s279 + $0x1c0] sm:$0xff]
      %v369 = vld [vmem:[%s279 + $0x1c8] sm:$0xff]
      %v370 = vld [vmem:[%s279 + $0x1d0] sm:$0xff]
      %v371 = vld [vmem:[%s279 + $0x1d8] sm:$0xff]
      %v372 = vld [vmem:[%s279 + $0x1e0] sm:$0xff]
      %v373 = vld [vmem:[%s279 + $0x1e8] sm:$0xff]
      %v374 = vld [vmem:[%s279 + $0x1f0] sm:$0xff]
      %v375 = vld [vmem:[%s279 + $0x1f8] sm:$0xff]
      %v376 = vpack.c.bf16 %v313, %v312
      %v377 = vpack.c.bf16 %v315, %v314
      %v378 = vpack.c.bf16 %v317, %v316
      %v379 = vpack.c.bf16 %v319, %v318
      %v380 = vpack.c.bf16 %v321, %v320
      %v381 = vpack.c.bf16 %v323, %v322
      %v382 = vpack.c.bf16 %v325, %v324
      %v383 = vpack.c.bf16 %v327, %v326
      %v384 = vpack.c.bf16 %v329, %v328
      %v385 = vpack.c.bf16 %v331, %v330
      %v386 = vpack.c.bf16 %v333, %v332
      %v387 = vpack.c.bf16 %v335, %v334
      %v388 = vpack.c.bf16 %v337, %v336
      %v389 = vpack.c.bf16 %v339, %v338
      %v390 = vpack.c.bf16 %v341, %v340
      %v391 = vpack.c.bf16 %v343, %v342
      %v392 = vpack.c.bf16 %v345, %v344
      %v393 = vpack.c.bf16 %v347, %v346
      %v394 = vpack.c.bf16 %v349, %v348
      %v395 = vpack.c.bf16 %v351, %v350
      %v396 = vpack.c.bf16 %v353, %v352
      %v397 = vpack.c.bf16 %v355, %v354
      %v398 = vpack.c.bf16 %v357, %v356
      %v399 = vpack.c.bf16 %v359, %v358
      %v400 = vpack.c.bf16 %v361, %v360
      %v401 = vpack.c.bf16 %v363, %v362
      %v402 = vpack.c.bf16 %v365, %v364
      %v403 = vpack.c.bf16 %v367, %v366
      %v404 = vpack.c.bf16 %v369, %v368
      %v405 = vpack.c.bf16 %v371, %v370
      %v406 = vpack.c.bf16 %v373, %v372
      %v407 = vpack.c.bf16 %v375, %v374
      %v408 = vld [vmem:[%s1] sm:$0xf]
      %v409 = vld [vmem:[%s1 + $0x4] sm:$0xf]
      %v410 = vld [vmem:[%s1 + $0x8] sm:$0xf]
      %v411 = vld [vmem:[%s1 + $0xc] sm:$0xf]
      %v412 = vld [vmem:[%s2] sm:$0x1]
      %v414 = vlaneseq
      %v415 = vshrl.u32 %v414, 7
      %v416 = vsub.s32 0, %v415
      %v417 = vrot.slane %v412, %v416
      %v423 = vunpack.c.l.b16 %v408
      %v424 = vunpack.c.l.b16 %v409
      %v425 = vunpack.c.l.b16 %v410
      %v426 = vunpack.c.l.b16 %v411
      %v427 = vpack.c.b16 %v424, %v423
      %v428 = vpack.c.b16 %v426, %v425
      %vm431 = vcmask 261120
      %v433 = vsel %vm431, %v376, 0
      %v436 = vsel %vm431, %v377, 0
      %v439 = vsel %vm431, %v378, 0
      %v442 = vsel %vm431, %v379, 0
      %v445 = vsel %vm431, %v380, 0
      %v448 = vsel %vm431, %v381, 0
      %v451 = vsel %vm431, %v382, 0
      %v454 = vsel %vm431, %v383, 0
      %v457 = vsel %vm431, %v384, 0
      %v460 = vsel %vm431, %v385, 0
      %v463 = vsel %vm431, %v386, 0
      %v466 = vsel %vm431, %v387, 0
      %v469 = vsel %vm431, %v388, 0
      %v472 = vsel %vm431, %v389, 0
      %v475 = vsel %vm431, %v390, 0
      %v478 = vsel %vm431, %v391, 0
      %v481 = vsel %vm431, %v392, 0
      %v484 = vsel %vm431, %v393, 0
      %v487 = vsel %vm431, %v394, 0
      %v490 = vsel %vm431, %v395, 0
      %v493 = vsel %vm431, %v396, 0
      %v496 = vsel %vm431, %v397, 0
      %v499 = vsel %vm431, %v398, 0
      %v502 = vsel %vm431, %v399, 0
      %v505 = vsel %vm431, %v400, 0
      %v508 = vsel %vm431, %v401, 0
      %v511 = vsel %vm431, %v402, 0
      %v514 = vsel %vm431, %v403, 0
      %v517 = vsel %vm431, %v404, 0
      %v520 = vsel %vm431, %v405, 0
      %v523 = vsel %vm431, %v406, 0
      %v526 = vsel %vm431, %v407, 0
      %528 = vmatprep.subr.bf16.mxu0 0
      %529 = vmatpush1.bf16.msra.mxu0 %v427
      %530 = vmatprep.subr.bf16.mxu0 0
      %531 = vmatpush1.bf16.msra.mxu0 %v428
      %532 = vmatprep.subr.bf16.mxu0 0
      %533 = vmatpush1.bf16.msra.mxu0 0
      %534 = vmatprep.subr.bf16.mxu0 0
      %535 = vmatpush1.bf16.msra.mxu0 0
      %536 = vmatprep.subr.bf16.mxu0 0
      %537 = vmatpush1.bf16.msra.mxu0 0
      %538 = vmatprep.subr.bf16.mxu0 0
      %539 = vmatpush1.bf16.msra.mxu0 0
      %540 = vmatprep.subr.bf16.mxu0 0
      %541 = vmatpush1.bf16.msra.mxu0 0
      %542 = vmatprep.subr.bf16.mxu0 0
      %543 = vmatpush1.bf16.msra.mxu0 0
      %544 = vmatprep.subr.bf16.mxu0 0
      %545 = vmatpush1.bf16.msra.mxu0 0
      %546 = vmatprep.subr.bf16.mxu0 0
      %547 = vmatpush1.bf16.msra.mxu0 0
      %548 = vmatprep.subr.bf16.mxu0 0
      %549 = vmatpush1.bf16.msra.mxu0 0
      %550 = vmatprep.subr.bf16.mxu0 0
      %551 = vmatpush1.bf16.msra.mxu0 0
      %552 = vmatprep.subr.bf16.mxu0 0
      %553 = vmatpush1.bf16.msra.mxu0 0
      %554 = vmatprep.subr.bf16.mxu0 0
      %555 = vmatpush1.bf16.msra.mxu0 0
      %556 = vmatprep.subr.bf16.mxu0 0
      %557 = vmatpush1.bf16.msra.mxu0 0
      %558 = vmatprep.subr.bf16.mxu0 0
      %559 = vmatpush1.bf16.msra.mxu0 0
      %560 = vmatprep.mubr.bf16.mxu0 0
      %561 = vmatmul.mubr.bf16.gmra.mrb[0].mxu0 %v433
      %v562 = vpop.f32.mrb[0].mxu0
      %v563 = vadd.f32 %v417, %v562
      %v564 = vpop.f32.mrb[0].mxu0
      %v565 = vpop.f32.mrb[0].mxu0
      %v566 = vadd.f32 %v417, %v565
      %v567 = vpop.f32.mrb[0].mxu0
      %568 = vmatprep.mubr.bf16.mxu0 0
      %569 = vmatmul.mubr.bf16.gmra.mrb[0].mxu0 %v436
      %v570 = vpop.f32.mrb[0].mxu0
      %v571 = vadd.f32 %v417, %v570
      %v572 = vpop.f32.mrb[0].mxu0
      %v573 = vpop.f32.mrb[0].mxu0
      %v574 = vadd.f32 %v417, %v573
      %v575 = vpop.f32.mrb[0].mxu0
      %576 = vmatprep.mubr.bf16.mxu0 0
      %577 = vmatmul.mubr.bf16.gmra.mrb[0].mxu0 %v439
      %v578 = vpop.f32.mrb[0].mxu0
      %v579 = vadd.f32 %v417, %v578
      %v580 = vpop.f32.mrb[0].mxu0
      %v581 = vpop.f32.mrb[0].mxu0
      %v582 = vadd.f32 %v417, %v581
      %v583 = vpop.f32.mrb[0].mxu0
      %584 = vmatprep.mubr.bf16.mxu0 0
      %585 = vmatmul.mubr.bf16.gmra.mrb[0].mxu0 %v442
      %v586 = vpop.f32.mrb[0].mxu0
      %v587 = vadd.f32 %v417, %v586
      %v588 = vpop.f32.mrb[0].mxu0
      %v589 = vpop.f32.mrb[0].mxu0
      %v590 = vadd.f32 %v417, %v589
      %v591 = vpop.f32.mrb[0].mxu0
      %592 = vmatprep.mubr.bf16.mxu0 0
      %593 = vmatmul.mubr.bf16.gmra.mrb[0].mxu0 %v445
      %v594 = vpop.f32.mrb[0].mxu0
      %v595 = vadd.f32 %v417, %v594
      %v596 = vpop.f32.mrb[0].mxu0
      %v597 = vpop.f32.mrb[0].mxu0
      %v598 = vadd.f32 %v417, %v597
      %v599 = vpop.f32.mrb[0].mxu0
      %600 = vmatprep.mubr.bf16.mxu0 0
      %601 = vmatmul.mubr.bf16.gmra.mrb[0].mxu0 %v448
      %v602 = vpop.f32.mrb[0].mxu0
      %v603 = vadd.f32 %v417, %v602
      %v604 = vpop.f32.mrb[0].mxu0
      %v605 = vpop.f32.mrb[0].mxu0
      %v606 = vadd.f32 %v417, %v605
      %v607 = vpop.f32.mrb[0].mxu0
      %608 = vmatprep.mubr.bf16.mxu0 0
      %609 = vmatmul.mubr.bf16.gmra.mrb[0].mxu0 %v451
      %v610 = vpop.f32.mrb[0].mxu0
      %v611 = vadd.f32 %v417, %v610
      %v612 = vpop.f32.mrb[0].mxu0
      %v613 = vpop.f32.mrb[0].mxu0
      %v614 = vadd.f32 %v417, %v613
      %v615 = vpop.f32.mrb[0].mxu0
      %616 = vmatprep.mubr.bf16.mxu0 0
      %617 = vmatmul.mubr.bf16.gmra.mrb[0].mxu0 %v454
      %v618 = vpop.f32.mrb[0].mxu0
      %v619 = vadd.f32 %v417, %v618
      %v620 = vpop.f32.mrb[0].mxu0
      %v621 = vpop.f32.mrb[0].mxu0
      %v622 = vadd.f32 %v417, %v621
      %v623 = vpop.f32.mrb[0].mxu0
      %624 = vmatprep.mubr.bf16.mxu0 0
      %625 = vmatmul.mubr.bf16.gmra.mrb[0].mxu0 %v457
      %v626 = vpop.f32.mrb[0].mxu0
      %v627 = vadd.f32 %v417, %v626
      %v628 = vpop.f32.mrb[0].mxu0
      %v629 = vpop.f32.mrb[0].mxu0
      %v630 = vadd.f32 %v417, %v629
      %v631 = vpop.f32.mrb[0].mxu0
      %632 = vmatprep.mubr.bf16.mxu0 0
      %633 = vmatmul.mubr.bf16.gmra.mrb[0].mxu0 %v460
      %v634 = vpop.f32.mrb[0].mxu0
      %v635 = vadd.f32 %v417, %v634
      %v636 = vpop.f32.mrb[0].mxu0
      %v637 = vpop.f32.mrb[0].mxu0
      %v638 = vadd.f32 %v417, %v637
      %v639 = vpop.f32.mrb[0].mxu0
      %640 = vmatprep.mubr.bf16.mxu0 0
      %641 = vmatmul.mubr.bf16.gmra.mrb[0].mxu0 %v463
      %v642 = vpop.f32.mrb[0].mxu0
      %v643 = vadd.f32 %v417, %v642
      %v644 = vpop.f32.mrb[0].mxu0
      %v645 = vpop.f32.mrb[0].mxu0
      %v646 = vadd.f32 %v417, %v645
      %v647 = vpop.f32.mrb[0].mxu0
      %648 = vmatprep.mubr.bf16.mxu0 0
      %649 = vmatmul.mubr.bf16.gmra.mrb[0].mxu0 %v466
      %v650 = vpop.f32.mrb[0].mxu0
      %v651 = vadd.f32 %v417, %v650
      %v652 = vpop.f32.mrb[0].mxu0
      %v653 = vpop.f32.mrb[0].mxu0
      %v654 = vadd.f32 %v417, %v653
      %v655 = vpop.f32.mrb[0].mxu0
      %656 = vmatprep.mubr.bf16.mxu0 0
      %657 = vmatmul.mubr.bf16.gmra.mrb[0].mxu0 %v469
      %v658 = vpop.f32.mrb[0].mxu0
      %v659 = vadd.f32 %v417, %v658
      %v660 = vpop.f32.mrb[0].mxu0
      %v661 = vpop.f32.mrb[0].mxu0
      %v662 = vadd.f32 %v417, %v661
      %v663 = vpop.f32.mrb[0].mxu0
      %664 = vmatprep.mubr.bf16.mxu0 0
      %665 = vmatmul.mubr.bf16.gmra.mrb[0].mxu0 %v472
      %v666 = vpop.f32.mrb[0].mxu0
      %v667 = vadd.f32 %v417, %v666
      %v668 = vpop.f32.mrb[0].mxu0
      %v669 = vpop.f32.mrb[0].mxu0
      %v670 = vadd.f32 %v417, %v669
      %v671 = vpop.f32.mrb[0].mxu0
      %672 = vmatprep.mubr.bf16.mxu0 0
      %673 = vmatmul.mubr.bf16.gmra.mrb[0].mxu0 %v475
      %v674 = vpop.f32.mrb[0].mxu0
      %v675 = vadd.f32 %v417, %v674
      %v676 = vpop.f32.mrb[0].mxu0
      %v677 = vpop.f32.mrb[0].mxu0
      %v678 = vadd.f32 %v417, %v677
      %v679 = vpop.f32.mrb[0].mxu0
      %680 = vmatprep.mubr.bf16.mxu0 0
      %681 = vmatmul.mubr.bf16.gmra.mrb[0].mxu0 %v478
      %v682 = vpop.f32.mrb[0].mxu0
      %v683 = vadd.f32 %v417, %v682
      %v684 = vpop.f32.mrb[0].mxu0
      %v685 = vpop.f32.mrb[0].mxu0
      %v686 = vadd.f32 %v417, %v685
      %v687 = vpop.f32.mrb[0].mxu0
      %688 = vmatprep.mubr.bf16.mxu0 0
      %689 = vmatmul.mubr.bf16.gmra.mrb[0].mxu0 %v481
      %v690 = vpop.f32.mrb[0].mxu0
      %v691 = vadd.f32 %v417, %v690
      %v692 = vpop.f32.mrb[0].mxu0
      %v693 = vpop.f32.mrb[0].mxu0
      %v694 = vadd.f32 %v417, %v693
      %v695 = vpop.f32.mrb[0].mxu0
      %696 = vmatprep.mubr.bf16.mxu0 0
      %697 = vmatmul.mubr.bf16.gmra.mrb[0].mxu0 %v484
      %v698 = vpop.f32.mrb[0].mxu0
      %v699 = vadd.f32 %v417, %v698
      %v700 = vpop.f32.mrb[0].mxu0
      %v701 = vpop.f32.mrb[0].mxu0
      %v702 = vadd.f32 %v417, %v701
      %v703 = vpop.f32.mrb[0].mxu0
      %704 = vmatprep.mubr.bf16.mxu0 0
      %705 = vmatmul.mubr.bf16.gmra.mrb[0].mxu0 %v487
      %v706 = vpop.f32.mrb[0].mxu0
      %v707 = vadd.f32 %v417, %v706
      %v708 = vpop.f32.mrb[0].mxu0
      %v709 = vpop.f32.mrb[0].mxu0
      %v710 = vadd.f32 %v417, %v709
      %v711 = vpop.f32.mrb[0].mxu0
      %712 = vmatprep.mubr.bf16.mxu0 0
      %713 = vmatmul.mubr.bf16.gmra.mrb[0].mxu0 %v490
      %v714 = vpop.f32.mrb[0].mxu0
      %v715 = vadd.f32 %v417, %v714
      %v716 = vpop.f32.mrb[0].mxu0
      %v717 = vpop.f32.mrb[0].mxu0
      %v718 = vadd.f32 %v417, %v717
      %v719 = vpop.f32.mrb[0].mxu0
      %720 = vmatprep.mubr.bf16.mxu0 0
      %721 = vmatmul.mubr.bf16.gmra.mrb[0].mxu0 %v493
      %v722 = vpop.f32.mrb[0].mxu0
      %v723 = vadd.f32 %v417, %v722
      %v724 = vpop.f32.mrb[0].mxu0
      %v725 = vpop.f32.mrb[0].mxu0
      %v726 = vadd.f32 %v417, %v725
      %v727 = vpop.f32.mrb[0].mxu0
      %728 = vmatprep.mubr.bf16.mxu0 0
      %729 = vmatmul.mubr.bf16.gmra.mrb[0].mxu0 %v496
      %v730 = vpop.f32.mrb[0].mxu0
      %v731 = vadd.f32 %v417, %v730
      %v732 = vpop.f32.mrb[0].mxu0
      %v733 = vpop.f32.mrb[0].mxu0
      %v734 = vadd.f32 %v417, %v733
      %v735 = vpop.f32.mrb[0].mxu0
      %736 = vmatprep.mubr.bf16.mxu0 0
      %737 = vmatmul.mubr.bf16.gmra.mrb[0].mxu0 %v499
      %v738 = vpop.f32.mrb[0].mxu0
      %v739 = vadd.f32 %v417, %v738
      %v740 = vpop.f32.mrb[0].mxu0
      %v741 = vpop.f32.mrb[0].mxu0
      %v742 = vadd.f32 %v417, %v741
      %v743 = vpop.f32.mrb[0].mxu0
      %744 = vmatprep.mubr.bf16.mxu0 0
      %745 = vmatmul.mubr.bf16.gmra.mrb[0].mxu0 %v502
      %v746 = vpop.f32.mrb[0].mxu0
      %v747 = vadd.f32 %v417, %v746
      %v748 = vpop.f32.mrb[0].mxu0
      %v749 = vpop.f32.mrb[0].mxu0
      %v750 = vadd.f32 %v417, %v749
      %v751 = vpop.f32.mrb[0].mxu0
      %752 = vmatprep.mubr.bf16.mxu0 0
      %753 = vmatmul.mubr.bf16.gmra.mrb[0].mxu0 %v505
      %v754 = vpop.f32.mrb[0].mxu0
      %v755 = vadd.f32 %v417, %v754
      %v756 = vpop.f32.mrb[0].mxu0
      %v757 = vpop.f32.mrb[0].mxu0
      %v758 = vadd.f32 %v417, %v757
      %v759 = vpop.f32.mrb[0].mxu0
      %760 = vmatprep.mubr.bf16.mxu0 0
      %761 = vmatmul.mubr.bf16.gmra.mrb[0].mxu0 %v508
      %v762 = vpop.f32.mrb[0].mxu0
      %v763 = vadd.f32 %v417, %v762
      %v764 = vpop.f32.mrb[0].mxu0
      %v765 = vpop.f32.mrb[0].mxu0
      %v766 = vadd.f32 %v417, %v765
      %v767 = vpop.f32.mrb[0].mxu0
      %768 = vmatprep.mubr.bf16.mxu0 0
      %769 = vmatmul.mubr.bf16.gmra.mrb[0].mxu0 %v511
      %v770 = vpop.f32.mrb[0].mxu0
      %v771 = vadd.f32 %v417, %v770
      %v772 = vpop.f32.mrb[0].mxu0
      %v773 = vpop.f32.mrb[0].mxu0
      %v774 = vadd.f32 %v417, %v773
      %v775 = vpop.f32.mrb[0].mxu0
      %776 = vmatprep.mubr.bf16.mxu0 0
      %777 = vmatmul.mubr.bf16.gmra.mrb[0].mxu0 %v514
      %v778 = vpop.f32.mrb[0].mxu0
      %v779 = vadd.f32 %v417, %v778
      %v780 = vpop.f32.mrb[0].mxu0
      %v781 = vpop.f32.mrb[0].mxu0
      %v782 = vadd.f32 %v417, %v781
      %v783 = vpop.f32.mrb[0].mxu0
      %784 = vmatprep.mubr.bf16.mxu0 0
      %785 = vmatmul.mubr.bf16.gmra.mrb[0].mxu0 %v517
      %v786 = vpop.f32.mrb[0].mxu0
      %v787 = vadd.f32 %v417, %v786
      %v788 = vpop.f32.mrb[0].mxu0
      %v789 = vpop.f32.mrb[0].mxu0
      %v790 = vadd.f32 %v417, %v789
      %v791 = vpop.f32.mrb[0].mxu0
      %792 = vmatprep.mubr.bf16.mxu0 0
      %793 = vmatmul.mubr.bf16.gmra.mrb[0].mxu0 %v520
      %v794 = vpop.f32.mrb[0].mxu0
      %v795 = vadd.f32 %v417, %v794
      %v796 = vpop.f32.mrb[0].mxu0
      %v797 = vpop.f32.mrb[0].mxu0
      %v798 = vadd.f32 %v417, %v797
      %v799 = vpop.f32.mrb[0].mxu0
      %800 = vmatprep.mubr.bf16.mxu0 0
      %801 = vmatmul.mubr.bf16.gmra.mrb[0].mxu0 %v523
      %v802 = vpop.f32.mrb[0].mxu0
      %v803 = vadd.f32 %v417, %v802
      %v804 = vpop.f32.mrb[0].mxu0
      %v805 = vpop.f32.mrb[0].mxu0
      %v806 = vadd.f32 %v417, %v805
      %v807 = vpop.f32.mrb[0].mxu0
      %808 = vmatprep.mubr.bf16.mxu0 0
      %809 = vmatmul.mubr.bf16.gmra.mrb[0].mxu0 %v526
      %v810 = vpop.f32.mrb[0].mxu0
      %v811 = vadd.f32 %v417, %v810
      %v812 = vpop.f32.mrb[0].mxu0
      %v813 = vpop.f32.mrb[0].mxu0
      %v814 = vadd.f32 %v417, %v813
      %v815 = vpop.f32.mrb[0].mxu0
      %816 = vdwg.mxu0
      %v817 = vpack.c.bf16 %v566, %v563
      %v818 = vpack.c.bf16 %v574, %v571
      %v819 = vpack.c.bf16 %v582, %v579
      %v820 = vpack.c.bf16 %v590, %v587
      %v821 = vpack.c.bf16 %v598, %v595
      %v822 = vpack.c.bf16 %v606, %v603
      %v823 = vpack.c.bf16 %v614, %v611
      %v824 = vpack.c.bf16 %v622, %v619
      %v825 = vpack.c.bf16 %v630, %v627
      %v826 = vpack.c.bf16 %v638, %v635
      %v827 = vpack.c.bf16 %v646, %v643
      %v828 = vpack.c.bf16 %v654, %v651
      %v829 = vpack.c.bf16 %v662, %v659
      %v830 = vpack.c.bf16 %v670, %v667
      %v831 = vpack.c.bf16 %v678, %v675
      %v832 = vpack.c.bf16 %v686, %v683
      %v833 = vpack.c.bf16 %v694, %v691
      %v834 = vpack.c.bf16 %v702, %v699
      %v835 = vpack.c.bf16 %v710, %v707
      %v836 = vpack.c.bf16 %v718, %v715
      %v837 = vpack.c.bf16 %v726, %v723
      %v838 = vpack.c.bf16 %v734, %v731
      %v839 = vpack.c.bf16 %v742, %v739
      %v840 = vpack.c.bf16 %v750, %v747
      %v841 = vpack.c.bf16 %v758, %v755
      %v842 = vpack.c.bf16 %v766, %v763
      %v843 = vpack.c.bf16 %v774, %v771
      %v844 = vpack.c.bf16 %v782, %v779
      %v845 = vpack.c.bf16 %v790, %v787
      %v846 = vpack.c.bf16 %v798, %v795
      %v847 = vpack.c.bf16 %v806, %v803
      %v848 = vpack.c.bf16 %v814, %v811
      %v881 = vunpack.c.l.b16 %v817
      %v882 = vunpack.c.h.b16 %v817
      %v883 = vunpack.c.l.b16 %v818
      %v884 = vunpack.c.h.b16 %v818
      %v885 = vunpack.c.l.b16 %v819
      %v886 = vunpack.c.h.b16 %v819
      %v887 = vunpack.c.l.b16 %v820
      %v888 = vunpack.c.h.b16 %v820
      %v889 = vunpack.c.l.b16 %v821
      %v890 = vunpack.c.h.b16 %v821
      %v891 = vunpack.c.l.b16 %v822
      %v892 = vunpack.c.h.b16 %v822
      %v893 = vunpack.c.l.b16 %v823
      %v894 = vunpack.c.h.b16 %v823
      %v895 = vunpack.c.l.b16 %v824
      %v896 = vunpack.c.h.b16 %v824
      %v897 = vunpack.c.l.b16 %v825
      %v898 = vunpack.c.h.b16 %v825
      %v899 = vunpack.c.l.b16 %v826
      %v900 = vunpack.c.h.b16 %v826
      %v901 = vunpack.c.l.b16 %v827
      %v902 = vunpack.c.h.b16 %v827
      %v903 = vunpack.c.l.b16 %v828
      %v904 = vunpack.c.h.b16 %v828
      %v905 = vunpack.c.l.b16 %v829
      %v906 = vunpack.c.h.b16 %v829
      %v907 = vunpack.c.l.b16 %v830
      %v908 = vunpack.c.h.b16 %v830
      %v909 = vunpack.c.l.b16 %v831
      %v910 = vunpack.c.h.b16 %v831
      %v911 = vunpack.c.l.b16 %v832
      %v912 = vunpack.c.h.b16 %v832
      %v913 = vunpack.c.l.b16 %v833
      %v914 = vunpack.c.h.b16 %v833
      %v915 = vunpack.c.l.b16 %v834
      %v916 = vunpack.c.h.b16 %v834
      %v917 = vunpack.c.l.b16 %v835
      %v918 = vunpack.c.h.b16 %v835
      %v919 = vunpack.c.l.b16 %v836
      %v920 = vunpack.c.h.b16 %v836
      %v921 = vunpack.c.l.b16 %v837
      %v922 = vunpack.c.h.b16 %v837
      %v923 = vunpack.c.l.b16 %v838
      %v924 = vunpack.c.h.b16 %v838
      %v925 = vunpack.c.l.b16 %v839
      %v926 = vunpack.c.h.b16 %v839
      %v927 = vunpack.c.l.b16 %v840
      %v928 = vunpack.c.h.b16 %v840
      %v929 = vunpack.c.l.b16 %v841
      %v930 = vunpack.c.h.b16 %v841
      %v931 = vunpack.c.l.b16 %v842
      %v932 = vunpack.c.h.b16 %v842
      %v933 = vunpack.c.l.b16 %v843
      %v934 = vunpack.c.h.b16 %v843
      %v935 = vunpack.c.l.b16 %v844
      %v936 = vunpack.c.h.b16 %v844
      %v937 = vunpack.c.l.b16 %v845
      %v938 = vunpack.c.h.b16 %v845
      %v939 = vunpack.c.l.b16 %v846
      %v940 = vunpack.c.h.b16 %v846
      %v941 = vunpack.c.l.b16 %v847
      %v942 = vunpack.c.h.b16 %v847
      %v943 = vunpack.c.l.b16 %v848
      %v944 = vunpack.c.h.b16 %v848
      %v945 = vpack.c.b16 %v881, %v881
      %v946 = vpack.c.b16 %v882, %v882
      %v947 = vpack.c.b16 %v883, %v883
      %v948 = vpack.c.b16 %v884, %v884
      %v949 = vpack.c.b16 %v885, %v885
      %v950 = vpack.c.b16 %v886, %v886
      %v951 = vpack.c.b16 %v887, %v887
      %v952 = vpack.c.b16 %v888, %v888
      %v953 = vpack.c.b16 %v889, %v889
      %v954 = vpack.c.b16 %v890, %v890
      %v955 = vpack.c.b16 %v891, %v891
      %v956 = vpack.c.b16 %v892, %v892
      %v957 = vpack.c.b16 %v893, %v893
      %v958 = vpack.c.b16 %v894, %v894
      %v959 = vpack.c.b16 %v895, %v895
      %v960 = vpack.c.b16 %v896, %v896
      %v961 = vpack.c.b16 %v897, %v897
      %v962 = vpack.c.b16 %v898, %v898
      %v963 = vpack.c.b16 %v899, %v899
      %v964 = vpack.c.b16 %v900, %v900
      %v965 = vpack.c.b16 %v901, %v901
      %v966 = vpack.c.b16 %v902, %v902
      %v967 = vpack.c.b16 %v903, %v903
      %v968 = vpack.c.b16 %v904, %v904
      %v969 = vpack.c.b16 %v905, %v905
      %v970 = vpack.c.b16 %v906, %v906
      %v971 = vpack.c.b16 %v907, %v907
      %v972 = vpack.c.b16 %v908, %v908
      %v973 = vpack.c.b16 %v909, %v909
      %v974 = vpack.c.b16 %v910, %v910
      %v975 = vpack.c.b16 %v911, %v911
      %v976 = vpack.c.b16 %v912, %v912
      %v977 = vpack.c.b16 %v913, %v913
      %v978 = vpack.c.b16 %v914, %v914
      %v979 = vpack.c.b16 %v915, %v915
      %v980 = vpack.c.b16 %v916, %v916
      %v981 = vpack.c.b16 %v917, %v917
      %v982 = vpack.c.b16 %v918, %v918
      %v983 = vpack.c.b16 %v919, %v919
      %v984 = vpack.c.b16 %v920, %v920
      %v985 = vpack.c.b16 %v921, %v921
      %v986 = vpack.c.b16 %v922, %v922
      %v987 = vpack.c.b16 %v923, %v923
      %v988 = vpack.c.b16 %v924, %v924
      %v989 = vpack.c.b16 %v925, %v925
      %v990 = vpack.c.b16 %v926, %v926
      %v991 = vpack.c.b16 %v927, %v927
      %v992 = vpack.c.b16 %v928, %v928
      %v993 = vpack.c.b16 %v929, %v929
      %v994 = vpack.c.b16 %v930, %v930
      %v995 = vpack.c.b16 %v931, %v931
      %v996 = vpack.c.b16 %v932, %v932
      %v997 = vpack.c.b16 %v933, %v933
      %v998 = vpack.c.b16 %v934, %v934
      %v999 = vpack.c.b16 %v935, %v935
      %v1000 = vpack.c.b16 %v936, %v936
      %v1001 = vpack.c.b16 %v937, %v937
      %v1002 = vpack.c.b16 %v938, %v938
      %v1003 = vpack.c.b16 %v939, %v939
      %v1004 = vpack.c.b16 %v940, %v940
      %v1005 = vpack.c.b16 %v941, %v941
      %v1006 = vpack.c.b16 %v942, %v942
      %v1007 = vpack.c.b16 %v943, %v943
      %v1008 = vpack.c.b16 %v944, %v944
      %vm1073 = vcmask 60416
      %1074 = vst.msk [vmem:[%s289] sm:$0xf] %vm1073, %v945
      %1075 = vst.msk [vmem:[%s289 + $0x4] sm:$0xf] %vm1073, %v946
      %1076 = vst.msk [vmem:[%s289 + $0x8] sm:$0xf] %vm1073, %v947
      %1077 = vst.msk [vmem:[%s289 + $0xc] sm:$0xf] %vm1073, %v948
      %1078 = vst.msk [vmem:[%s289 + $0x10] sm:$0xf] %vm1073, %v949
      %1079 = vst.msk [vmem:[%s289 + $0x14] sm:$0xf] %vm1073, %v950
      %1080 = vst.msk [vmem:[%s289 + $0x18] sm:$0xf] %vm1073, %v951
      %1081 = vst.msk [vmem:[%s289 + $0x1c] sm:$0xf] %vm1073, %v952
      %1082 = vst.msk [vmem:[%s289 + $0x20] sm:$0xf] %vm1073, %v953
      %1083 = vst.msk [vmem:[%s289 + $0x24] sm:$0xf] %vm1073, %v954
      %1084 = vst.msk [vmem:[%s289 + $0x28] sm:$0xf] %vm1073, %v955
      %1085 = vst.msk [vmem:[%s289 + $0x2c] sm:$0xf] %vm1073, %v956
      %1086 = vst.msk [vmem:[%s289 + $0x30] sm:$0xf] %vm1073, %v957
      %1087 = vst.msk [vmem:[%s289 + $0x34] sm:$0xf] %vm1073, %v958
      %1088 = vst.msk [vmem:[%s289 + $0x38] sm:$0xf] %vm1073, %v959
      %1089 = vst.msk [vmem:[%s289 + $0x3c] sm:$0xf] %vm1073, %v960
      %1090 = vst.msk [vmem:[%s289 + $0x40] sm:$0xf] %vm1073, %v961
      %1091 = vst.msk [vmem:[%s289 + $0x44] sm:$0xf] %vm1073, %v962
      %1092 = vst.msk [vmem:[%s289 + $0x48] sm:$0xf] %vm1073, %v963
      %1093 = vst.msk [vmem:[%s289 + $0x4c] sm:$0xf] %vm1073, %v964
      %1094 = vst.msk [vmem:[%s289 + $0x50] sm:$0xf] %vm1073, %v965
      %1095 = vst.msk [vmem:[%s289 + $0x54] sm:$0xf] %vm1073, %v966
      %1096 = vst.msk [vmem:[%s289 + $0x58] sm:$0xf] %vm1073, %v967
      %1097 = vst.msk [vmem:[%s289 + $0x5c] sm:$0xf] %vm1073, %v968
      %1098 = vst.msk [vmem:[%s289 + $0x60] sm:$0xf] %vm1073, %v969
      %1099 = vst.msk [vmem:[%s289 + $0x64] sm:$0xf] %vm1073, %v970
      %1100 = vst.msk [vmem:[%s289 + $0x68] sm:$0xf] %vm1073, %v971
      %1101 = vst.msk [vmem:[%s289 + $0x6c] sm:$0xf] %vm1073, %v972
      %1102 = vst.msk [vmem:[%s289 + $0x70] sm:$0xf] %vm1073, %v973
      %1103 = vst.msk [vmem:[%s289 + $0x74] sm:$0xf] %vm1073, %v974
      %1104 = vst.msk [vmem:[%s289 + $0x78] sm:$0xf] %vm1073, %v975
      %1105 = vst.msk [vmem:[%s289 + $0x7c] sm:$0xf] %vm1073, %v976
      %1106 = vst.msk [vmem:[%s289 + $0x80] sm:$0xf] %vm1073, %v977
      %1107 = vst.msk [vmem:[%s289 + $0x84] sm:$0xf] %vm1073, %v978
      %1108 = vst.msk [vmem:[%s289 + $0x88] sm:$0xf] %vm1073, %v979
      %1109 = vst.msk [vmem:[%s289 + $0x8c] sm:$0xf] %vm1073, %v980
      %1110 = vst.msk [vmem:[%s289 + $0x90] sm:$0xf] %vm1073, %v981
      %1111 = vst.msk [vmem:[%s289 + $0x94] sm:$0xf] %vm1073, %v982
      %1112 = vst.msk [vmem:[%s289 + $0x98] sm:$0xf] %vm1073, %v983
      %1113 = vst.msk [vmem:[%s289 + $0x9c] sm:$0xf] %vm1073, %v984
      %1114 = vst.msk [vmem:[%s289 + $0xa0] sm:$0xf] %vm1073, %v985
      %1115 = vst.msk [vmem:[%s289 + $0xa4] sm:$0xf] %vm1073, %v986
      %1116 = vst.msk [vmem:[%s289 + $0xa8] sm:$0xf] %vm1073, %v987
      %1117 = vst.msk [vmem:[%s289 + $0xac] sm:$0xf] %vm1073, %v988
      %1118 = vst.msk [vmem:[%s289 + $0xb0] sm:$0xf] %vm1073, %v989
      %1119 = vst.msk [vmem:[%s289 + $0xb4] sm:$0xf] %vm1073, %v990
      %1120 = vst.msk [vmem:[%s289 + $0xb8] sm:$0xf] %vm1073, %v991
      %1121 = vst.msk [vmem:[%s289 + $0xbc] sm:$0xf] %vm1073, %v992
      %1122 = vst.msk [vmem:[%s289 + $0xc0] sm:$0xf] %vm1073, %v993
      %1123 = vst.msk [vmem:[%s289 + $0xc4] sm:$0xf] %vm1073, %v994
      %1124 = vst.msk [vmem:[%s289 + $0xc8] sm:$0xf] %vm1073, %v995
      %1125 = vst.msk [vmem:[%s289 + $0xcc] sm:$0xf] %vm1073, %v996
      %1126 = vst.msk [vmem:[%s289 + $0xd0] sm:$0xf] %vm1073, %v997
      %1127 = vst.msk [vmem:[%s289 + $0xd4] sm:$0xf] %vm1073, %v998
      %1128 = vst.msk [vmem:[%s289 + $0xd8] sm:$0xf] %vm1073, %v999
      %1129 = vst.msk [vmem:[%s289 + $0xdc] sm:$0xf] %vm1073, %v1000
      %1130 = vst.msk [vmem:[%s289 + $0xe0] sm:$0xf] %vm1073, %v1001
      %1131 = vst.msk [vmem:[%s289 + $0xe4] sm:$0xf] %vm1073, %v1002
      %1132 = vst.msk [vmem:[%s289 + $0xe8] sm:$0xf] %vm1073, %v1003
      %1133 = vst.msk [vmem:[%s289 + $0xec] sm:$0xf] %vm1073, %v1004
      %1134 = vst.msk [vmem:[%s289 + $0xf0] sm:$0xf] %vm1073, %v1005
      %1135 = vst.msk [vmem:[%s289 + $0xf4] sm:$0xf] %vm1073, %v1006
      %1136 = vst.msk [vmem:[%s289 + $0xf8] sm:$0xf] %vm1073, %v1007
      %1137 = vst.msk [vmem:[%s289 + $0xfc] sm:$0xf] %vm1073, %v1008
      %1138 = vrot.lane.b32.xlu0 %v945, 96
      %v1139 = vpop.permute.xlu0 %1138
      %1140 = vrot.lane.b32.xlu0 %v946, 96
      %v1141 = vpop.permute.xlu0 %1140
      %1142 = vrot.lane.b32.xlu0 %v947, 96
      %v1143 = vpop.permute.xlu0 %1142
      %1144 = vrot.lane.b32.xlu0 %v948, 96
      %v1145 = vpop.permute.xlu0 %1144
      %1146 = vrot.lane.b32.xlu0 %v949, 96
      %v1147 = vpop.permute.xlu0 %1146
      %1148 = vrot.lane.b32.xlu0 %v950, 96
      %v1149 = vpop.permute.xlu0 %1148
      %1150 = vrot.lane.b32.xlu0 %v951, 96
      %v1151 = vpop.permute.xlu0 %1150
      %1152 = vrot.lane.b32.xlu0 %v952, 96
      %v1153 = vpop.permute.xlu0 %1152
      %1154 = vrot.lane.b32.xlu0 %v953, 96
      %v1155 = vpop.permute.xlu0 %1154
      %1156 = vrot.lane.b32.xlu0 %v954, 96
      %v1157 = vpop.permute.xlu0 %1156
      %1158 = vrot.lane.b32.xlu0 %v955, 96
      %v1159 = vpop.permute.xlu0 %1158
      %1160 = vrot.lane.b32.xlu0 %v956, 96
      %v1161 = vpop.permute.xlu0 %1160
      %1162 = vrot.lane.b32.xlu0 %v957, 96
      %v1163 = vpop.permute.xlu0 %1162
      %1164 = vrot.lane.b32.xlu0 %v958, 96
      %v1165 = vpop.permute.xlu0 %1164
      %1166 = vrot.lane.b32.xlu0 %v959, 96
      %v1167 = vpop.permute.xlu0 %1166
      %1168 = vrot.lane.b32.xlu0 %v960, 96
      %v1169 = vpop.permute.xlu0 %1168
      %1170 = vrot.lane.b32.xlu0 %v961, 96
      %v1171 = vpop.permute.xlu0 %1170
      %1172 = vrot.lane.b32.xlu0 %v962, 96
      %v1173 = vpop.permute.xlu0 %1172
      %1174 = vrot.lane.b32.xlu0 %v963, 96
      %v1175 = vpop.permute.xlu0 %1174
      %1176 = vrot.lane.b32.xlu0 %v964, 96
      %v1177 = vpop.permute.xlu0 %1176
      %1178 = vrot.lane.b32.xlu0 %v965, 96
      %v1179 = vpop.permute.xlu0 %1178
      %1180 = vrot.lane.b32.xlu0 %v966, 96
      %v1181 = vpop.permute.xlu0 %1180
      %1182 = vrot.lane.b32.xlu0 %v967, 96
      %v1183 = vpop.permute.xlu0 %1182
      %1184 = vrot.lane.b32.xlu0 %v968, 96
      %v1185 = vpop.permute.xlu0 %1184
      %1186 = vrot.lane.b32.xlu0 %v969, 96
      %v1187 = vpop.permute.xlu0 %1186
      %1188 = vrot.lane.b32.xlu0 %v970, 96
      %v1189 = vpop.permute.xlu0 %1188
      %1190 = vrot.lane.b32.xlu0 %v971, 96
      %v1191 = vpop.permute.xlu0 %1190
      %1192 = vrot.lane.b32.xlu0 %v972, 96
      %v1193 = vpop.permute.xlu0 %1192
      %1194 = vrot.lane.b32.xlu0 %v973, 96
      %v1195 = vpop.permute.xlu0 %1194
      %1196 = vrot.lane.b32.xlu0 %v974, 96
      %v1197 = vpop.permute.xlu0 %1196
      %1198 = vrot.lane.b32.xlu0 %v975, 96
      %v1199 = vpop.permute.xlu0 %1198
      %1200 = vrot.lane.b32.xlu0 %v976, 96
      %v1201 = vpop.permute.xlu0 %1200
      %1202 = vrot.lane.b32.xlu0 %v977, 96
      %v1203 = vpop.permute.xlu0 %1202
      %1204 = vrot.lane.b32.xlu0 %v978, 96
      %v1205 = vpop.permute.xlu0 %1204
      %1206 = vrot.lane.b32.xlu0 %v979, 96
      %v1207 = vpop.permute.xlu0 %1206
      %1208 = vrot.lane.b32.xlu0 %v980, 96
      %v1209 = vpop.permute.xlu0 %1208
      %1210 = vrot.lane.b32.xlu0 %v981, 96
      %v1211 = vpop.permute.xlu0 %1210
      %1212 = vrot.lane.b32.xlu0 %v982, 96
      %v1213 = vpop.permute.xlu0 %1212
      %1214 = vrot.lane.b32.xlu0 %v983, 96
      %v1215 = vpop.permute.xlu0 %1214
      %1216 = vrot.lane.b32.xlu0 %v984, 96
      %v1217 = vpop.permute.xlu0 %1216
      %1218 = vrot.lane.b32.xlu0 %v985, 96
      %v1219 = vpop.permute.xlu0 %1218
      %1220 = vrot.lane.b32.xlu0 %v986, 96
      %v1221 = vpop.permute.xlu0 %1220
      %1222 = vrot.lane.b32.xlu0 %v987, 96
      %v1223 = vpop.permute.xlu0 %1222
      %1224 = vrot.lane.b32.xlu0 %v988, 96
      %v1225 = vpop.permute.xlu0 %1224
      %1226 = vrot.lane.b32.xlu0 %v989, 96
      %v1227 = vpop.permute.xlu0 %1226
      %1228 = vrot.lane.b32.xlu0 %v990, 96
      %v1229 = vpop.permute.xlu0 %1228
      %1230 = vrot.lane.b32.xlu0 %v991, 96
      %v1231 = vpop.permute.xlu0 %1230
      %1232 = vrot.lane.b32.xlu0 %v992, 96
      %v1233 = vpop.permute.xlu0 %1232
      %1234 = vrot.lane.b32.xlu0 %v993, 96
      %v1235 = vpop.permute.xlu0 %1234
      %1236 = vrot.lane.b32.xlu0 %v994, 96
      %v1237 = vpop.permute.xlu0 %1236
      %1238 = vrot.lane.b32.xlu0 %v995, 96
      %v1239 = vpop.permute.xlu0 %1238
      %1240 = vrot.lane.b32.xlu0 %v996, 96
      %v1241 = vpop.permute.xlu0 %1240
      %1242 = vrot.lane.b32.xlu0 %v997, 96
      %v1243 = vpop.permute.xlu0 %1242
      %1244 = vrot.lane.b32.xlu0 %v998, 96
      %v1245 = vpop.permute.xlu0 %1244
      %1246 = vrot.lane.b32.xlu0 %v999, 96
      %v1247 = vpop.permute.xlu0 %1246
      %1248 = vrot.lane.b32.xlu0 %v1000, 96
      %v1249 = vpop.permute.xlu0 %1248
      %1250 = vrot.lane.b32.xlu0 %v1001, 96
      %v1251 = vpop.permute.xlu0 %1250
      %1252 = vrot.lane.b32.xlu0 %v1002, 96
      %v1253 = vpop.permute.xlu0 %1252
      %1254 = vrot.lane.b32.xlu0 %v1003, 96
      %v1255 = vpop.permute.xlu0 %1254
      %1256 = vrot.lane.b32.xlu0 %v1004, 96
      %v1257 = vpop.permute.xlu0 %1256
      %1258 = vrot.lane.b32.xlu0 %v1005, 96
      %v1259 = vpop.permute.xlu0 %1258
      %1260 = vrot.lane.b32.xlu0 %v1006, 96
      %v1261 = vpop.permute.xlu0 %1260
      %1262 = vrot.lane.b32.xlu0 %v1007, 96
      %v1263 = vpop.permute.xlu0 %1262
      %1264 = vrot.lane.b32.xlu0 %v1008, 96
      %v1265 = vpop.permute.xlu0 %1264
      %1330 = vst.msk [vmem:[%s299] sm:$0xf] %vm1073, %v1139
      %1331 = vst.msk [vmem:[%s299 + $0x4] sm:$0xf] %vm1073, %v1141
      %1332 = vst.msk [vmem:[%s299 + $0x8] sm:$0xf] %vm1073, %v1143
      %1333 = vst.msk [vmem:[%s299 + $0xc] sm:$0xf] %vm1073, %v1145
      %1334 = vst.msk [vmem:[%s299 + $0x10] sm:$0xf] %vm1073, %v1147
      %1335 = vst.msk [vmem:[%s299 + $0x14] sm:$0xf] %vm1073, %v1149
      %1336 = vst.msk [vmem:[%s299 + $0x18] sm:$0xf] %vm1073, %v1151
      %1337 = vst.msk [vmem:[%s299 + $0x1c] sm:$0xf] %vm1073, %v1153
      %1338 = vst.msk [vmem:[%s299 + $0x20] sm:$0xf] %vm1073, %v1155
      %1339 = vst.msk [vmem:[%s299 + $0x24] sm:$0xf] %vm1073, %v1157
      %1340 = vst.msk [vmem:[%s299 + $0x28] sm:$0xf] %vm1073, %v1159
      %1341 = vst.msk [vmem:[%s299 + $0x2c] sm:$0xf] %vm1073, %v1161
      %1342 = vst.msk [vmem:[%s299 + $0x30] sm:$0xf] %vm1073, %v1163
      %1343 = vst.msk [vmem:[%s299 + $0x34] sm:$0xf] %vm1073, %v1165
      %1344 = vst.msk [vmem:[%s299 + $0x38] sm:$0xf] %vm1073, %v1167
      %1345 = vst.msk [vmem:[%s299 + $0x3c] sm:$0xf] %vm1073, %v1169
      %1346 = vst.msk [vmem:[%s299 + $0x40] sm:$0xf] %vm1073, %v1171
      %1347 = vst.msk [vmem:[%s299 + $0x44] sm:$0xf] %vm1073, %v1173
      %1348 = vst.msk [vmem:[%s299 + $0x48] sm:$0xf] %vm1073, %v1175
      %1349 = vst.msk [vmem:[%s299 + $0x4c] sm:$0xf] %vm1073, %v1177
      %1350 = vst.msk [vmem:[%s299 + $0x50] sm:$0xf] %vm1073, %v1179
      %1351 = vst.msk [vmem:[%s299 + $0x54] sm:$0xf] %vm1073, %v1181
      %1352 = vst.msk [vmem:[%s299 + $0x58] sm:$0xf] %vm1073, %v1183
      %1353 = vst.msk [vmem:[%s299 + $0x5c] sm:$0xf] %vm1073, %v1185
      %1354 = vst.msk [vmem:[%s299 + $0x60] sm:$0xf] %vm1073, %v1187
      %1355 = vst.msk [vmem:[%s299 + $0x64] sm:$0xf] %vm1073, %v1189
      %1356 = vst.msk [vmem:[%s299 + $0x68] sm:$0xf] %vm1073, %v1191
      %1357 = vst.msk [vmem:[%s299 + $0x6c] sm:$0xf] %vm1073, %v1193
      %1358 = vst.msk [vmem:[%s299 + $0x70] sm:$0xf] %vm1073, %v1195
      %1359 = vst.msk [vmem:[%s299 + $0x74] sm:$0xf] %vm1073, %v1197
      %1360 = vst.msk [vmem:[%s299 + $0x78] sm:$0xf] %vm1073, %v1199
      %1361 = vst.msk [vmem:[%s299 + $0x7c] sm:$0xf] %vm1073, %v1201
      %1362 = vst.msk [vmem:[%s299 + $0x80] sm:$0xf] %vm1073, %v1203
      %1363 = vst.msk [vmem:[%s299 + $0x84] sm:$0xf] %vm1073, %v1205
      %1364 = vst.msk [vmem:[%s299 + $0x88] sm:$0xf] %vm1073, %v1207
      %1365 = vst.msk [vmem:[%s299 + $0x8c] sm:$0xf] %vm1073, %v1209
      %1366 = vst.msk [vmem:[%s299 + $0x90] sm:$0xf] %vm1073, %v1211
      %1367 = vst.msk [vmem:[%s299 + $0x94] sm:$0xf] %vm1073, %v1213
      %1368 = vst.msk [vmem:[%s299 + $0x98] sm:$0xf] %vm1073, %v1215
      %1369 = vst.msk [vmem:[%s299 + $0x9c] sm:$0xf] %vm1073, %v1217
      %1370 = vst.msk [vmem:[%s299 + $0xa0] sm:$0xf] %vm1073, %v1219
      %1371 = vst.msk [vmem:[%s299 + $0xa4] sm:$0xf] %vm1073, %v1221
      %1372 = vst.msk [vmem:[%s299 + $0xa8] sm:$0xf] %vm1073, %v1223
      %1373 = vst.msk [vmem:[%s299 + $0xac] sm:$0xf] %vm1073, %v1225
      %1374 = vst.msk [vmem:[%s299 + $0xb0] sm:$0xf] %vm1073, %v1227
      %1375 = vst.msk [vmem:[%s299 + $0xb4] sm:$0xf] %vm1073, %v1229
      %1376 = vst.msk [vmem:[%s299 + $0xb8] sm:$0xf] %vm1073, %v1231
      %1377 = vst.msk [vmem:[%s299 + $0xbc] sm:$0xf] %vm1073, %v1233
      %1378 = vst.msk [vmem:[%s299 + $0xc0] sm:$0xf] %vm1073, %v1235
      %1379 = vst.msk [vmem:[%s299 + $0xc4] sm:$0xf] %vm1073, %v1237
      %1380 = vst.msk [vmem:[%s299 + $0xc8] sm:$0xf] %vm1073, %v1239
      %1381 = vst.msk [vmem:[%s299 + $0xcc] sm:$0xf] %vm1073, %v1241
      %1382 = vst.msk [vmem:[%s299 + $0xd0] sm:$0xf] %vm1073, %v1243
      %1383 = vst.msk [vmem:[%s299 + $0xd4] sm:$0xf] %vm1073, %v1245
      %1384 = vst.msk [vmem:[%s299 + $0xd8] sm:$0xf] %vm1073, %v1247
      %1385 = vst.msk [vmem:[%s299 + $0xdc] sm:$0xf] %vm1073, %v1249
      %1386 = vst.msk [vmem:[%s299 + $0xe0] sm:$0xf] %vm1073, %v1251
      %1387 = vst.msk [vmem:[%s299 + $0xe4] sm:$0xf] %vm1073, %v1253
      %1388 = vst.msk [vmem:[%s299 + $0xe8] sm:$0xf] %vm1073, %v1255
      %1389 = vst.msk [vmem:[%s299 + $0xec] sm:$0xf] %vm1073, %v1257
      %1390 = vst.msk [vmem:[%s299 + $0xf0] sm:$0xf] %vm1073, %v1259
      %1391 = vst.msk [vmem:[%s299 + $0xf4] sm:$0xf] %vm1073, %v1261
      %1392 = vst.msk [vmem:[%s299 + $0xf8] sm:$0xf] %vm1073, %v1263
      %1393 = vst.msk [vmem:[%s299 + $0xfc] sm:$0xf] %vm1073, %v1265
      %1394 = vrot.lane.b32.xlu0 %v945, 64
      %v1395 = vpop.permute.xlu0 %1394
      %1396 = vrot.lane.b32.xlu0 %v946, 64
      %v1397 = vpop.permute.xlu0 %1396
      %1398 = vrot.lane.b32.xlu0 %v947, 64
      %v1399 = vpop.permute.xlu0 %1398
      %1400 = vrot.lane.b32.xlu0 %v948, 64
      %v1401 = vpop.permute.xlu0 %1400
      %1402 = vrot.lane.b32.xlu0 %v949, 64
      %v1403 = vpop.permute.xlu0 %1402
      %1404 = vrot.lane.b32.xlu0 %v950, 64
      %v1405 = vpop.permute.xlu0 %1404
      %1406 = vrot.lane.b32.xlu0 %v951, 64
      %v1407 = vpop.permute.xlu0 %1406
      %1408 = vrot.lane.b32.xlu0 %v952, 64
      %v1409 = vpop.permute.xlu0 %1408
      %1410 = vrot.lane.b32.xlu0 %v953, 64
      %v1411 = vpop.permute.xlu0 %1410
      %1412 = vrot.lane.b32.xlu0 %v954, 64
      %v1413 = vpop.permute.xlu0 %1412
      %1414 = vrot.lane.b32.xlu0 %v955, 64
      %v1415 = vpop.permute.xlu0 %1414
      %1416 = vrot.lane.b32.xlu0 %v956, 64
      %v1417 = vpop.permute.xlu0 %1416
      %1418 = vrot.lane.b32.xlu0 %v957, 64
      %v1419 = vpop.permute.xlu0 %1418
      %1420 = vrot.lane.b32.xlu0 %v958, 64
      %v1421 = vpop.permute.xlu0 %1420
      %1422 = vrot.lane.b32.xlu0 %v959, 64
      %v1423 = vpop.permute.xlu0 %1422
      %1424 = vrot.lane.b32.xlu0 %v960, 64
      %v1425 = vpop.permute.xlu0 %1424
      %1426 = vrot.lane.b32.xlu0 %v961, 64
      %v1427 = vpop.permute.xlu0 %1426
      %1428 = vrot.lane.b32.xlu0 %v962, 64
      %v1429 = vpop.permute.xlu0 %1428
      %1430 = vrot.lane.b32.xlu0 %v963, 64
      %v1431 = vpop.permute.xlu0 %1430
      %1432 = vrot.lane.b32.xlu0 %v964, 64
      %v1433 = vpop.permute.xlu0 %1432
      %1434 = vrot.lane.b32.xlu0 %v965, 64
      %v1435 = vpop.permute.xlu0 %1434
      %1436 = vrot.lane.b32.xlu0 %v966, 64
      %v1437 = vpop.permute.xlu0 %1436
      %1438 = vrot.lane.b32.xlu0 %v967, 64
      %v1439 = vpop.permute.xlu0 %1438
      %1440 = vrot.lane.b32.xlu0 %v968, 64
      %v1441 = vpop.permute.xlu0 %1440
      %1442 = vrot.lane.b32.xlu0 %v969, 64
      %v1443 = vpop.permute.xlu0 %1442
      %1444 = vrot.lane.b32.xlu0 %v970, 64
      %v1445 = vpop.permute.xlu0 %1444
      %1446 = vrot.lane.b32.xlu0 %v971, 64
      %v1447 = vpop.permute.xlu0 %1446
      %1448 = vrot.lane.b32.xlu0 %v972, 64
      %v1449 = vpop.permute.xlu0 %1448
      %1450 = vrot.lane.b32.xlu0 %v973, 64
      %v1451 = vpop.permute.xlu0 %1450
      %1452 = vrot.lane.b32.xlu0 %v974, 64
      %v1453 = vpop.permute.xlu0 %1452
      %1454 = vrot.lane.b32.xlu0 %v975, 64
      %v1455 = vpop.permute.xlu0 %1454
      %1456 = vrot.lane.b32.xlu0 %v976, 64
      %v1457 = vpop.permute.xlu0 %1456
      %1458 = vrot.lane.b32.xlu0 %v977, 64
      %v1459 = vpop.permute.xlu0 %1458
      %1460 = vrot.lane.b32.xlu0 %v978, 64
      %v1461 = vpop.permute.xlu0 %1460
      %1462 = vrot.lane.b32.xlu0 %v979, 64
      %v1463 = vpop.permute.xlu0 %1462
      %1464 = vrot.lane.b32.xlu0 %v980, 64
      %v1465 = vpop.permute.xlu0 %1464
      %1466 = vrot.lane.b32.xlu0 %v981, 64
      %v1467 = vpop.permute.xlu0 %1466
      %1468 = vrot.lane.b32.xlu0 %v982, 64
      %v1469 = vpop.permute.xlu0 %1468
      %1470 = vrot.lane.b32.xlu0 %v983, 64
      %v1471 = vpop.permute.xlu0 %1470
      %1472 = vrot.lane.b32.xlu0 %v984, 64
      %v1473 = vpop.permute.xlu0 %1472
      %1474 = vrot.lane.b32.xlu0 %v985, 64
      %v1475 = vpop.permute.xlu0 %1474
      %1476 = vrot.lane.b32.xlu0 %v986, 64
      %v1477 = vpop.permute.xlu0 %1476
      %1478 = vrot.lane.b32.xlu0 %v987, 64
      %v1479 = vpop.permute.xlu0 %1478
      %1480 = vrot.lane.b32.xlu0 %v988, 64
      %v1481 = vpop.permute.xlu0 %1480
      %1482 = vrot.lane.b32.xlu0 %v989, 64
      %v1483 = vpop.permute.xlu0 %1482
      %1484 = vrot.lane.b32.xlu0 %v990, 64
      %v1485 = vpop.permute.xlu0 %1484
      %1486 = vrot.lane.b32.xlu0 %v991, 64
      %v1487 = vpop.permute.xlu0 %1486
      %1488 = vrot.lane.b32.xlu0 %v992, 64
      %v1489 = vpop.permute.xlu0 %1488
      %1490 = vrot.lane.b32.xlu0 %v993, 64
      %v1491 = vpop.permute.xlu0 %1490
      %1492 = vrot.lane.b32.xlu0 %v994, 64
      %v1493 = vpop.permute.xlu0 %1492
      %1494 = vrot.lane.b32.xlu0 %v995, 64
      %v1495 = vpop.permute.xlu0 %1494
      %1496 = vrot.lane.b32.xlu0 %v996, 64
      %v1497 = vpop.permute.xlu0 %1496
      %1498 = vrot.lane.b32.xlu0 %v997, 64
      %v1499 = vpop.permute.xlu0 %1498
      %1500 = vrot.lane.b32.xlu0 %v998, 64
      %v1501 = vpop.permute.xlu0 %1500
      %1502 = vrot.lane.b32.xlu0 %v999, 64
      %v1503 = vpop.permute.xlu0 %1502
      %1504 = vrot.lane.b32.xlu0 %v1000, 64
      %v1505 = vpop.permute.xlu0 %1504
      %1506 = vrot.lane.b32.xlu0 %v1001, 64
      %v1507 = vpop.permute.xlu0 %1506
      %1508 = vrot.lane.b32.xlu0 %v1002, 64
      %v1509 = vpop.permute.xlu0 %1508
      %1510 = vrot.lane.b32.xlu0 %v1003, 64
      %v1511 = vpop.permute.xlu0 %1510
      %1512 = vrot.lane.b32.xlu0 %v1004, 64
      %v1513 = vpop.permute.xlu0 %1512
      %1514 = vrot.lane.b32.xlu0 %v1005, 64
      %v1515 = vpop.permute.xlu0 %1514
      %1516 = vrot.lane.b32.xlu0 %v1006, 64
      %v1517 = vpop.permute.xlu0 %1516
      %1518 = vrot.lane.b32.xlu0 %v1007, 64
      %v1519 = vpop.permute.xlu0 %1518
      %1520 = vrot.lane.b32.xlu0 %v1008, 64
      %v1521 = vpop.permute.xlu0 %1520
      %1586 = vst.msk [vmem:[%s309] sm:$0xf] %vm1073, %v1395
      %1587 = vst.msk [vmem:[%s309 + $0x4] sm:$0xf] %vm1073, %v1397
      %1588 = vst.msk [vmem:[%s309 + $0x8] sm:$0xf] %vm1073, %v1399
      %1589 = vst.msk [vmem:[%s309 + $0xc] sm:$0xf] %vm1073, %v1401
      %1590 = vst.msk [vmem:[%s309 + $0x10] sm:$0xf] %vm1073, %v1403
      %1591 = vst.msk [vmem:[%s309 + $0x14] sm:$0xf] %vm1073, %v1405
      %1592 = vst.msk [vmem:[%s309 + $0x18] sm:$0xf] %vm1073, %v1407
      %1593 = vst.msk [vmem:[%s309 + $0x1c] sm:$0xf] %vm1073, %v1409
      %1594 = vst.msk [vmem:[%s309 + $0x20] sm:$0xf] %vm1073, %v1411
      %1595 = vst.msk [vmem:[%s309 + $0x24] sm:$0xf] %vm1073, %v1413
      %1596 = vst.msk [vmem:[%s309 + $0x28] sm:$0xf] %vm1073, %v1415
      %1597 = vst.msk [vmem:[%s309 + $0x2c] sm:$0xf] %vm1073, %v1417
      %1598 = vst.msk [vmem:[%s309 + $0x30] sm:$0xf] %vm1073, %v1419
      %1599 = vst.msk [vmem:[%s309 + $0x34] sm:$0xf] %vm1073, %v1421
      %1600 = vst.msk [vmem:[%s309 + $0x38] sm:$0xf] %vm1073, %v1423
      %1601 = vst.msk [vmem:[%s309 + $0x3c] sm:$0xf] %vm1073, %v1425
      %1602 = vst.msk [vmem:[%s309 + $0x40] sm:$0xf] %vm1073, %v1427
      %1603 = vst.msk [vmem:[%s309 + $0x44] sm:$0xf] %vm1073, %v1429
      %1604 = vst.msk [vmem:[%s309 + $0x48] sm:$0xf] %vm1073, %v1431
      %1605 = vst.msk [vmem:[%s309 + $0x4c] sm:$0xf] %vm1073, %v1433
      %1606 = vst.msk [vmem:[%s309 + $0x50] sm:$0xf] %vm1073, %v1435
      %1607 = vst.msk [vmem:[%s309 + $0x54] sm:$0xf] %vm1073, %v1437
      %1608 = vst.msk [vmem:[%s309 + $0x58] sm:$0xf] %vm1073, %v1439
      %1609 = vst.msk [vmem:[%s309 + $0x5c] sm:$0xf] %vm1073, %v1441
      %1610 = vst.msk [vmem:[%s309 + $0x60] sm:$0xf] %vm1073, %v1443
      %1611 = vst.msk [vmem:[%s309 + $0x64] sm:$0xf] %vm1073, %v1445
      %1612 = vst.msk [vmem:[%s309 + $0x68] sm:$0xf] %vm1073, %v1447
      %1613 = vst.msk [vmem:[%s309 + $0x6c] sm:$0xf] %vm1073, %v1449
      %1614 = vst.msk [vmem:[%s309 + $0x70] sm:$0xf] %vm1073, %v1451
      %1615 = vst.msk [vmem:[%s309 + $0x74] sm:$0xf] %vm1073, %v1453
      %1616 = vst.msk [vmem:[%s309 + $0x78] sm:$0xf] %vm1073, %v1455
      %1617 = vst.msk [vmem:[%s309 + $0x7c] sm:$0xf] %vm1073, %v1457
      %1618 = vst.msk [vmem:[%s309 + $0x80] sm:$0xf] %vm1073, %v1459
      %1619 = vst.msk [vmem:[%s309 + $0x84] sm:$0xf] %vm1073, %v1461
      %1620 = vst.msk [vmem:[%s309 + $0x88] sm:$0xf] %vm1073, %v1463
      %1621 = vst.msk [vmem:[%s309 + $0x8c] sm:$0xf] %vm1073, %v1465
      %1622 = vst.msk [vmem:[%s309 + $0x90] sm:$0xf] %vm1073, %v1467
      %1623 = vst.msk [vmem:[%s309 + $0x94] sm:$0xf] %vm1073, %v1469
      %1624 = vst.msk [vmem:[%s309 + $0x98] sm:$0xf] %vm1073, %v1471
      %1625 = vst.msk [vmem:[%s309 + $0x9c] sm:$0xf] %vm1073, %v1473
      %1626 = vst.msk [vmem:[%s309 + $0xa0] sm:$0xf] %vm1073, %v1475
      %1627 = vst.msk [vmem:[%s309 + $0xa4] sm:$0xf] %vm1073, %v1477
      %1628 = vst.msk [vmem:[%s309 + $0xa8] sm:$0xf] %vm1073, %v1479
      %1629 = vst.msk [vmem:[%s309 + $0xac] sm:$0xf] %vm1073, %v1481
      %1630 = vst.msk [vmem:[%s309 + $0xb0] sm:$0xf] %vm1073, %v1483
      %1631 = vst.msk [vmem:[%s309 + $0xb4] sm:$0xf] %vm1073, %v1485
      %1632 = vst.msk [vmem:[%s309 + $0xb8] sm:$0xf] %vm1073, %v1487
      %1633 = vst.msk [vmem:[%s309 + $0xbc] sm:$0xf] %vm1073, %v1489
      %1634 = vst.msk [vmem:[%s309 + $0xc0] sm:$0xf] %vm1073, %v1491
      %1635 = vst.msk [vmem:[%s309 + $0xc4] sm:$0xf] %vm1073, %v1493
      %1636 = vst.msk [vmem:[%s309 + $0xc8] sm:$0xf] %vm1073, %v1495
      %1637 = vst.msk [vmem:[%s309 + $0xcc] sm:$0xf] %vm1073, %v1497
      %1638 = vst.msk [vmem:[%s309 + $0xd0] sm:$0xf] %vm1073, %v1499
      %1639 = vst.msk [vmem:[%s309 + $0xd4] sm:$0xf] %vm1073, %v1501
      %1640 = vst.msk [vmem:[%s309 + $0xd8] sm:$0xf] %vm1073, %v1503
      %1641 = vst.msk [vmem:[%s309 + $0xdc] sm:$0xf] %vm1073, %v1505
      %1642 = vst.msk [vmem:[%s309 + $0xe0] sm:$0xf] %vm1073, %v1507
      %1643 = vst.msk [vmem:[%s309 + $0xe4] sm:$0xf] %vm1073, %v1509
      %1644 = vst.msk [vmem:[%s309 + $0xe8] sm:$0xf] %vm1073, %v1511
      %1645 = vst.msk [vmem:[%s309 + $0xec] sm:$0xf] %vm1073, %v1513
      %1646 = vst.msk [vmem:[%s309 + $0xf0] sm:$0xf] %vm1073, %v1515
      %1647 = vst.msk [vmem:[%s309 + $0xf4] sm:$0xf] %vm1073, %v1517
      %1648 = vst.msk [vmem:[%s309 + $0xf8] sm:$0xf] %vm1073, %v1519
      %1649 = vst.msk [vmem:[%s309 + $0xfc] sm:$0xf] %vm1073, %v1521
      %1650 = vrot.lane.b32.xlu0 %v945, 120
      %v1651 = vpop.permute.xlu0 %1650
      %1652 = vrot.lane.b32.xlu0 %v946, 120
      %v1653 = vpop.permute.xlu0 %1652
      %1654 = vrot.lane.b32.xlu0 %v947, 120
      %v1655 = vpop.permute.xlu0 %1654
      %1656 = vrot.lane.b32.xlu0 %v948, 120
      %v1657 = vpop.permute.xlu0 %1656
      %1658 = vrot.lane.b32.xlu0 %v949, 120
      %v1659 = vpop.permute.xlu0 %1658
      %1660 = vrot.lane.b32.xlu0 %v950, 120
      %v1661 = vpop.permute.xlu0 %1660
      %1662 = vrot.lane.b32.xlu0 %v951, 120
      %v1663 = vpop.permute.xlu0 %1662
      %1664 = vrot.lane.b32.xlu0 %v952, 120
      %v1665 = vpop.permute.xlu0 %1664
      %1666 = vrot.lane.b32.xlu0 %v953, 120
      %v1667 = vpop.permute.xlu0 %1666
      %1668 = vrot.lane.b32.xlu0 %v954, 120
      %v1669 = vpop.permute.xlu0 %1668
      %1670 = vrot.lane.b32.xlu0 %v955, 120
      %v1671 = vpop.permute.xlu0 %1670
      %1672 = vrot.lane.b32.xlu0 %v956, 120
      %v1673 = vpop.permute.xlu0 %1672
      %1674 = vrot.lane.b32.xlu0 %v957, 120
      %v1675 = vpop.permute.xlu0 %1674
      %1676 = vrot.lane.b32.xlu0 %v958, 120
      %v1677 = vpop.permute.xlu0 %1676
      %1678 = vrot.lane.b32.xlu0 %v959, 120
      %v1679 = vpop.permute.xlu0 %1678
      %1680 = vrot.lane.b32.xlu0 %v960, 120
      %v1681 = vpop.permute.xlu0 %1680
      %1682 = vrot.lane.b32.xlu0 %v961, 120
      %v1683 = vpop.permute.xlu0 %1682
      %1684 = vrot.lane.b32.xlu0 %v962, 120
      %v1685 = vpop.permute.xlu0 %1684
      %1686 = vrot.lane.b32.xlu0 %v963, 120
      %v1687 = vpop.permute.xlu0 %1686
      %1688 = vrot.lane.b32.xlu0 %v964, 120
      %v1689 = vpop.permute.xlu0 %1688
      %1690 = vrot.lane.b32.xlu0 %v965, 120
      %v1691 = vpop.permute.xlu0 %1690
      %1692 = vrot.lane.b32.xlu0 %v966, 120
      %v1693 = vpop.permute.xlu0 %1692
      %1694 = vrot.lane.b32.xlu0 %v967, 120
      %v1695 = vpop.permute.xlu0 %1694
      %1696 = vrot.lane.b32.xlu0 %v968, 120
      %v1697 = vpop.permute.xlu0 %1696
      %1698 = vrot.lane.b32.xlu0 %v969, 120
      %v1699 = vpop.permute.xlu0 %1698
      %1700 = vrot.lane.b32.xlu0 %v970, 120
      %v1701 = vpop.permute.xlu0 %1700
      %1702 = vrot.lane.b32.xlu0 %v971, 120
      %v1703 = vpop.permute.xlu0 %1702
      %1704 = vrot.lane.b32.xlu0 %v972, 120
      %v1705 = vpop.permute.xlu0 %1704
      %1706 = vrot.lane.b32.xlu0 %v973, 120
      %v1707 = vpop.permute.xlu0 %1706
      %1708 = vrot.lane.b32.xlu0 %v974, 120
      %v1709 = vpop.permute.xlu0 %1708
      %1710 = vrot.lane.b32.xlu0 %v975, 120
      %v1711 = vpop.permute.xlu0 %1710
      %1712 = vrot.lane.b32.xlu0 %v976, 120
      %v1713 = vpop.permute.xlu0 %1712
      %1714 = vrot.lane.b32.xlu0 %v977, 120
      %v1715 = vpop.permute.xlu0 %1714
      %1716 = vrot.lane.b32.xlu0 %v978, 120
      %v1717 = vpop.permute.xlu0 %1716
      %1718 = vrot.lane.b32.xlu0 %v979, 120
      %v1719 = vpop.permute.xlu0 %1718
      %1720 = vrot.lane.b32.xlu0 %v980, 120
      %v1721 = vpop.permute.xlu0 %1720
      %1722 = vrot.lane.b32.xlu0 %v981, 120
      %v1723 = vpop.permute.xlu0 %1722
      %1724 = vrot.lane.b32.xlu0 %v982, 120
      %v1725 = vpop.permute.xlu0 %1724
      %1726 = vrot.lane.b32.xlu0 %v983, 120
      %v1727 = vpop.permute.xlu0 %1726
      %1728 = vrot.lane.b32.xlu0 %v984, 120
      %v1729 = vpop.permute.xlu0 %1728
      %1730 = vrot.lane.b32.xlu0 %v985, 120
      %v1731 = vpop.permute.xlu0 %1730
      %1732 = vrot.lane.b32.xlu0 %v986, 120
      %v1733 = vpop.permute.xlu0 %1732
      %1734 = vrot.lane.b32.xlu0 %v987, 120
      %v1735 = vpop.permute.xlu0 %1734
      %1736 = vrot.lane.b32.xlu0 %v988, 120
      %v1737 = vpop.permute.xlu0 %1736
      %1738 = vrot.lane.b32.xlu0 %v989, 120
      %v1739 = vpop.permute.xlu0 %1738
      %1740 = vrot.lane.b32.xlu0 %v990, 120
      %v1741 = vpop.permute.xlu0 %1740
      %1742 = vrot.lane.b32.xlu0 %v991, 120
      %v1743 = vpop.permute.xlu0 %1742
      %1744 = vrot.lane.b32.xlu0 %v992, 120
      %v1745 = vpop.permute.xlu0 %1744
      %1746 = vrot.lane.b32.xlu0 %v993, 120
      %v1747 = vpop.permute.xlu0 %1746
      %1748 = vrot.lane.b32.xlu0 %v994, 120
      %v1749 = vpop.permute.xlu0 %1748
      %1750 = vrot.lane.b32.xlu0 %v995, 120
      %v1751 = vpop.permute.xlu0 %1750
      %1752 = vrot.lane.b32.xlu0 %v996, 120
      %v1753 = vpop.permute.xlu0 %1752
      %1754 = vrot.lane.b32.xlu0 %v997, 120
      %v1755 = vpop.permute.xlu0 %1754
      %1756 = vrot.lane.b32.xlu0 %v998, 120
      %v1757 = vpop.permute.xlu0 %1756
      %1758 = vrot.lane.b32.xlu0 %v999, 120
      %v1759 = vpop.permute.xlu0 %1758
      %1760 = vrot.lane.b32.xlu0 %v1000, 120
      %v1761 = vpop.permute.xlu0 %1760
      %1762 = vrot.lane.b32.xlu0 %v1001, 120
      %v1763 = vpop.permute.xlu0 %1762
      %1764 = vrot.lane.b32.xlu0 %v1002, 120
      %v1765 = vpop.permute.xlu0 %1764
      %1766 = vrot.lane.b32.xlu0 %v1003, 120
      %v1767 = vpop.permute.xlu0 %1766
      %1768 = vrot.lane.b32.xlu0 %v1004, 120
      %v1769 = vpop.permute.xlu0 %1768
      %1770 = vrot.lane.b32.xlu0 %v1005, 120
      %v1771 = vpop.permute.xlu0 %1770
      %1772 = vrot.lane.b32.xlu0 %v1006, 120
      %v1773 = vpop.permute.xlu0 %1772
      %1774 = vrot.lane.b32.xlu0 %v1007, 120
      %v1775 = vpop.permute.xlu0 %1774
      %1776 = vrot.lane.b32.xlu0 %v1008, 120
      %v1777 = vpop.permute.xlu0 %1776
      %s1842 = scalar_lea.vmem %s289, 256
      %1843 = vst.msk [vmem:[%s1842] sm:$0xf] %vm1073, %v1651
      %1844 = vst.msk [vmem:[%s1842 + $0x4] sm:$0xf] %vm1073, %v1653
      %1845 = vst.msk [vmem:[%s1842 + $0x8] sm:$0xf] %vm1073, %v1655
      %1846 = vst.msk [vmem:[%s1842 + $0xc] sm:$0xf] %vm1073, %v1657
      %1847 = vst.msk [vmem:[%s1842 + $0x10] sm:$0xf] %vm1073, %v1659
      %1848 = vst.msk [vmem:[%s1842 + $0x14] sm:$0xf] %vm1073, %v1661
      %1849 = vst.msk [vmem:[%s1842 + $0x18] sm:$0xf] %vm1073, %v1663
      %1850 = vst.msk [vmem:[%s1842 + $0x1c] sm:$0xf] %vm1073, %v1665
      %1851 = vst.msk [vmem:[%s1842 + $0x20] sm:$0xf] %vm1073, %v1667
      %1852 = vst.msk [vmem:[%s1842 + $0x24] sm:$0xf] %vm1073, %v1669
      %1853 = vst.msk [vmem:[%s1842 + $0x28] sm:$0xf] %vm1073, %v1671
      %1854 = vst.msk [vmem:[%s1842 + $0x2c] sm:$0xf] %vm1073, %v1673
      %1855 = vst.msk [vmem:[%s1842 + $0x30] sm:$0xf] %vm1073, %v1675
      %1856 = vst.msk [vmem:[%s1842 + $0x34] sm:$0xf] %vm1073, %v1677
      %1857 = vst.msk [vmem:[%s1842 + $0x38] sm:$0xf] %vm1073, %v1679
      %1858 = vst.msk [vmem:[%s1842 + $0x3c] sm:$0xf] %vm1073, %v1681
      %1859 = vst.msk [vmem:[%s1842 + $0x40] sm:$0xf] %vm1073, %v1683
      %1860 = vst.msk [vmem:[%s1842 + $0x44] sm:$0xf] %vm1073, %v1685
      %1861 = vst.msk [vmem:[%s1842 + $0x48] sm:$0xf] %vm1073, %v1687
      %1862 = vst.msk [vmem:[%s1842 + $0x4c] sm:$0xf] %vm1073, %v1689
      %1863 = vst.msk [vmem:[%s1842 + $0x50] sm:$0xf] %vm1073, %v1691
      %1864 = vst.msk [vmem:[%s1842 + $0x54] sm:$0xf] %vm1073, %v1693
      %1865 = vst.msk [vmem:[%s1842 + $0x58] sm:$0xf] %vm1073, %v1695
      %1866 = vst.msk [vmem:[%s1842 + $0x5c] sm:$0xf] %vm1073, %v1697
      %1867 = vst.msk [vmem:[%s1842 + $0x60] sm:$0xf] %vm1073, %v1699
      %1868 = vst.msk [vmem:[%s1842 + $0x64] sm:$0xf] %vm1073, %v1701
      %1869 = vst.msk [vmem:[%s1842 + $0x68] sm:$0xf] %vm1073, %v1703
      %1870 = vst.msk [vmem:[%s1842 + $0x6c] sm:$0xf] %vm1073, %v1705
      %1871 = vst.msk [vmem:[%s1842 + $0x70] sm:$0xf] %vm1073, %v1707
      %1872 = vst.msk [vmem:[%s1842 + $0x74] sm:$0xf] %vm1073, %v1709
      %1873 = vst.msk [vmem:[%s1842 + $0x78] sm:$0xf] %vm1073, %v1711
      %1874 = vst.msk [vmem:[%s1842 + $0x7c] sm:$0xf] %vm1073, %v1713
      %1875 = vst.msk [vmem:[%s1842 + $0x80] sm:$0xf] %vm1073, %v1715
      %1876 = vst.msk [vmem:[%s1842 + $0x84] sm:$0xf] %vm1073, %v1717
      %1877 = vst.msk [vmem:[%s1842 + $0x88] sm:$0xf] %vm1073, %v1719
      %1878 = vst.msk [vmem:[%s1842 + $0x8c] sm:$0xf] %vm1073, %v1721
      %1879 = vst.msk [vmem:[%s1842 + $0x90] sm:$0xf] %vm1073, %v1723
      %1880 = vst.msk [vmem:[%s1842 + $0x94] sm:$0xf] %vm1073, %v1725
      %1881 = vst.msk [vmem:[%s1842 + $0x98] sm:$0xf] %vm1073, %v1727
      %1882 = vst.msk [vmem:[%s1842 + $0x9c] sm:$0xf] %vm1073, %v1729
      %1883 = vst.msk [vmem:[%s1842 + $0xa0] sm:$0xf] %vm1073, %v1731
      %1884 = vst.msk [vmem:[%s1842 + $0xa4] sm:$0xf] %vm1073, %v1733
      %1885 = vst.msk [vmem:[%s1842 + $0xa8] sm:$0xf] %vm1073, %v1735
      %1886 = vst.msk [vmem:[%s1842 + $0xac] sm:$0xf] %vm1073, %v1737
      %1887 = vst.msk [vmem:[%s1842 + $0xb0] sm:$0xf] %vm1073, %v1739
      %1888 = vst.msk [vmem:[%s1842 + $0xb4] sm:$0xf] %vm1073, %v1741
      %1889 = vst.msk [vmem:[%s1842 + $0xb8] sm:$0xf] %vm1073, %v1743
      %1890 = vst.msk [vmem:[%s1842 + $0xbc] sm:$0xf] %vm1073, %v1745
      %1891 = vst.msk [vmem:[%s1842 + $0xc0] sm:$0xf] %vm1073, %v1747
      %1892 = vst.msk [vmem:[%s1842 + $0xc4] sm:$0xf] %vm1073, %v1749
      %1893 = vst.msk [vmem:[%s1842 + $0xc8] sm:$0xf] %vm1073, %v1751
      %1894 = vst.msk [vmem:[%s1842 + $0xcc] sm:$0xf] %vm1073, %v1753
      %1895 = vst.msk [vmem:[%s1842 + $0xd0] sm:$0xf] %vm1073, %v1755
      %1896 = vst.msk [vmem:[%s1842 + $0xd4] sm:$0xf] %vm1073, %v1757
      %1897 = vst.msk [vmem:[%s1842 + $0xd8] sm:$0xf] %vm1073, %v1759
      %1898 = vst.msk [vmem:[%s1842 + $0xdc] sm:$0xf] %vm1073, %v1761
      %1899 = vst.msk [vmem:[%s1842 + $0xe0] sm:$0xf] %vm1073, %v1763
      %1900 = vst.msk [vmem:[%s1842 + $0xe4] sm:$0xf] %vm1073, %v1765
      %1901 = vst.msk [vmem:[%s1842 + $0xe8] sm:$0xf] %vm1073, %v1767
      %1902 = vst.msk [vmem:[%s1842 + $0xec] sm:$0xf] %vm1073, %v1769
      %1903 = vst.msk [vmem:[%s1842 + $0xf0] sm:$0xf] %vm1073, %v1771
      %1904 = vst.msk [vmem:[%s1842 + $0xf4] sm:$0xf] %vm1073, %v1773
      %1905 = vst.msk [vmem:[%s1842 + $0xf8] sm:$0xf] %vm1073, %v1775
      %1906 = vst.msk [vmem:[%s1842 + $0xfc] sm:$0xf] %vm1073, %v1777
      %1907 = vrot.lane.b32.xlu0 %v945, 88
      %v1908 = vpop.permute.xlu0 %1907
      %1909 = vrot.lane.b32.xlu0 %v946, 88
      %v1910 = vpop.permute.xlu0 %1909
      %1911 = vrot.lane.b32.xlu0 %v947, 88
      %v1912 = vpop.permute.xlu0 %1911
      %1913 = vrot.lane.b32.xlu0 %v948, 88
      %v1914 = vpop.permute.xlu0 %1913
      %1915 = vrot.lane.b32.xlu0 %v949, 88
      %v1916 = vpop.permute.xlu0 %1915
      %1917 = vrot.lane.b32.xlu0 %v950, 88
      %v1918 = vpop.permute.xlu0 %1917
      %1919 = vrot.lane.b32.xlu0 %v951, 88
      %v1920 = vpop.permute.xlu0 %1919
      %1921 = vrot.lane.b32.xlu0 %v952, 88
      %v1922 = vpop.permute.xlu0 %1921
      %1923 = vrot.lane.b32.xlu0 %v953, 88
      %v1924 = vpop.permute.xlu0 %1923
      %1925 = vrot.lane.b32.xlu0 %v954, 88
      %v1926 = vpop.permute.xlu0 %1925
      %1927 = vrot.lane.b32.xlu0 %v955, 88
      %v1928 = vpop.permute.xlu0 %1927
      %1929 = vrot.lane.b32.xlu0 %v956, 88
      %v1930 = vpop.permute.xlu0 %1929
      %1931 = vrot.lane.b32.xlu0 %v957, 88
      %v1932 = vpop.permute.xlu0 %1931
      %1933 = vrot.lane.b32.xlu0 %v958, 88
      %v1934 = vpop.permute.xlu0 %1933
      %1935 = vrot.lane.b32.xlu0 %v959, 88
      %v1936 = vpop.permute.xlu0 %1935
      %1937 = vrot.lane.b32.xlu0 %v960, 88
      %v1938 = vpop.permute.xlu0 %1937
      %1939 = vrot.lane.b32.xlu0 %v961, 88
      %v1940 = vpop.permute.xlu0 %1939
      %1941 = vrot.lane.b32.xlu0 %v962, 88
      %v1942 = vpop.permute.xlu0 %1941
      %1943 = vrot.lane.b32.xlu0 %v963, 88
      %v1944 = vpop.permute.xlu0 %1943
      %1945 = vrot.lane.b32.xlu0 %v964, 88
      %v1946 = vpop.permute.xlu0 %1945
      %1947 = vrot.lane.b32.xlu0 %v965, 88
      %v1948 = vpop.permute.xlu0 %1947
      %1949 = vrot.lane.b32.xlu0 %v966, 88
      %v1950 = vpop.permute.xlu0 %1949
      %1951 = vrot.lane.b32.xlu0 %v967, 88
      %v1952 = vpop.permute.xlu0 %1951
      %1953 = vrot.lane.b32.xlu0 %v968, 88
      %v1954 = vpop.permute.xlu0 %1953
      %1955 = vrot.lane.b32.xlu0 %v969, 88
      %v1956 = vpop.permute.xlu0 %1955
      %1957 = vrot.lane.b32.xlu0 %v970, 88
      %v1958 = vpop.permute.xlu0 %1957
      %1959 = vrot.lane.b32.xlu0 %v971, 88
      %v1960 = vpop.permute.xlu0 %1959
      %1961 = vrot.lane.b32.xlu0 %v972, 88
      %v1962 = vpop.permute.xlu0 %1961
      %1963 = vrot.lane.b32.xlu0 %v973, 88
      %v1964 = vpop.permute.xlu0 %1963
      %1965 = vrot.lane.b32.xlu0 %v974, 88
      %v1966 = vpop.permute.xlu0 %1965
      %1967 = vrot.lane.b32.xlu0 %v975, 88
      %v1968 = vpop.permute.xlu0 %1967
      %1969 = vrot.lane.b32.xlu0 %v976, 88
      %v1970 = vpop.permute.xlu0 %1969
      %1971 = vrot.lane.b32.xlu0 %v977, 88
      %v1972 = vpop.permute.xlu0 %1971
      %1973 = vrot.lane.b32.xlu0 %v978, 88
      %v1974 = vpop.permute.xlu0 %1973
      %1975 = vrot.lane.b32.xlu0 %v979, 88
      %v1976 = vpop.permute.xlu0 %1975
      %1977 = vrot.lane.b32.xlu0 %v980, 88
      %v1978 = vpop.permute.xlu0 %1977
      %1979 = vrot.lane.b32.xlu0 %v981, 88
      %v1980 = vpop.permute.xlu0 %1979
      %1981 = vrot.lane.b32.xlu0 %v982, 88
      %v1982 = vpop.permute.xlu0 %1981
      %1983 = vrot.lane.b32.xlu0 %v983, 88
      %v1984 = vpop.permute.xlu0 %1983
      %1985 = vrot.lane.b32.xlu0 %v984, 88
      %v1986 = vpop.permute.xlu0 %1985
      %1987 = vrot.lane.b32.xlu0 %v985, 88
      %v1988 = vpop.permute.xlu0 %1987
      %1989 = vrot.lane.b32.xlu0 %v986, 88
      %v1990 = vpop.permute.xlu0 %1989
      %1991 = vrot.lane.b32.xlu0 %v987, 88
      %v1992 = vpop.permute.xlu0 %1991
      %1993 = vrot.lane.b32.xlu0 %v988, 88
      %v1994 = vpop.permute.xlu0 %1993
      %1995 = vrot.lane.b32.xlu0 %v989, 88
      %v1996 = vpop.permute.xlu0 %1995
      %1997 = vrot.lane.b32.xlu0 %v990, 88
      %v1998 = vpop.permute.xlu0 %1997
      %1999 = vrot.lane.b32.xlu0 %v991, 88
      %v2000 = vpop.permute.xlu0 %1999
      %2001 = vrot.lane.b32.xlu0 %v992, 88
      %v2002 = vpop.permute.xlu0 %2001
      %2003 = vrot.lane.b32.xlu0 %v993, 88
      %v2004 = vpop.permute.xlu0 %2003
      %2005 = vrot.lane.b32.xlu0 %v994, 88
      %v2006 = vpop.permute.xlu0 %2005
      %2007 = vrot.lane.b32.xlu0 %v995, 88
      %v2008 = vpop.permute.xlu0 %2007
      %2009 = vrot.lane.b32.xlu0 %v996, 88
      %v2010 = vpop.permute.xlu0 %2009
      %2011 = vrot.lane.b32.xlu0 %v997, 88
      %v2012 = vpop.permute.xlu0 %2011
      %2013 = vrot.lane.b32.xlu0 %v998, 88
      %v2014 = vpop.permute.xlu0 %2013
      %2015 = vrot.lane.b32.xlu0 %v999, 88
      %v2016 = vpop.permute.xlu0 %2015
      %2017 = vrot.lane.b32.xlu0 %v1000, 88
      %v2018 = vpop.permute.xlu0 %2017
      %2019 = vrot.lane.b32.xlu0 %v1001, 88
      %v2020 = vpop.permute.xlu0 %2019
      %2021 = vrot.lane.b32.xlu0 %v1002, 88
      %v2022 = vpop.permute.xlu0 %2021
      %2023 = vrot.lane.b32.xlu0 %v1003, 88
      %v2024 = vpop.permute.xlu0 %2023
      %2025 = vrot.lane.b32.xlu0 %v1004, 88
      %v2026 = vpop.permute.xlu0 %2025
      %2027 = vrot.lane.b32.xlu0 %v1005, 88
      %v2028 = vpop.permute.xlu0 %2027
      %2029 = vrot.lane.b32.xlu0 %v1006, 88
      %v2030 = vpop.permute.xlu0 %2029
      %2031 = vrot.lane.b32.xlu0 %v1007, 88
      %v2032 = vpop.permute.xlu0 %2031
      %2033 = vrot.lane.b32.xlu0 %v1008, 88
      %v2034 = vpop.permute.xlu0 %2033
      %s2099 = scalar_lea.vmem %s299, 256
      %2100 = vst.msk [vmem:[%s2099] sm:$0xf] %vm1073, %v1908
      %2101 = vst.msk [vmem:[%s2099 + $0x4] sm:$0xf] %vm1073, %v1910
      %2102 = vst.msk [vmem:[%s2099 + $0x8] sm:$0xf] %vm1073, %v1912
      %2103 = vst.msk [vmem:[%s2099 + $0xc] sm:$0xf] %vm1073, %v1914
      %2104 = vst.msk [vmem:[%s2099 + $0x10] sm:$0xf] %vm1073, %v1916
      %2105 = vst.msk [vmem:[%s2099 + $0x14] sm:$0xf] %vm1073, %v1918
      %2106 = vst.msk [vmem:[%s2099 + $0x18] sm:$0xf] %vm1073, %v1920
      %2107 = vst.msk [vmem:[%s2099 + $0x1c] sm:$0xf] %vm1073, %v1922
      %2108 = vst.msk [vmem:[%s2099 + $0x20] sm:$0xf] %vm1073, %v1924
      %2109 = vst.msk [vmem:[%s2099 + $0x24] sm:$0xf] %vm1073, %v1926
      %2110 = vst.msk [vmem:[%s2099 + $0x28] sm:$0xf] %vm1073, %v1928
      %2111 = vst.msk [vmem:[%s2099 + $0x2c] sm:$0xf] %vm1073, %v1930
      %2112 = vst.msk [vmem:[%s2099 + $0x30] sm:$0xf] %vm1073, %v1932
      %2113 = vst.msk [vmem:[%s2099 + $0x34] sm:$0xf] %vm1073, %v1934
      %2114 = vst.msk [vmem:[%s2099 + $0x38] sm:$0xf] %vm1073, %v1936
      %2115 = vst.msk [vmem:[%s2099 + $0x3c] sm:$0xf] %vm1073, %v1938
      %2116 = vst.msk [vmem:[%s2099 + $0x40] sm:$0xf] %vm1073, %v1940
      %2117 = vst.msk [vmem:[%s2099 + $0x44] sm:$0xf] %vm1073, %v1942
      %2118 = vst.msk [vmem:[%s2099 + $0x48] sm:$0xf] %vm1073, %v1944
      %2119 = vst.msk [vmem:[%s2099 + $0x4c] sm:$0xf] %vm1073, %v1946
      %2120 = vst.msk [vmem:[%s2099 + $0x50] sm:$0xf] %vm1073, %v1948
      %2121 = vst.msk [vmem:[%s2099 + $0x54] sm:$0xf] %vm1073, %v1950
      %2122 = vst.msk [vmem:[%s2099 + $0x58] sm:$0xf] %vm1073, %v1952
      %2123 = vst.msk [vmem:[%s2099 + $0x5c] sm:$0xf] %vm1073, %v1954
      %2124 = vst.msk [vmem:[%s2099 + $0x60] sm:$0xf] %vm1073, %v1956
      %2125 = vst.msk [vmem:[%s2099 + $0x64] sm:$0xf] %vm1073, %v1958
      %2126 = vst.msk [vmem:[%s2099 + $0x68] sm:$0xf] %vm1073, %v1960
      %2127 = vst.msk [vmem:[%s2099 + $0x6c] sm:$0xf] %vm1073, %v1962
      %2128 = vst.msk [vmem:[%s2099 + $0x70] sm:$0xf] %vm1073, %v1964
      %2129 = vst.msk [vmem:[%s2099 + $0x74] sm:$0xf] %vm1073, %v1966
      %2130 = vst.msk [vmem:[%s2099 + $0x78] sm:$0xf] %vm1073, %v1968
      %2131 = vst.msk [vmem:[%s2099 + $0x7c] sm:$0xf] %vm1073, %v1970
      %2132 = vst.msk [vmem:[%s2099 + $0x80] sm:$0xf] %vm1073, %v1972
      %2133 = vst.msk [vmem:[%s2099 + $0x84] sm:$0xf] %vm1073, %v1974
      %2134 = vst.msk [vmem:[%s2099 + $0x88] sm:$0xf] %vm1073, %v1976
      %2135 = vst.msk [vmem:[%s2099 + $0x8c] sm:$0xf] %vm1073, %v1978
      %2136 = vst.msk [vmem:[%s2099 + $0x90] sm:$0xf] %vm1073, %v1980
      %2137 = vst.msk [vmem:[%s2099 + $0x94] sm:$0xf] %vm1073, %v1982
      %2138 = vst.msk [vmem:[%s2099 + $0x98] sm:$0xf] %vm1073, %v1984
      %2139 = vst.msk [vmem:[%s2099 + $0x9c] sm:$0xf] %vm1073, %v1986
      %2140 = vst.msk [vmem:[%s2099 + $0xa0] sm:$0xf] %vm1073, %v1988
      %2141 = vst.msk [vmem:[%s2099 + $0xa4] sm:$0xf] %vm1073, %v1990
      %2142 = vst.msk [vmem:[%s2099 + $0xa8] sm:$0xf] %vm1073, %v1992
      %2143 = vst.msk [vmem:[%s2099 + $0xac] sm:$0xf] %vm1073, %v1994
      %2144 = vst.msk [vmem:[%s2099 + $0xb0] sm:$0xf] %vm1073, %v1996
      %2145 = vst.msk [vmem:[%s2099 + $0xb4] sm:$0xf] %vm1073, %v1998
      %2146 = vst.msk [vmem:[%s2099 + $0xb8] sm:$0xf] %vm1073, %v2000
      %2147 = vst.msk [vmem:[%s2099 + $0xbc] sm:$0xf] %vm1073, %v2002
      %2148 = vst.msk [vmem:[%s2099 + $0xc0] sm:$0xf] %vm1073, %v2004
      %2149 = vst.msk [vmem:[%s2099 + $0xc4] sm:$0xf] %vm1073, %v2006
      %2150 = vst.msk [vmem:[%s2099 + $0xc8] sm:$0xf] %vm1073, %v2008
      %2151 = vst.msk [vmem:[%s2099 + $0xcc] sm:$0xf] %vm1073, %v2010
      %2152 = vst.msk [vmem:[%s2099 + $0xd0] sm:$0xf] %vm1073, %v2012
      %2153 = vst.msk [vmem:[%s2099 + $0xd4] sm:$0xf] %vm1073, %v2014
      %2154 = vst.msk [vmem:[%s2099 + $0xd8] sm:$0xf] %vm1073, %v2016
      %2155 = vst.msk [vmem:[%s2099 + $0xdc] sm:$0xf] %vm1073, %v2018
      %2156 = vst.msk [vmem:[%s2099 + $0xe0] sm:$0xf] %vm1073, %v2020
      %2157 = vst.msk [vmem:[%s2099 + $0xe4] sm:$0xf] %vm1073, %v2022
      %2158 = vst.msk [vmem:[%s2099 + $0xe8] sm:$0xf] %vm1073, %v2024
      %2159 = vst.msk [vmem:[%s2099 + $0xec] sm:$0xf] %vm1073, %v2026
      %2160 = vst.msk [vmem:[%s2099 + $0xf0] sm:$0xf] %vm1073, %v2028
      %2161 = vst.msk [vmem:[%s2099 + $0xf4] sm:$0xf] %vm1073, %v2030
      %2162 = vst.msk [vmem:[%s2099 + $0xf8] sm:$0xf] %vm1073, %v2032
      %2163 = vst.msk [vmem:[%s2099 + $0xfc] sm:$0xf] %vm1073, %v2034
      %2164 = vrot.lane.b32.xlu0 %v945, 56
      %v2165 = vpop.permute.xlu0 %2164
      %2166 = vrot.lane.b32.xlu0 %v946, 56
      %v2167 = vpop.permute.xlu0 %2166
      %2168 = vrot.lane.b32.xlu0 %v947, 56
      %v2169 = vpop.permute.xlu0 %2168
      %2170 = vrot.lane.b32.xlu0 %v948, 56
      %v2171 = vpop.permute.xlu0 %2170
      %2172 = vrot.lane.b32.xlu0 %v949, 56
      %v2173 = vpop.permute.xlu0 %2172
      %2174 = vrot.lane.b32.xlu0 %v950, 56
      %v2175 = vpop.permute.xlu0 %2174
      %2176 = vrot.lane.b32.xlu0 %v951, 56
      %v2177 = vpop.permute.xlu0 %2176
      %2178 = vrot.lane.b32.xlu0 %v952, 56
      %v2179 = vpop.permute.xlu0 %2178
      %2180 = vrot.lane.b32.xlu0 %v953, 56
      %v2181 = vpop.permute.xlu0 %2180
      %2182 = vrot.lane.b32.xlu0 %v954, 56
      %v2183 = vpop.permute.xlu0 %2182
      %2184 = vrot.lane.b32.xlu0 %v955, 56
      %v2185 = vpop.permute.xlu0 %2184
      %2186 = vrot.lane.b32.xlu0 %v956, 56
      %v2187 = vpop.permute.xlu0 %2186
      %2188 = vrot.lane.b32.xlu0 %v957, 56
      %v2189 = vpop.permute.xlu0 %2188
      %2190 = vrot.lane.b32.xlu0 %v958, 56
      %v2191 = vpop.permute.xlu0 %2190
      %2192 = vrot.lane.b32.xlu0 %v959, 56
      %v2193 = vpop.permute.xlu0 %2192
      %2194 = vrot.lane.b32.xlu0 %v960, 56
      %v2195 = vpop.permute.xlu0 %2194
      %2196 = vrot.lane.b32.xlu0 %v961, 56
      %v2197 = vpop.permute.xlu0 %2196
      %2198 = vrot.lane.b32.xlu0 %v962, 56
      %v2199 = vpop.permute.xlu0 %2198
      %2200 = vrot.lane.b32.xlu0 %v963, 56
      %v2201 = vpop.permute.xlu0 %2200
      %2202 = vrot.lane.b32.xlu0 %v964, 56
      %v2203 = vpop.permute.xlu0 %2202
      %2204 = vrot.lane.b32.xlu0 %v965, 56
      %v2205 = vpop.permute.xlu0 %2204
      %2206 = vrot.lane.b32.xlu0 %v966, 56
      %v2207 = vpop.permute.xlu0 %2206
      %2208 = vrot.lane.b32.xlu0 %v967, 56
      %v2209 = vpop.permute.xlu0 %2208
      %2210 = vrot.lane.b32.xlu0 %v968, 56
      %v2211 = vpop.permute.xlu0 %2210
      %2212 = vrot.lane.b32.xlu0 %v969, 56
      %v2213 = vpop.permute.xlu0 %2212
      %2214 = vrot.lane.b32.xlu0 %v970, 56
      %v2215 = vpop.permute.xlu0 %2214
      %2216 = vrot.lane.b32.xlu0 %v971, 56
      %v2217 = vpop.permute.xlu0 %2216
      %2218 = vrot.lane.b32.xlu0 %v972, 56
      %v2219 = vpop.permute.xlu0 %2218
      %2220 = vrot.lane.b32.xlu0 %v973, 56
      %v2221 = vpop.permute.xlu0 %2220
      %2222 = vrot.lane.b32.xlu0 %v974, 56
      %v2223 = vpop.permute.xlu0 %2222
      %2224 = vrot.lane.b32.xlu0 %v975, 56
      %v2225 = vpop.permute.xlu0 %2224
      %2226 = vrot.lane.b32.xlu0 %v976, 56
      %v2227 = vpop.permute.xlu0 %2226
      %2228 = vrot.lane.b32.xlu0 %v977, 56
      %v2229 = vpop.permute.xlu0 %2228
      %2230 = vrot.lane.b32.xlu0 %v978, 56
      %v2231 = vpop.permute.xlu0 %2230
      %2232 = vrot.lane.b32.xlu0 %v979, 56
      %v2233 = vpop.permute.xlu0 %2232
      %2234 = vrot.lane.b32.xlu0 %v980, 56
      %v2235 = vpop.permute.xlu0 %2234
      %2236 = vrot.lane.b32.xlu0 %v981, 56
      %v2237 = vpop.permute.xlu0 %2236
      %2238 = vrot.lane.b32.xlu0 %v982, 56
      %v2239 = vpop.permute.xlu0 %2238
      %2240 = vrot.lane.b32.xlu0 %v983, 56
      %v2241 = vpop.permute.xlu0 %2240
      %2242 = vrot.lane.b32.xlu0 %v984, 56
      %v2243 = vpop.permute.xlu0 %2242
      %2244 = vrot.lane.b32.xlu0 %v985, 56
      %v2245 = vpop.permute.xlu0 %2244
      %2246 = vrot.lane.b32.xlu0 %v986, 56
      %v2247 = vpop.permute.xlu0 %2246
      %2248 = vrot.lane.b32.xlu0 %v987, 56
      %v2249 = vpop.permute.xlu0 %2248
      %2250 = vrot.lane.b32.xlu0 %v988, 56
      %v2251 = vpop.permute.xlu0 %2250
      %2252 = vrot.lane.b32.xlu0 %v989, 56
      %v2253 = vpop.permute.xlu0 %2252
      %2254 = vrot.lane.b32.xlu0 %v990, 56
      %v2255 = vpop.permute.xlu0 %2254
      %2256 = vrot.lane.b32.xlu0 %v991, 56
      %v2257 = vpop.permute.xlu0 %2256
      %2258 = vrot.lane.b32.xlu0 %v992, 56
      %v2259 = vpop.permute.xlu0 %2258
      %2260 = vrot.lane.b32.xlu0 %v993, 56
      %v2261 = vpop.permute.xlu0 %2260
      %2262 = vrot.lane.b32.xlu0 %v994, 56
      %v2263 = vpop.permute.xlu0 %2262
      %2264 = vrot.lane.b32.xlu0 %v995, 56
      %v2265 = vpop.permute.xlu0 %2264
      %2266 = vrot.lane.b32.xlu0 %v996, 56
      %v2267 = vpop.permute.xlu0 %2266
      %2268 = vrot.lane.b32.xlu0 %v997, 56
      %v2269 = vpop.permute.xlu0 %2268
      %2270 = vrot.lane.b32.xlu0 %v998, 56
      %v2271 = vpop.permute.xlu0 %2270
      %2272 = vrot.lane.b32.xlu0 %v999, 56
      %v2273 = vpop.permute.xlu0 %2272
      %2274 = vrot.lane.b32.xlu0 %v1000, 56
      %v2275 = vpop.permute.xlu0 %2274
      %2276 = vrot.lane.b32.xlu0 %v1001, 56
      %v2277 = vpop.permute.xlu0 %2276
      %2278 = vrot.lane.b32.xlu0 %v1002, 56
      %v2279 = vpop.permute.xlu0 %2278
      %2280 = vrot.lane.b32.xlu0 %v1003, 56
      %v2281 = vpop.permute.xlu0 %2280
      %2282 = vrot.lane.b32.xlu0 %v1004, 56
      %v2283 = vpop.permute.xlu0 %2282
      %2284 = vrot.lane.b32.xlu0 %v1005, 56
      %v2285 = vpop.permute.xlu0 %2284
      %2286 = vrot.lane.b32.xlu0 %v1006, 56
      %v2287 = vpop.permute.xlu0 %2286
      %2288 = vrot.lane.b32.xlu0 %v1007, 56
      %v2289 = vpop.permute.xlu0 %2288
      %2290 = vrot.lane.b32.xlu0 %v1008, 56
      %v2291 = vpop.permute.xlu0 %2290
      %s2356 = scalar_lea.vmem %s309, 256
      %2357 = vst.msk [vmem:[%s2356] sm:$0xf] %vm1073, %v2165
      %2358 = vst.msk [vmem:[%s2356 + $0x4] sm:$0xf] %vm1073, %v2167
      %2359 = vst.msk [vmem:[%s2356 + $0x8] sm:$0xf] %vm1073, %v2169
      %2360 = vst.msk [vmem:[%s2356 + $0xc] sm:$0xf] %vm1073, %v2171
      %2361 = vst.msk [vmem:[%s2356 + $0x10] sm:$0xf] %vm1073, %v2173
      %2362 = vst.msk [vmem:[%s2356 + $0x14] sm:$0xf] %vm1073, %v2175
      %2363 = vst.msk [vmem:[%s2356 + $0x18] sm:$0xf] %vm1073, %v2177
      %2364 = vst.msk [vmem:[%s2356 + $0x1c] sm:$0xf] %vm1073, %v2179
      %2365 = vst.msk [vmem:[%s2356 + $0x20] sm:$0xf] %vm1073, %v2181
      %2366 = vst.msk [vmem:[%s2356 + $0x24] sm:$0xf] %vm1073, %v2183
      %2367 = vst.msk [vmem:[%s2356 + $0x28] sm:$0xf] %vm1073, %v2185
      %2368 = vst.msk [vmem:[%s2356 + $0x2c] sm:$0xf] %vm1073, %v2187
      %2369 = vst.msk [vmem:[%s2356 + $0x30] sm:$0xf] %vm1073, %v2189
      %2370 = vst.msk [vmem:[%s2356 + $0x34] sm:$0xf] %vm1073, %v2191
      %2371 = vst.msk [vmem:[%s2356 + $0x38] sm:$0xf] %vm1073, %v2193
      %2372 = vst.msk [vmem:[%s2356 + $0x3c] sm:$0xf] %vm1073, %v2195
      %2373 = vst.msk [vmem:[%s2356 + $0x40] sm:$0xf] %vm1073, %v2197
      %2374 = vst.msk [vmem:[%s2356 + $0x44] sm:$0xf] %vm1073, %v2199
      %2375 = vst.msk [vmem:[%s2356 + $0x48] sm:$0xf] %vm1073, %v2201
      %2376 = vst.msk [vmem:[%s2356 + $0x4c] sm:$0xf] %vm1073, %v2203
      %2377 = vst.msk [vmem:[%s2356 + $0x50] sm:$0xf] %vm1073, %v2205
      %2378 = vst.msk [vmem:[%s2356 + $0x54] sm:$0xf] %vm1073, %v2207
      %2379 = vst.msk [vmem:[%s2356 + $0x58] sm:$0xf] %vm1073, %v2209
      %2380 = vst.msk [vmem:[%s2356 + $0x5c] sm:$0xf] %vm1073, %v2211
      %2381 = vst.msk [vmem:[%s2356 + $0x60] sm:$0xf] %vm1073, %v2213
      %2382 = vst.msk [vmem:[%s2356 + $0x64] sm:$0xf] %vm1073, %v2215
      %2383 = vst.msk [vmem:[%s2356 + $0x68] sm:$0xf] %vm1073, %v2217
      %2384 = vst.msk [vmem:[%s2356 + $0x6c] sm:$0xf] %vm1073, %v2219
      %2385 = vst.msk [vmem:[%s2356 + $0x70] sm:$0xf] %vm1073, %v2221
      %2386 = vst.msk [vmem:[%s2356 + $0x74] sm:$0xf] %vm1073, %v2223
      %2387 = vst.msk [vmem:[%s2356 + $0x78] sm:$0xf] %vm1073, %v2225
      %2388 = vst.msk [vmem:[%s2356 + $0x7c] sm:$0xf] %vm1073, %v2227
      %2389 = vst.msk [vmem:[%s2356 + $0x80] sm:$0xf] %vm1073, %v2229
      %2390 = vst.msk [vmem:[%s2356 + $0x84] sm:$0xf] %vm1073, %v2231
      %2391 = vst.msk [vmem:[%s2356 + $0x88] sm:$0xf] %vm1073, %v2233
      %2392 = vst.msk [vmem:[%s2356 + $0x8c] sm:$0xf] %vm1073, %v2235
      %2393 = vst.msk [vmem:[%s2356 + $0x90] sm:$0xf] %vm1073, %v2237
      %2394 = vst.msk [vmem:[%s2356 + $0x94] sm:$0xf] %vm1073, %v2239
      %2395 = vst.msk [vmem:[%s2356 + $0x98] sm:$0xf] %vm1073, %v2241
      %2396 = vst.msk [vmem:[%s2356 + $0x9c] sm:$0xf] %vm1073, %v2243
      %2397 = vst.msk [vmem:[%s2356 + $0xa0] sm:$0xf] %vm1073, %v2245
      %2398 = vst.msk [vmem:[%s2356 + $0xa4] sm:$0xf] %vm1073, %v2247
      %2399 = vst.msk [vmem:[%s2356 + $0xa8] sm:$0xf] %vm1073, %v2249
      %2400 = vst.msk [vmem:[%s2356 + $0xac] sm:$0xf] %vm1073, %v2251
      %2401 = vst.msk [vmem:[%s2356 + $0xb0] sm:$0xf] %vm1073, %v2253
      %2402 = vst.msk [vmem:[%s2356 + $0xb4] sm:$0xf] %vm1073, %v2255
      %2403 = vst.msk [vmem:[%s2356 + $0xb8] sm:$0xf] %vm1073, %v2257
      %2404 = vst.msk [vmem:[%s2356 + $0xbc] sm:$0xf] %vm1073, %v2259
      %2405 = vst.msk [vmem:[%s2356 + $0xc0] sm:$0xf] %vm1073, %v2261
      %2406 = vst.msk [vmem:[%s2356 + $0xc4] sm:$0xf] %vm1073, %v2263
      %2407 = vst.msk [vmem:[%s2356 + $0xc8] sm:$0xf] %vm1073, %v2265
      %2408 = vst.msk [vmem:[%s2356 + $0xcc] sm:$0xf] %vm1073, %v2267
      %2409 = vst.msk [vmem:[%s2356 + $0xd0] sm:$0xf] %vm1073, %v2269
      %2410 = vst.msk [vmem:[%s2356 + $0xd4] sm:$0xf] %vm1073, %v2271
      %2411 = vst.msk [vmem:[%s2356 + $0xd8] sm:$0xf] %vm1073, %v2273
      %2412 = vst.msk [vmem:[%s2356 + $0xdc] sm:$0xf] %vm1073, %v2275
      %2413 = vst.msk [vmem:[%s2356 + $0xe0] sm:$0xf] %vm1073, %v2277
      %2414 = vst.msk [vmem:[%s2356 + $0xe4] sm:$0xf] %vm1073, %v2279
      %2415 = vst.msk [vmem:[%s2356 + $0xe8] sm:$0xf] %vm1073, %v2281
      %2416 = vst.msk [vmem:[%s2356 + $0xec] sm:$0xf] %vm1073, %v2283
      %2417 = vst.msk [vmem:[%s2356 + $0xf0] sm:$0xf] %vm1073, %v2285
      %2418 = vst.msk [vmem:[%s2356 + $0xf4] sm:$0xf] %vm1073, %v2287
      %2419 = vst.msk [vmem:[%s2356 + $0xf8] sm:$0xf] %vm1073, %v2289
      %2420 = vst.msk [vmem:[%s2356 + $0xfc] sm:$0xf] %vm1073, %v2291
      %2421 = vrot.lane.b32.xlu0 %v945, 112
      %v2422 = vpop.permute.xlu0 %2421
      %2423 = vrot.lane.b32.xlu0 %v946, 112
      %v2424 = vpop.permute.xlu0 %2423
      %2425 = vrot.lane.b32.xlu0 %v947, 112
      %v2426 = vpop.permute.xlu0 %2425
      %2427 = vrot.lane.b32.xlu0 %v948, 112
      %v2428 = vpop.permute.xlu0 %2427
      %2429 = vrot.lane.b32.xlu0 %v949, 112
      %v2430 = vpop.permute.xlu0 %2429
      %2431 = vrot.lane.b32.xlu0 %v950, 112
      %v2432 = vpop.permute.xlu0 %2431
      %2433 = vrot.lane.b32.xlu0 %v951, 112
      %v2434 = vpop.permute.xlu0 %2433
      %2435 = vrot.lane.b32.xlu0 %v952, 112
      %v2436 = vpop.permute.xlu0 %2435
      %2437 = vrot.lane.b32.xlu0 %v953, 112
      %v2438 = vpop.permute.xlu0 %2437
      %2439 = vrot.lane.b32.xlu0 %v954, 112
      %v2440 = vpop.permute.xlu0 %2439
      %2441 = vrot.lane.b32.xlu0 %v955, 112
      %v2442 = vpop.permute.xlu0 %2441
      %2443 = vrot.lane.b32.xlu0 %v956, 112
      %v2444 = vpop.permute.xlu0 %2443
      %2445 = vrot.lane.b32.xlu0 %v957, 112
      %v2446 = vpop.permute.xlu0 %2445
      %2447 = vrot.lane.b32.xlu0 %v958, 112
      %v2448 = vpop.permute.xlu0 %2447
      %2449 = vrot.lane.b32.xlu0 %v959, 112
      %v2450 = vpop.permute.xlu0 %2449
      %2451 = vrot.lane.b32.xlu0 %v960, 112
      %v2452 = vpop.permute.xlu0 %2451
      %2453 = vrot.lane.b32.xlu0 %v961, 112
      %v2454 = vpop.permute.xlu0 %2453
      %2455 = vrot.lane.b32.xlu0 %v962, 112
      %v2456 = vpop.permute.xlu0 %2455
      %2457 = vrot.lane.b32.xlu0 %v963, 112
      %v2458 = vpop.permute.xlu0 %2457
      %2459 = vrot.lane.b32.xlu0 %v964, 112
      %v2460 = vpop.permute.xlu0 %2459
      %2461 = vrot.lane.b32.xlu0 %v965, 112
      %v2462 = vpop.permute.xlu0 %2461
      %2463 = vrot.lane.b32.xlu0 %v966, 112
      %v2464 = vpop.permute.xlu0 %2463
      %2465 = vrot.lane.b32.xlu0 %v967, 112
      %v2466 = vpop.permute.xlu0 %2465
      %2467 = vrot.lane.b32.xlu0 %v968, 112
      %v2468 = vpop.permute.xlu0 %2467
      %2469 = vrot.lane.b32.xlu0 %v969, 112
      %v2470 = vpop.permute.xlu0 %2469
      %2471 = vrot.lane.b32.xlu0 %v970, 112
      %v2472 = vpop.permute.xlu0 %2471
      %2473 = vrot.lane.b32.xlu0 %v971, 112
      %v2474 = vpop.permute.xlu0 %2473
      %2475 = vrot.lane.b32.xlu0 %v972, 112
      %v2476 = vpop.permute.xlu0 %2475
      %2477 = vrot.lane.b32.xlu0 %v973, 112
      %v2478 = vpop.permute.xlu0 %2477
      %2479 = vrot.lane.b32.xlu0 %v974, 112
      %v2480 = vpop.permute.xlu0 %2479
      %2481 = vrot.lane.b32.xlu0 %v975, 112
      %v2482 = vpop.permute.xlu0 %2481
      %2483 = vrot.lane.b32.xlu0 %v976, 112
      %v2484 = vpop.permute.xlu0 %2483
      %2485 = vrot.lane.b32.xlu0 %v977, 112
      %v2486 = vpop.permute.xlu0 %2485
      %2487 = vrot.lane.b32.xlu0 %v978, 112
      %v2488 = vpop.permute.xlu0 %2487
      %2489 = vrot.lane.b32.xlu0 %v979, 112
      %v2490 = vpop.permute.xlu0 %2489
      %2491 = vrot.lane.b32.xlu0 %v980, 112
      %v2492 = vpop.permute.xlu0 %2491
      %2493 = vrot.lane.b32.xlu0 %v981, 112
      %v2494 = vpop.permute.xlu0 %2493
      %2495 = vrot.lane.b32.xlu0 %v982, 112
      %v2496 = vpop.permute.xlu0 %2495
      %2497 = vrot.lane.b32.xlu0 %v983, 112
      %v2498 = vpop.permute.xlu0 %2497
      %2499 = vrot.lane.b32.xlu0 %v984, 112
      %v2500 = vpop.permute.xlu0 %2499
      %2501 = vrot.lane.b32.xlu0 %v985, 112
      %v2502 = vpop.permute.xlu0 %2501
      %2503 = vrot.lane.b32.xlu0 %v986, 112
      %v2504 = vpop.permute.xlu0 %2503
      %2505 = vrot.lane.b32.xlu0 %v987, 112
      %v2506 = vpop.permute.xlu0 %2505
      %2507 = vrot.lane.b32.xlu0 %v988, 112
      %v2508 = vpop.permute.xlu0 %2507
      %2509 = vrot.lane.b32.xlu0 %v989, 112
      %v2510 = vpop.permute.xlu0 %2509
      %2511 = vrot.lane.b32.xlu0 %v990, 112
      %v2512 = vpop.permute.xlu0 %2511
      %2513 = vrot.lane.b32.xlu0 %v991, 112
      %v2514 = vpop.permute.xlu0 %2513
      %2515 = vrot.lane.b32.xlu0 %v992, 112
      %v2516 = vpop.permute.xlu0 %2515
      %2517 = vrot.lane.b32.xlu0 %v993, 112
      %v2518 = vpop.permute.xlu0 %2517
      %2519 = vrot.lane.b32.xlu0 %v994, 112
      %v2520 = vpop.permute.xlu0 %2519
      %2521 = vrot.lane.b32.xlu0 %v995, 112
      %v2522 = vpop.permute.xlu0 %2521
      %2523 = vrot.lane.b32.xlu0 %v996, 112
      %v2524 = vpop.permute.xlu0 %2523
      %2525 = vrot.lane.b32.xlu0 %v997, 112
      %v2526 = vpop.permute.xlu0 %2525
      %2527 = vrot.lane.b32.xlu0 %v998, 112
      %v2528 = vpop.permute.xlu0 %2527
      %2529 = vrot.lane.b32.xlu0 %v999, 112
      %v2530 = vpop.permute.xlu0 %2529
      %2531 = vrot.lane.b32.xlu0 %v1000, 112
      %v2532 = vpop.permute.xlu0 %2531
      %2533 = vrot.lane.b32.xlu0 %v1001, 112
      %v2534 = vpop.permute.xlu0 %2533
      %2535 = vrot.lane.b32.xlu0 %v1002, 112
      %v2536 = vpop.permute.xlu0 %2535
      %2537 = vrot.lane.b32.xlu0 %v1003, 112
      %v2538 = vpop.permute.xlu0 %2537
      %2539 = vrot.lane.b32.xlu0 %v1004, 112
      %v2540 = vpop.permute.xlu0 %2539
      %2541 = vrot.lane.b32.xlu0 %v1005, 112
      %v2542 = vpop.permute.xlu0 %2541
      %2543 = vrot.lane.b32.xlu0 %v1006, 112
      %v2544 = vpop.permute.xlu0 %2543
      %2545 = vrot.lane.b32.xlu0 %v1007, 112
      %v2546 = vpop.permute.xlu0 %2545
      %2547 = vrot.lane.b32.xlu0 %v1008, 112
      %v2548 = vpop.permute.xlu0 %2547
      %s2613 = scalar_lea.vmem %s289, 512
      %2614 = vst.msk [vmem:[%s2613] sm:$0xf] %vm1073, %v2422
      %2615 = vst.msk [vmem:[%s2613 + $0x4] sm:$0xf] %vm1073, %v2424
      %2616 = vst.msk [vmem:[%s2613 + $0x8] sm:$0xf] %vm1073, %v2426
      %2617 = vst.msk [vmem:[%s2613 + $0xc] sm:$0xf] %vm1073, %v2428
      %2618 = vst.msk [vmem:[%s2613 + $0x10] sm:$0xf] %vm1073, %v2430
      %2619 = vst.msk [vmem:[%s2613 + $0x14] sm:$0xf] %vm1073, %v2432
      %2620 = vst.msk [vmem:[%s2613 + $0x18] sm:$0xf] %vm1073, %v2434
      %2621 = vst.msk [vmem:[%s2613 + $0x1c] sm:$0xf] %vm1073, %v2436
      %2622 = vst.msk [vmem:[%s2613 + $0x20] sm:$0xf] %vm1073, %v2438
      %2623 = vst.msk [vmem:[%s2613 + $0x24] sm:$0xf] %vm1073, %v2440
      %2624 = vst.msk [vmem:[%s2613 + $0x28] sm:$0xf] %vm1073, %v2442
      %2625 = vst.msk [vmem:[%s2613 + $0x2c] sm:$0xf] %vm1073, %v2444
      %2626 = vst.msk [vmem:[%s2613 + $0x30] sm:$0xf] %vm1073, %v2446
      %2627 = vst.msk [vmem:[%s2613 + $0x34] sm:$0xf] %vm1073, %v2448
      %2628 = vst.msk [vmem:[%s2613 + $0x38] sm:$0xf] %vm1073, %v2450
      %2629 = vst.msk [vmem:[%s2613 + $0x3c] sm:$0xf] %vm1073, %v2452
      %2630 = vst.msk [vmem:[%s2613 + $0x40] sm:$0xf] %vm1073, %v2454
      %2631 = vst.msk [vmem:[%s2613 + $0x44] sm:$0xf] %vm1073, %v2456
      %2632 = vst.msk [vmem:[%s2613 + $0x48] sm:$0xf] %vm1073, %v2458
      %2633 = vst.msk [vmem:[%s2613 + $0x4c] sm:$0xf] %vm1073, %v2460
      %2634 = vst.msk [vmem:[%s2613 + $0x50] sm:$0xf] %vm1073, %v2462
      %2635 = vst.msk [vmem:[%s2613 + $0x54] sm:$0xf] %vm1073, %v2464
      %2636 = vst.msk [vmem:[%s2613 + $0x58] sm:$0xf] %vm1073, %v2466
      %2637 = vst.msk [vmem:[%s2613 + $0x5c] sm:$0xf] %vm1073, %v2468
      %2638 = vst.msk [vmem:[%s2613 + $0x60] sm:$0xf] %vm1073, %v2470
      %2639 = vst.msk [vmem:[%s2613 + $0x64] sm:$0xf] %vm1073, %v2472
      %2640 = vst.msk [vmem:[%s2613 + $0x68] sm:$0xf] %vm1073, %v2474
      %2641 = vst.msk [vmem:[%s2613 + $0x6c] sm:$0xf] %vm1073, %v2476
      %2642 = vst.msk [vmem:[%s2613 + $0x70] sm:$0xf] %vm1073, %v2478
      %2643 = vst.msk [vmem:[%s2613 + $0x74] sm:$0xf] %vm1073, %v2480
      %2644 = vst.msk [vmem:[%s2613 + $0x78] sm:$0xf] %vm1073, %v2482
      %2645 = vst.msk [vmem:[%s2613 + $0x7c] sm:$0xf] %vm1073, %v2484
      %2646 = vst.msk [vmem:[%s2613 + $0x80] sm:$0xf] %vm1073, %v2486
      %2647 = vst.msk [vmem:[%s2613 + $0x84] sm:$0xf] %vm1073, %v2488
      %2648 = vst.msk [vmem:[%s2613 + $0x88] sm:$0xf] %vm1073, %v2490
      %2649 = vst.msk [vmem:[%s2613 + $0x8c] sm:$0xf] %vm1073, %v2492
      %2650 = vst.msk [vmem:[%s2613 + $0x90] sm:$0xf] %vm1073, %v2494
      %2651 = vst.msk [vmem:[%s2613 + $0x94] sm:$0xf] %vm1073, %v2496
      %2652 = vst.msk [vmem:[%s2613 + $0x98] sm:$0xf] %vm1073, %v2498
      %2653 = vst.msk [vmem:[%s2613 + $0x9c] sm:$0xf] %vm1073, %v2500
      %2654 = vst.msk [vmem:[%s2613 + $0xa0] sm:$0xf] %vm1073, %v2502
      %2655 = vst.msk [vmem:[%s2613 + $0xa4] sm:$0xf] %vm1073, %v2504
      %2656 = vst.msk [vmem:[%s2613 + $0xa8] sm:$0xf] %vm1073, %v2506
      %2657 = vst.msk [vmem:[%s2613 + $0xac] sm:$0xf] %vm1073, %v2508
      %2658 = vst.msk [vmem:[%s2613 + $0xb0] sm:$0xf] %vm1073, %v2510
      %2659 = vst.msk [vmem:[%s2613 + $0xb4] sm:$0xf] %vm1073, %v2512
      %2660 = vst.msk [vmem:[%s2613 + $0xb8] sm:$0xf] %vm1073, %v2514
      %2661 = vst.msk [vmem:[%s2613 + $0xbc] sm:$0xf] %vm1073, %v2516
      %2662 = vst.msk [vmem:[%s2613 + $0xc0] sm:$0xf] %vm1073, %v2518
      %2663 = vst.msk [vmem:[%s2613 + $0xc4] sm:$0xf] %vm1073, %v2520
      %2664 = vst.msk [vmem:[%s2613 + $0xc8] sm:$0xf] %vm1073, %v2522
      %2665 = vst.msk [vmem:[%s2613 + $0xcc] sm:$0xf] %vm1073, %v2524
      %2666 = vst.msk [vmem:[%s2613 + $0xd0] sm:$0xf] %vm1073, %v2526
      %2667 = vst.msk [vmem:[%s2613 + $0xd4] sm:$0xf] %vm1073, %v2528
      %2668 = vst.msk [vmem:[%s2613 + $0xd8] sm:$0xf] %vm1073, %v2530
      %2669 = vst.msk [vmem:[%s2613 + $0xdc] sm:$0xf] %vm1073, %v2532
      %2670 = vst.msk [vmem:[%s2613 + $0xe0] sm:$0xf] %vm1073, %v2534
      %2671 = vst.msk [vmem:[%s2613 + $0xe4] sm:$0xf] %vm1073, %v2536
      %2672 = vst.msk [vmem:[%s2613 + $0xe8] sm:$0xf] %vm1073, %v2538
      %2673 = vst.msk [vmem:[%s2613 + $0xec] sm:$0xf] %vm1073, %v2540
      %2674 = vst.msk [vmem:[%s2613 + $0xf0] sm:$0xf] %vm1073, %v2542
      %2675 = vst.msk [vmem:[%s2613 + $0xf4] sm:$0xf] %vm1073, %v2544
      %2676 = vst.msk [vmem:[%s2613 + $0xf8] sm:$0xf] %vm1073, %v2546
      %2677 = vst.msk [vmem:[%s2613 + $0xfc] sm:$0xf] %vm1073, %v2548
      %2678 = vrot.lane.b32.xlu0 %v945, 80
      %v2679 = vpop.permute.xlu0 %2678
      %2680 = vrot.lane.b32.xlu0 %v946, 80
      %v2681 = vpop.permute.xlu0 %2680
      %2682 = vrot.lane.b32.xlu0 %v947, 80
      %v2683 = vpop.permute.xlu0 %2682
      %2684 = vrot.lane.b32.xlu0 %v948, 80
      %v2685 = vpop.permute.xlu0 %2684
      %2686 = vrot.lane.b32.xlu0 %v949, 80
      %v2687 = vpop.permute.xlu0 %2686
      %2688 = vrot.lane.b32.xlu0 %v950, 80
      %v2689 = vpop.permute.xlu0 %2688
      %2690 = vrot.lane.b32.xlu0 %v951, 80
      %v2691 = vpop.permute.xlu0 %2690
      %2692 = vrot.lane.b32.xlu0 %v952, 80
      %v2693 = vpop.permute.xlu0 %2692
      %2694 = vrot.lane.b32.xlu0 %v953, 80
      %v2695 = vpop.permute.xlu0 %2694
      %2696 = vrot.lane.b32.xlu0 %v954, 80
      %v2697 = vpop.permute.xlu0 %2696
      %2698 = vrot.lane.b32.xlu0 %v955, 80
      %v2699 = vpop.permute.xlu0 %2698
      %2700 = vrot.lane.b32.xlu0 %v956, 80
      %v2701 = vpop.permute.xlu0 %2700
      %2702 = vrot.lane.b32.xlu0 %v957, 80
      %v2703 = vpop.permute.xlu0 %2702
      %2704 = vrot.lane.b32.xlu0 %v958, 80
      %v2705 = vpop.permute.xlu0 %2704
      %2706 = vrot.lane.b32.xlu0 %v959, 80
      %v2707 = vpop.permute.xlu0 %2706
      %2708 = vrot.lane.b32.xlu0 %v960, 80
      %v2709 = vpop.permute.xlu0 %2708
      %2710 = vrot.lane.b32.xlu0 %v961, 80
      %v2711 = vpop.permute.xlu0 %2710
      %2712 = vrot.lane.b32.xlu0 %v962, 80
      %v2713 = vpop.permute.xlu0 %2712
      %2714 = vrot.lane.b32.xlu0 %v963, 80
      %v2715 = vpop.permute.xlu0 %2714
      %2716 = vrot.lane.b32.xlu0 %v964, 80
      %v2717 = vpop.permute.xlu0 %2716
      %2718 = vrot.lane.b32.xlu0 %v965, 80
      %v2719 = vpop.permute.xlu0 %2718
      %2720 = vrot.lane.b32.xlu0 %v966, 80
      %v2721 = vpop.permute.xlu0 %2720
      %2722 = vrot.lane.b32.xlu0 %v967, 80
      %v2723 = vpop.permute.xlu0 %2722
      %2724 = vrot.lane.b32.xlu0 %v968, 80
      %v2725 = vpop.permute.xlu0 %2724
      %2726 = vrot.lane.b32.xlu0 %v969, 80
      %v2727 = vpop.permute.xlu0 %2726
      %2728 = vrot.lane.b32.xlu0 %v970, 80
      %v2729 = vpop.permute.xlu0 %2728
      %2730 = vrot.lane.b32.xlu0 %v971, 80
      %v2731 = vpop.permute.xlu0 %2730
      %2732 = vrot.lane.b32.xlu0 %v972, 80
      %v2733 = vpop.permute.xlu0 %2732
      %2734 = vrot.lane.b32.xlu0 %v973, 80
      %v2735 = vpop.permute.xlu0 %2734
      %2736 = vrot.lane.b32.xlu0 %v974, 80
      %v2737 = vpop.permute.xlu0 %2736
      %2738 = vrot.lane.b32.xlu0 %v975, 80
      %v2739 = vpop.permute.xlu0 %2738
      %2740 = vrot.lane.b32.xlu0 %v976, 80
      %v2741 = vpop.permute.xlu0 %2740
      %2742 = vrot.lane.b32.xlu0 %v977, 80
      %v2743 = vpop.permute.xlu0 %2742
      %2744 = vrot.lane.b32.xlu0 %v978, 80
      %v2745 = vpop.permute.xlu0 %2744
      %2746 = vrot.lane.b32.xlu0 %v979, 80
      %v2747 = vpop.permute.xlu0 %2746
      %2748 = vrot.lane.b32.xlu0 %v980, 80
      %v2749 = vpop.permute.xlu0 %2748
      %2750 = vrot.lane.b32.xlu0 %v981, 80
      %v2751 = vpop.permute.xlu0 %2750
      %2752 = vrot.lane.b32.xlu0 %v982, 80
      %v2753 = vpop.permute.xlu0 %2752
      %2754 = vrot.lane.b32.xlu0 %v983, 80
      %v2755 = vpop.permute.xlu0 %2754
      %2756 = vrot.lane.b32.xlu0 %v984, 80
      %v2757 = vpop.permute.xlu0 %2756
      %2758 = vrot.lane.b32.xlu0 %v985, 80
      %v2759 = vpop.permute.xlu0 %2758
      %2760 = vrot.lane.b32.xlu0 %v986, 80
      %v2761 = vpop.permute.xlu0 %2760
      %2762 = vrot.lane.b32.xlu0 %v987, 80
      %v2763 = vpop.permute.xlu0 %2762
      %2764 = vrot.lane.b32.xlu0 %v988, 80
      %v2765 = vpop.permute.xlu0 %2764
      %2766 = vrot.lane.b32.xlu0 %v989, 80
      %v2767 = vpop.permute.xlu0 %2766
      %2768 = vrot.lane.b32.xlu0 %v990, 80
      %v2769 = vpop.permute.xlu0 %2768
      %2770 = vrot.lane.b32.xlu0 %v991, 80
      %v2771 = vpop.permute.xlu0 %2770
      %2772 = vrot.lane.b32.xlu0 %v992, 80
      %v2773 = vpop.permute.xlu0 %2772
      %2774 = vrot.lane.b32.xlu0 %v993, 80
      %v2775 = vpop.permute.xlu0 %2774
      %2776 = vrot.lane.b32.xlu0 %v994, 80
      %v2777 = vpop.permute.xlu0 %2776
      %2778 = vrot.lane.b32.xlu0 %v995, 80
      %v2779 = vpop.permute.xlu0 %2778
      %2780 = vrot.lane.b32.xlu0 %v996, 80
      %v2781 = vpop.permute.xlu0 %2780
      %2782 = vrot.lane.b32.xlu0 %v997, 80
      %v2783 = vpop.permute.xlu0 %2782
      %2784 = vrot.lane.b32.xlu0 %v998, 80
      %v2785 = vpop.permute.xlu0 %2784
      %2786 = vrot.lane.b32.xlu0 %v999, 80
      %v2787 = vpop.permute.xlu0 %2786
      %2788 = vrot.lane.b32.xlu0 %v1000, 80
      %v2789 = vpop.permute.xlu0 %2788
      %2790 = vrot.lane.b32.xlu0 %v1001, 80
      %v2791 = vpop.permute.xlu0 %2790
      %2792 = vrot.lane.b32.xlu0 %v1002, 80
      %v2793 = vpop.permute.xlu0 %2792
      %2794 = vrot.lane.b32.xlu0 %v1003, 80
      %v2795 = vpop.permute.xlu0 %2794
      %2796 = vrot.lane.b32.xlu0 %v1004, 80
      %v2797 = vpop.permute.xlu0 %2796
      %2798 = vrot.lane.b32.xlu0 %v1005, 80
      %v2799 = vpop.permute.xlu0 %2798
      %2800 = vrot.lane.b32.xlu0 %v1006, 80
      %v2801 = vpop.permute.xlu0 %2800
      %2802 = vrot.lane.b32.xlu0 %v1007, 80
      %v2803 = vpop.permute.xlu0 %2802
      %2804 = vrot.lane.b32.xlu0 %v1008, 80
      %v2805 = vpop.permute.xlu0 %2804
      %s2870 = scalar_lea.vmem %s299, 512
      %2871 = vst.msk [vmem:[%s2870] sm:$0xf] %vm1073, %v2679
      %2872 = vst.msk [vmem:[%s2870 + $0x4] sm:$0xf] %vm1073, %v2681
      %2873 = vst.msk [vmem:[%s2870 + $0x8] sm:$0xf] %vm1073, %v2683
      %2874 = vst.msk [vmem:[%s2870 + $0xc] sm:$0xf] %vm1073, %v2685
      %2875 = vst.msk [vmem:[%s2870 + $0x10] sm:$0xf] %vm1073, %v2687
      %2876 = vst.msk [vmem:[%s2870 + $0x14] sm:$0xf] %vm1073, %v2689
      %2877 = vst.msk [vmem:[%s2870 + $0x18] sm:$0xf] %vm1073, %v2691
      %2878 = vst.msk [vmem:[%s2870 + $0x1c] sm:$0xf] %vm1073, %v2693
      %2879 = vst.msk [vmem:[%s2870 + $0x20] sm:$0xf] %vm1073, %v2695
      %2880 = vst.msk [vmem:[%s2870 + $0x24] sm:$0xf] %vm1073, %v2697
      %2881 = vst.msk [vmem:[%s2870 + $0x28] sm:$0xf] %vm1073, %v2699
      %2882 = vst.msk [vmem:[%s2870 + $0x2c] sm:$0xf] %vm1073, %v2701
      %2883 = vst.msk [vmem:[%s2870 + $0x30] sm:$0xf] %vm1073, %v2703
      %2884 = vst.msk [vmem:[%s2870 + $0x34] sm:$0xf] %vm1073, %v2705
      %2885 = vst.msk [vmem:[%s2870 + $0x38] sm:$0xf] %vm1073, %v2707
      %2886 = vst.msk [vmem:[%s2870 + $0x3c] sm:$0xf] %vm1073, %v2709
      %2887 = vst.msk [vmem:[%s2870 + $0x40] sm:$0xf] %vm1073, %v2711
      %2888 = vst.msk [vmem:[%s2870 + $0x44] sm:$0xf] %vm1073, %v2713
      %2889 = vst.msk [vmem:[%s2870 + $0x48] sm:$0xf] %vm1073, %v2715
      %2890 = vst.msk [vmem:[%s2870 + $0x4c] sm:$0xf] %vm1073, %v2717
      %2891 = vst.msk [vmem:[%s2870 + $0x50] sm:$0xf] %vm1073, %v2719
      %2892 = vst.msk [vmem:[%s2870 + $0x54] sm:$0xf] %vm1073, %v2721
      %2893 = vst.msk [vmem:[%s2870 + $0x58] sm:$0xf] %vm1073, %v2723
      %2894 = vst.msk [vmem:[%s2870 + $0x5c] sm:$0xf] %vm1073, %v2725
      %2895 = vst.msk [vmem:[%s2870 + $0x60] sm:$0xf] %vm1073, %v2727
      %2896 = vst.msk [vmem:[%s2870 + $0x64] sm:$0xf] %vm1073, %v2729
      %2897 = vst.msk [vmem:[%s2870 + $0x68] sm:$0xf] %vm1073, %v2731
      %2898 = vst.msk [vmem:[%s2870 + $0x6c] sm:$0xf] %vm1073, %v2733
      %2899 = vst.msk [vmem:[%s2870 + $0x70] sm:$0xf] %vm1073, %v2735
      %2900 = vst.msk [vmem:[%s2870 + $0x74] sm:$0xf] %vm1073, %v2737
      %2901 = vst.msk [vmem:[%s2870 + $0x78] sm:$0xf] %vm1073, %v2739
      %2902 = vst.msk [vmem:[%s2870 + $0x7c] sm:$0xf] %vm1073, %v2741
      %2903 = vst.msk [vmem:[%s2870 + $0x80] sm:$0xf] %vm1073, %v2743
      %2904 = vst.msk [vmem:[%s2870 + $0x84] sm:$0xf] %vm1073, %v2745
      %2905 = vst.msk [vmem:[%s2870 + $0x88] sm:$0xf] %vm1073, %v2747
      %2906 = vst.msk [vmem:[%s2870 + $0x8c] sm:$0xf] %vm1073, %v2749
      %2907 = vst.msk [vmem:[%s2870 + $0x90] sm:$0xf] %vm1073, %v2751
      %2908 = vst.msk [vmem:[%s2870 + $0x94] sm:$0xf] %vm1073, %v2753
      %2909 = vst.msk [vmem:[%s2870 + $0x98] sm:$0xf] %vm1073, %v2755
      %2910 = vst.msk [vmem:[%s2870 + $0x9c] sm:$0xf] %vm1073, %v2757
      %2911 = vst.msk [vmem:[%s2870 + $0xa0] sm:$0xf] %vm1073, %v2759
      %2912 = vst.msk [vmem:[%s2870 + $0xa4] sm:$0xf] %vm1073, %v2761
      %2913 = vst.msk [vmem:[%s2870 + $0xa8] sm:$0xf] %vm1073, %v2763
      %2914 = vst.msk [vmem:[%s2870 + $0xac] sm:$0xf] %vm1073, %v2765
      %2915 = vst.msk [vmem:[%s2870 + $0xb0] sm:$0xf] %vm1073, %v2767
      %2916 = vst.msk [vmem:[%s2870 + $0xb4] sm:$0xf] %vm1073, %v2769
      %2917 = vst.msk [vmem:[%s2870 + $0xb8] sm:$0xf] %vm1073, %v2771
      %2918 = vst.msk [vmem:[%s2870 + $0xbc] sm:$0xf] %vm1073, %v2773
      %2919 = vst.msk [vmem:[%s2870 + $0xc0] sm:$0xf] %vm1073, %v2775
      %2920 = vst.msk [vmem:[%s2870 + $0xc4] sm:$0xf] %vm1073, %v2777
      %2921 = vst.msk [vmem:[%s2870 + $0xc8] sm:$0xf] %vm1073, %v2779
      %2922 = vst.msk [vmem:[%s2870 + $0xcc] sm:$0xf] %vm1073, %v2781
      %2923 = vst.msk [vmem:[%s2870 + $0xd0] sm:$0xf] %vm1073, %v2783
      %2924 = vst.msk [vmem:[%s2870 + $0xd4] sm:$0xf] %vm1073, %v2785
      %2925 = vst.msk [vmem:[%s2870 + $0xd8] sm:$0xf] %vm1073, %v2787
      %2926 = vst.msk [vmem:[%s2870 + $0xdc] sm:$0xf] %vm1073, %v2789
      %2927 = vst.msk [vmem:[%s2870 + $0xe0] sm:$0xf] %vm1073, %v2791
      %2928 = vst.msk [vmem:[%s2870 + $0xe4] sm:$0xf] %vm1073, %v2793
      %2929 = vst.msk [vmem:[%s2870 + $0xe8] sm:$0xf] %vm1073, %v2795
      %2930 = vst.msk [vmem:[%s2870 + $0xec] sm:$0xf] %vm1073, %v2797
      %2931 = vst.msk [vmem:[%s2870 + $0xf0] sm:$0xf] %vm1073, %v2799
      %2932 = vst.msk [vmem:[%s2870 + $0xf4] sm:$0xf] %vm1073, %v2801
      %2933 = vst.msk [vmem:[%s2870 + $0xf8] sm:$0xf] %vm1073, %v2803
      %2934 = vst.msk [vmem:[%s2870 + $0xfc] sm:$0xf] %vm1073, %v2805
      %2935 = vrot.lane.b32.xlu0 %v945, 48
      %v2936 = vpop.permute.xlu0 %2935
      %2937 = vrot.lane.b32.xlu0 %v946, 48
      %v2938 = vpop.permute.xlu0 %2937
      %2939 = vrot.lane.b32.xlu0 %v947, 48
      %v2940 = vpop.permute.xlu0 %2939
      %2941 = vrot.lane.b32.xlu0 %v948, 48
      %v2942 = vpop.permute.xlu0 %2941
      %2943 = vrot.lane.b32.xlu0 %v949, 48
      %v2944 = vpop.permute.xlu0 %2943
      %2945 = vrot.lane.b32.xlu0 %v950, 48
      %v2946 = vpop.permute.xlu0 %2945
      %2947 = vrot.lane.b32.xlu0 %v951, 48
      %v2948 = vpop.permute.xlu0 %2947
      %2949 = vrot.lane.b32.xlu0 %v952, 48
      %v2950 = vpop.permute.xlu0 %2949
      %2951 = vrot.lane.b32.xlu0 %v953, 48
      %v2952 = vpop.permute.xlu0 %2951
      %2953 = vrot.lane.b32.xlu0 %v954, 48
      %v2954 = vpop.permute.xlu0 %2953
      %2955 = vrot.lane.b32.xlu0 %v955, 48
      %v2956 = vpop.permute.xlu0 %2955
      %2957 = vrot.lane.b32.xlu0 %v956, 48
      %v2958 = vpop.permute.xlu0 %2957
      %2959 = vrot.lane.b32.xlu0 %v957, 48
      %v2960 = vpop.permute.xlu0 %2959
      %2961 = vrot.lane.b32.xlu0 %v958, 48
      %v2962 = vpop.permute.xlu0 %2961
      %2963 = vrot.lane.b32.xlu0 %v959, 48
      %v2964 = vpop.permute.xlu0 %2963
      %2965 = vrot.lane.b32.xlu0 %v960, 48
      %v2966 = vpop.permute.xlu0 %2965
      %2967 = vrot.lane.b32.xlu0 %v961, 48
      %v2968 = vpop.permute.xlu0 %2967
      %2969 = vrot.lane.b32.xlu0 %v962, 48
      %v2970 = vpop.permute.xlu0 %2969
      %2971 = vrot.lane.b32.xlu0 %v963, 48
      %v2972 = vpop.permute.xlu0 %2971
      %2973 = vrot.lane.b32.xlu0 %v964, 48
      %v2974 = vpop.permute.xlu0 %2973
      %2975 = vrot.lane.b32.xlu0 %v965, 48
      %v2976 = vpop.permute.xlu0 %2975
      %2977 = vrot.lane.b32.xlu0 %v966, 48
      %v2978 = vpop.permute.xlu0 %2977
      %2979 = vrot.lane.b32.xlu0 %v967, 48
      %v2980 = vpop.permute.xlu0 %2979
      %2981 = vrot.lane.b32.xlu0 %v968, 48
      %v2982 = vpop.permute.xlu0 %2981
      %2983 = vrot.lane.b32.xlu0 %v969, 48
      %v2984 = vpop.permute.xlu0 %2983
      %2985 = vrot.lane.b32.xlu0 %v970, 48
      %v2986 = vpop.permute.xlu0 %2985
      %2987 = vrot.lane.b32.xlu0 %v971, 48
      %v2988 = vpop.permute.xlu0 %2987
      %2989 = vrot.lane.b32.xlu0 %v972, 48
      %v2990 = vpop.permute.xlu0 %2989
      %2991 = vrot.lane.b32.xlu0 %v973, 48
      %v2992 = vpop.permute.xlu0 %2991
      %2993 = vrot.lane.b32.xlu0 %v974, 48
      %v2994 = vpop.permute.xlu0 %2993
      %2995 = vrot.lane.b32.xlu0 %v975, 48
      %v2996 = vpop.permute.xlu0 %2995
      %2997 = vrot.lane.b32.xlu0 %v976, 48
      %v2998 = vpop.permute.xlu0 %2997
      %2999 = vrot.lane.b32.xlu0 %v977, 48
      %v3000 = vpop.permute.xlu0 %2999
      %3001 = vrot.lane.b32.xlu0 %v978, 48
      %v3002 = vpop.permute.xlu0 %3001
      %3003 = vrot.lane.b32.xlu0 %v979, 48
      %v3004 = vpop.permute.xlu0 %3003
      %3005 = vrot.lane.b32.xlu0 %v980, 48
      %v3006 = vpop.permute.xlu0 %3005
      %3007 = vrot.lane.b32.xlu0 %v981, 48
      %v3008 = vpop.permute.xlu0 %3007
      %3009 = vrot.lane.b32.xlu0 %v982, 48
      %v3010 = vpop.permute.xlu0 %3009
      %3011 = vrot.lane.b32.xlu0 %v983, 48
      %v3012 = vpop.permute.xlu0 %3011
      %3013 = vrot.lane.b32.xlu0 %v984, 48
      %v3014 = vpop.permute.xlu0 %3013
      %3015 = vrot.lane.b32.xlu0 %v985, 48
      %v3016 = vpop.permute.xlu0 %3015
      %3017 = vrot.lane.b32.xlu0 %v986, 48
      %v3018 = vpop.permute.xlu0 %3017
      %3019 = vrot.lane.b32.xlu0 %v987, 48
      %v3020 = vpop.permute.xlu0 %3019
      %3021 = vrot.lane.b32.xlu0 %v988, 48
      %v3022 = vpop.permute.xlu0 %3021
      %3023 = vrot.lane.b32.xlu0 %v989, 48
      %v3024 = vpop.permute.xlu0 %3023
      %3025 = vrot.lane.b32.xlu0 %v990, 48
      %v3026 = vpop.permute.xlu0 %3025
      %3027 = vrot.lane.b32.xlu0 %v991, 48
      %v3028 = vpop.permute.xlu0 %3027
      %3029 = vrot.lane.b32.xlu0 %v992, 48
      %v3030 = vpop.permute.xlu0 %3029
      %3031 = vrot.lane.b32.xlu0 %v993, 48
      %v3032 = vpop.permute.xlu0 %3031
      %3033 = vrot.lane.b32.xlu0 %v994, 48
      %v3034 = vpop.permute.xlu0 %3033
      %3035 = vrot.lane.b32.xlu0 %v995, 48
      %v3036 = vpop.permute.xlu0 %3035
      %3037 = vrot.lane.b32.xlu0 %v996, 48
      %v3038 = vpop.permute.xlu0 %3037
      %3039 = vrot.lane.b32.xlu0 %v997, 48
      %v3040 = vpop.permute.xlu0 %3039
      %3041 = vrot.lane.b32.xlu0 %v998, 48
      %v3042 = vpop.permute.xlu0 %3041
      %3043 = vrot.lane.b32.xlu0 %v999, 48
      %v3044 = vpop.permute.xlu0 %3043
      %3045 = vrot.lane.b32.xlu0 %v1000, 48
      %v3046 = vpop.permute.xlu0 %3045
      %3047 = vrot.lane.b32.xlu0 %v1001, 48
      %v3048 = vpop.permute.xlu0 %3047
      %3049 = vrot.lane.b32.xlu0 %v1002, 48
      %v3050 = vpop.permute.xlu0 %3049
      %3051 = vrot.lane.b32.xlu0 %v1003, 48
      %v3052 = vpop.permute.xlu0 %3051
      %3053 = vrot.lane.b32.xlu0 %v1004, 48
      %v3054 = vpop.permute.xlu0 %3053
      %3055 = vrot.lane.b32.xlu0 %v1005, 48
      %v3056 = vpop.permute.xlu0 %3055
      %3057 = vrot.lane.b32.xlu0 %v1006, 48
      %v3058 = vpop.permute.xlu0 %3057
      %3059 = vrot.lane.b32.xlu0 %v1007, 48
      %v3060 = vpop.permute.xlu0 %3059
      %3061 = vrot.lane.b32.xlu0 %v1008, 48
      %v3062 = vpop.permute.xlu0 %3061
      %s3127 = scalar_lea.vmem %s309, 512
      %3128 = vst.msk [vmem:[%s3127] sm:$0xf] %vm1073, %v2936
      %3129 = vst.msk [vmem:[%s3127 + $0x4] sm:$0xf] %vm1073, %v2938
      %3130 = vst.msk [vmem:[%s3127 + $0x8] sm:$0xf] %vm1073, %v2940
      %3131 = vst.msk [vmem:[%s3127 + $0xc] sm:$0xf] %vm1073, %v2942
      %3132 = vst.msk [vmem:[%s3127 + $0x10] sm:$0xf] %vm1073, %v2944
      %3133 = vst.msk [vmem:[%s3127 + $0x14] sm:$0xf] %vm1073, %v2946
      %3134 = vst.msk [vmem:[%s3127 + $0x18] sm:$0xf] %vm1073, %v2948
      %3135 = vst.msk [vmem:[%s3127 + $0x1c] sm:$0xf] %vm1073, %v2950
      %3136 = vst.msk [vmem:[%s3127 + $0x20] sm:$0xf] %vm1073, %v2952
      %3137 = vst.msk [vmem:[%s3127 + $0x24] sm:$0xf] %vm1073, %v2954
      %3138 = vst.msk [vmem:[%s3127 + $0x28] sm:$0xf] %vm1073, %v2956
      %3139 = vst.msk [vmem:[%s3127 + $0x2c] sm:$0xf] %vm1073, %v2958
      %3140 = vst.msk [vmem:[%s3127 + $0x30] sm:$0xf] %vm1073, %v2960
      %3141 = vst.msk [vmem:[%s3127 + $0x34] sm:$0xf] %vm1073, %v2962
      %3142 = vst.msk [vmem:[%s3127 + $0x38] sm:$0xf] %vm1073, %v2964
      %3143 = vst.msk [vmem:[%s3127 + $0x3c] sm:$0xf] %vm1073, %v2966
      %3144 = vst.msk [vmem:[%s3127 + $0x40] sm:$0xf] %vm1073, %v2968
      %3145 = vst.msk [vmem:[%s3127 + $0x44] sm:$0xf] %vm1073, %v2970
      %3146 = vst.msk [vmem:[%s3127 + $0x48] sm:$0xf] %vm1073, %v2972
      %3147 = vst.msk [vmem:[%s3127 + $0x4c] sm:$0xf] %vm1073, %v2974
      %3148 = vst.msk [vmem:[%s3127 + $0x50] sm:$0xf] %vm1073, %v2976
      %3149 = vst.msk [vmem:[%s3127 + $0x54] sm:$0xf] %vm1073, %v2978
      %3150 = vst.msk [vmem:[%s3127 + $0x58] sm:$0xf] %vm1073, %v2980
      %3151 = vst.msk [vmem:[%s3127 + $0x5c] sm:$0xf] %vm1073, %v2982
      %3152 = vst.msk [vmem:[%s3127 + $0x60] sm:$0xf] %vm1073, %v2984
      %3153 = vst.msk [vmem:[%s3127 + $0x64] sm:$0xf] %vm1073, %v2986
      %3154 = vst.msk [vmem:[%s3127 + $0x68] sm:$0xf] %vm1073, %v2988
      %3155 = vst.msk [vmem:[%s3127 + $0x6c] sm:$0xf] %vm1073, %v2990
      %3156 = vst.msk [vmem:[%s3127 + $0x70] sm:$0xf] %vm1073, %v2992
      %3157 = vst.msk [vmem:[%s3127 + $0x74] sm:$0xf] %vm1073, %v2994
      %3158 = vst.msk [vmem:[%s3127 + $0x78] sm:$0xf] %vm1073, %v2996
      %3159 = vst.msk [vmem:[%s3127 + $0x7c] sm:$0xf] %vm1073, %v2998
      %3160 = vst.msk [vmem:[%s3127 + $0x80] sm:$0xf] %vm1073, %v3000
      %3161 = vst.msk [vmem:[%s3127 + $0x84] sm:$0xf] %vm1073, %v3002
      %3162 = vst.msk [vmem:[%s3127 + $0x88] sm:$0xf] %vm1073, %v3004
      %3163 = vst.msk [vmem:[%s3127 + $0x8c] sm:$0xf] %vm1073, %v3006
      %3164 = vst.msk [vmem:[%s3127 + $0x90] sm:$0xf] %vm1073, %v3008
      %3165 = vst.msk [vmem:[%s3127 + $0x94] sm:$0xf] %vm1073, %v3010
      %3166 = vst.msk [vmem:[%s3127 + $0x98] sm:$0xf] %vm1073, %v3012
      %3167 = vst.msk [vmem:[%s3127 + $0x9c] sm:$0xf] %vm1073, %v3014
      %3168 = vst.msk [vmem:[%s3127 + $0xa0] sm:$0xf] %vm1073, %v3016
      %3169 = vst.msk [vmem:[%s3127 + $0xa4] sm:$0xf] %vm1073, %v3018
      %3170 = vst.msk [vmem:[%s3127 + $0xa8] sm:$0xf] %vm1073, %v3020
      %3171 = vst.msk [vmem:[%s3127 + $0xac] sm:$0xf] %vm1073, %v3022
      %3172 = vst.msk [vmem:[%s3127 + $0xb0] sm:$0xf] %vm1073, %v3024
      %3173 = vst.msk [vmem:[%s3127 + $0xb4] sm:$0xf] %vm1073, %v3026
      %3174 = vst.msk [vmem:[%s3127 + $0xb8] sm:$0xf] %vm1073, %v3028
      %3175 = vst.msk [vmem:[%s3127 + $0xbc] sm:$0xf] %vm1073, %v3030
      %3176 = vst.msk [vmem:[%s3127 + $0xc0] sm:$0xf] %vm1073, %v3032
      %3177 = vst.msk [vmem:[%s3127 + $0xc4] sm:$0xf] %vm1073, %v3034
      %3178 = vst.msk [vmem:[%s3127 + $0xc8] sm:$0xf] %vm1073, %v3036
      %3179 = vst.msk [vmem:[%s3127 + $0xcc] sm:$0xf] %vm1073, %v3038
      %3180 = vst.msk [vmem:[%s3127 + $0xd0] sm:$0xf] %vm1073, %v3040
      %3181 = vst.msk [vmem:[%s3127 + $0xd4] sm:$0xf] %vm1073, %v3042
      %3182 = vst.msk [vmem:[%s3127 + $0xd8] sm:$0xf] %vm1073, %v3044
      %3183 = vst.msk [vmem:[%s3127 + $0xdc] sm:$0xf] %vm1073, %v3046
      %3184 = vst.msk [vmem:[%s3127 + $0xe0] sm:$0xf] %vm1073, %v3048
      %3185 = vst.msk [vmem:[%s3127 + $0xe4] sm:$0xf] %vm1073, %v3050
      %3186 = vst.msk [vmem:[%s3127 + $0xe8] sm:$0xf] %vm1073, %v3052
      %3187 = vst.msk [vmem:[%s3127 + $0xec] sm:$0xf] %vm1073, %v3054
      %3188 = vst.msk [vmem:[%s3127 + $0xf0] sm:$0xf] %vm1073, %v3056
      %3189 = vst.msk [vmem:[%s3127 + $0xf4] sm:$0xf] %vm1073, %v3058
      %3190 = vst.msk [vmem:[%s3127 + $0xf8] sm:$0xf] %vm1073, %v3060
      %3191 = vst.msk [vmem:[%s3127 + $0xfc] sm:$0xf] %vm1073, %v3062
      %3192 = vrot.lane.b32.xlu0 %v945, 104
      %v3193 = vpop.permute.xlu0 %3192
      %3194 = vrot.lane.b32.xlu0 %v946, 104
      %v3195 = vpop.permute.xlu0 %3194
      %3196 = vrot.lane.b32.xlu0 %v947, 104
      %v3197 = vpop.permute.xlu0 %3196
      %3198 = vrot.lane.b32.xlu0 %v948, 104
      %v3199 = vpop.permute.xlu0 %3198
      %3200 = vrot.lane.b32.xlu0 %v949, 104
      %v3201 = vpop.permute.xlu0 %3200
      %3202 = vrot.lane.b32.xlu0 %v950, 104
      %v3203 = vpop.permute.xlu0 %3202
      %3204 = vrot.lane.b32.xlu0 %v951, 104
      %v3205 = vpop.permute.xlu0 %3204
      %3206 = vrot.lane.b32.xlu0 %v952, 104
      %v3207 = vpop.permute.xlu0 %3206
      %3208 = vrot.lane.b32.xlu0 %v953, 104
      %v3209 = vpop.permute.xlu0 %3208
      %3210 = vrot.lane.b32.xlu0 %v954, 104
      %v3211 = vpop.permute.xlu0 %3210
      %3212 = vrot.lane.b32.xlu0 %v955, 104
      %v3213 = vpop.permute.xlu0 %3212
      %3214 = vrot.lane.b32.xlu0 %v956, 104
      %v3215 = vpop.permute.xlu0 %3214
      %3216 = vrot.lane.b32.xlu0 %v957, 104
      %v3217 = vpop.permute.xlu0 %3216
      %3218 = vrot.lane.b32.xlu0 %v958, 104
      %v3219 = vpop.permute.xlu0 %3218
      %3220 = vrot.lane.b32.xlu0 %v959, 104
      %v3221 = vpop.permute.xlu0 %3220
      %3222 = vrot.lane.b32.xlu0 %v960, 104
      %v3223 = vpop.permute.xlu0 %3222
      %3224 = vrot.lane.b32.xlu0 %v961, 104
      %v3225 = vpop.permute.xlu0 %3224
      %3226 = vrot.lane.b32.xlu0 %v962, 104
      %v3227 = vpop.permute.xlu0 %3226
      %3228 = vrot.lane.b32.xlu0 %v963, 104
      %v3229 = vpop.permute.xlu0 %3228
      %3230 = vrot.lane.b32.xlu0 %v964, 104
      %v3231 = vpop.permute.xlu0 %3230
      %3232 = vrot.lane.b32.xlu0 %v965, 104
      %v3233 = vpop.permute.xlu0 %3232
      %3234 = vrot.lane.b32.xlu0 %v966, 104
      %v3235 = vpop.permute.xlu0 %3234
      %3236 = vrot.lane.b32.xlu0 %v967, 104
      %v3237 = vpop.permute.xlu0 %3236
      %3238 = vrot.lane.b32.xlu0 %v968, 104
      %v3239 = vpop.permute.xlu0 %3238
      %3240 = vrot.lane.b32.xlu0 %v969, 104
      %v3241 = vpop.permute.xlu0 %3240
      %3242 = vrot.lane.b32.xlu0 %v970, 104
      %v3243 = vpop.permute.xlu0 %3242
      %3244 = vrot.lane.b32.xlu0 %v971, 104
      %v3245 = vpop.permute.xlu0 %3244
      %3246 = vrot.lane.b32.xlu0 %v972, 104
      %v3247 = vpop.permute.xlu0 %3246
      %3248 = vrot.lane.b32.xlu0 %v973, 104
      %v3249 = vpop.permute.xlu0 %3248
      %3250 = vrot.lane.b32.xlu0 %v974, 104
      %v3251 = vpop.permute.xlu0 %3250
      %3252 = vrot.lane.b32.xlu0 %v975, 104
      %v3253 = vpop.permute.xlu0 %3252
      %3254 = vrot.lane.b32.xlu0 %v976, 104
      %v3255 = vpop.permute.xlu0 %3254
      %3256 = vrot.lane.b32.xlu0 %v977, 104
      %v3257 = vpop.permute.xlu0 %3256
      %3258 = vrot.lane.b32.xlu0 %v978, 104
      %v3259 = vpop.permute.xlu0 %3258
      %3260 = vrot.lane.b32.xlu0 %v979, 104
      %v3261 = vpop.permute.xlu0 %3260
      %3262 = vrot.lane.b32.xlu0 %v980, 104
      %v3263 = vpop.permute.xlu0 %3262
      %3264 = vrot.lane.b32.xlu0 %v981, 104
      %v3265 = vpop.permute.xlu0 %3264
      %3266 = vrot.lane.b32.xlu0 %v982, 104
      %v3267 = vpop.permute.xlu0 %3266
      %3268 = vrot.lane.b32.xlu0 %v983, 104
      %v3269 = vpop.permute.xlu0 %3268
      %3270 = vrot.lane.b32.xlu0 %v984, 104
      %v3271 = vpop.permute.xlu0 %3270
      %3272 = vrot.lane.b32.xlu0 %v985, 104
      %v3273 = vpop.permute.xlu0 %3272
      %3274 = vrot.lane.b32.xlu0 %v986, 104
      %v3275 = vpop.permute.xlu0 %3274
      %3276 = vrot.lane.b32.xlu0 %v987, 104
      %v3277 = vpop.permute.xlu0 %3276
      %3278 = vrot.lane.b32.xlu0 %v988, 104
      %v3279 = vpop.permute.xlu0 %3278
      %3280 = vrot.lane.b32.xlu0 %v989, 104
      %v3281 = vpop.permute.xlu0 %3280
      %3282 = vrot.lane.b32.xlu0 %v990, 104
      %v3283 = vpop.permute.xlu0 %3282
      %3284 = vrot.lane.b32.xlu0 %v991, 104
      %v3285 = vpop.permute.xlu0 %3284
      %3286 = vrot.lane.b32.xlu0 %v992, 104
      %v3287 = vpop.permute.xlu0 %3286
      %3288 = vrot.lane.b32.xlu0 %v993, 104
      %v3289 = vpop.permute.xlu0 %3288
      %3290 = vrot.lane.b32.xlu0 %v994, 104
      %v3291 = vpop.permute.xlu0 %3290
      %3292 = vrot.lane.b32.xlu0 %v995, 104
      %v3293 = vpop.permute.xlu0 %3292
      %3294 = vrot.lane.b32.xlu0 %v996, 104
      %v3295 = vpop.permute.xlu0 %3294
      %3296 = vrot.lane.b32.xlu0 %v997, 104
      %v3297 = vpop.permute.xlu0 %3296
      %3298 = vrot.lane.b32.xlu0 %v998, 104
      %v3299 = vpop.permute.xlu0 %3298
      %3300 = vrot.lane.b32.xlu0 %v999, 104
      %v3301 = vpop.permute.xlu0 %3300
      %3302 = vrot.lane.b32.xlu0 %v1000, 104
      %v3303 = vpop.permute.xlu0 %3302
      %3304 = vrot.lane.b32.xlu0 %v1001, 104
      %v3305 = vpop.permute.xlu0 %3304
      %3306 = vrot.lane.b32.xlu0 %v1002, 104
      %v3307 = vpop.permute.xlu0 %3306
      %3308 = vrot.lane.b32.xlu0 %v1003, 104
      %v3309 = vpop.permute.xlu0 %3308
      %3310 = vrot.lane.b32.xlu0 %v1004, 104
      %v3311 = vpop.permute.xlu0 %3310
      %3312 = vrot.lane.b32.xlu0 %v1005, 104
      %v3313 = vpop.permute.xlu0 %3312
      %3314 = vrot.lane.b32.xlu0 %v1006, 104
      %v3315 = vpop.permute.xlu0 %3314
      %3316 = vrot.lane.b32.xlu0 %v1007, 104
      %v3317 = vpop.permute.xlu0 %3316
      %3318 = vrot.lane.b32.xlu0 %v1008, 104
      %v3319 = vpop.permute.xlu0 %3318
      %s3384 = scalar_lea.vmem %s289, 768
      %3385 = vst.msk [vmem:[%s3384] sm:$0xf] %vm1073, %v3193
      %3386 = vst.msk [vmem:[%s3384 + $0x4] sm:$0xf] %vm1073, %v3195
      %3387 = vst.msk [vmem:[%s3384 + $0x8] sm:$0xf] %vm1073, %v3197
      %3388 = vst.msk [vmem:[%s3384 + $0xc] sm:$0xf] %vm1073, %v3199
      %3389 = vst.msk [vmem:[%s3384 + $0x10] sm:$0xf] %vm1073, %v3201
      %3390 = vst.msk [vmem:[%s3384 + $0x14] sm:$0xf] %vm1073, %v3203
      %3391 = vst.msk [vmem:[%s3384 + $0x18] sm:$0xf] %vm1073, %v3205
      %3392 = vst.msk [vmem:[%s3384 + $0x1c] sm:$0xf] %vm1073, %v3207
      %3393 = vst.msk [vmem:[%s3384 + $0x20] sm:$0xf] %vm1073, %v3209
      %3394 = vst.msk [vmem:[%s3384 + $0x24] sm:$0xf] %vm1073, %v3211
      %3395 = vst.msk [vmem:[%s3384 + $0x28] sm:$0xf] %vm1073, %v3213
      %3396 = vst.msk [vmem:[%s3384 + $0x2c] sm:$0xf] %vm1073, %v3215
      %3397 = vst.msk [vmem:[%s3384 + $0x30] sm:$0xf] %vm1073, %v3217
      %3398 = vst.msk [vmem:[%s3384 + $0x34] sm:$0xf] %vm1073, %v3219
      %3399 = vst.msk [vmem:[%s3384 + $0x38] sm:$0xf] %vm1073, %v3221
      %3400 = vst.msk [vmem:[%s3384 + $0x3c] sm:$0xf] %vm1073, %v3223
      %3401 = vst.msk [vmem:[%s3384 + $0x40] sm:$0xf] %vm1073, %v3225
      %3402 = vst.msk [vmem:[%s3384 + $0x44] sm:$0xf] %vm1073, %v3227
      %3403 = vst.msk [vmem:[%s3384 + $0x48] sm:$0xf] %vm1073, %v3229
      %3404 = vst.msk [vmem:[%s3384 + $0x4c] sm:$0xf] %vm1073, %v3231
      %3405 = vst.msk [vmem:[%s3384 + $0x50] sm:$0xf] %vm1073, %v3233
      %3406 = vst.msk [vmem:[%s3384 + $0x54] sm:$0xf] %vm1073, %v3235
      %3407 = vst.msk [vmem:[%s3384 + $0x58] sm:$0xf] %vm1073, %v3237
      %3408 = vst.msk [vmem:[%s3384 + $0x5c] sm:$0xf] %vm1073, %v3239
      %3409 = vst.msk [vmem:[%s3384 + $0x60] sm:$0xf] %vm1073, %v3241
      %3410 = vst.msk [vmem:[%s3384 + $0x64] sm:$0xf] %vm1073, %v3243
      %3411 = vst.msk [vmem:[%s3384 + $0x68] sm:$0xf] %vm1073, %v3245
      %3412 = vst.msk [vmem:[%s3384 + $0x6c] sm:$0xf] %vm1073, %v3247
      %3413 = vst.msk [vmem:[%s3384 + $0x70] sm:$0xf] %vm1073, %v3249
      %3414 = vst.msk [vmem:[%s3384 + $0x74] sm:$0xf] %vm1073, %v3251
      %3415 = vst.msk [vmem:[%s3384 + $0x78] sm:$0xf] %vm1073, %v3253
      %3416 = vst.msk [vmem:[%s3384 + $0x7c] sm:$0xf] %vm1073, %v3255
      %3417 = vst.msk [vmem:[%s3384 + $0x80] sm:$0xf] %vm1073, %v3257
      %3418 = vst.msk [vmem:[%s3384 + $0x84] sm:$0xf] %vm1073, %v3259
      %3419 = vst.msk [vmem:[%s3384 + $0x88] sm:$0xf] %vm1073, %v3261
      %3420 = vst.msk [vmem:[%s3384 + $0x8c] sm:$0xf] %vm1073, %v3263
      %3421 = vst.msk [vmem:[%s3384 + $0x90] sm:$0xf] %vm1073, %v3265
      %3422 = vst.msk [vmem:[%s3384 + $0x94] sm:$0xf] %vm1073, %v3267
      %3423 = vst.msk [vmem:[%s3384 + $0x98] sm:$0xf] %vm1073, %v3269
      %3424 = vst.msk [vmem:[%s3384 + $0x9c] sm:$0xf] %vm1073, %v3271
      %3425 = vst.msk [vmem:[%s3384 + $0xa0] sm:$0xf] %vm1073, %v3273
      %3426 = vst.msk [vmem:[%s3384 + $0xa4] sm:$0xf] %vm1073, %v3275
      %3427 = vst.msk [vmem:[%s3384 + $0xa8] sm:$0xf] %vm1073, %v3277
      %3428 = vst.msk [vmem:[%s3384 + $0xac] sm:$0xf] %vm1073, %v3279
      %3429 = vst.msk [vmem:[%s3384 + $0xb0] sm:$0xf] %vm1073, %v3281
      %3430 = vst.msk [vmem:[%s3384 + $0xb4] sm:$0xf] %vm1073, %v3283
      %3431 = vst.msk [vmem:[%s3384 + $0xb8] sm:$0xf] %vm1073, %v3285
      %3432 = vst.msk [vmem:[%s3384 + $0xbc] sm:$0xf] %vm1073, %v3287
      %3433 = vst.msk [vmem:[%s3384 + $0xc0] sm:$0xf] %vm1073, %v3289
      %3434 = vst.msk [vmem:[%s3384 + $0xc4] sm:$0xf] %vm1073, %v3291
      %3435 = vst.msk [vmem:[%s3384 + $0xc8] sm:$0xf] %vm1073, %v3293
      %3436 = vst.msk [vmem:[%s3384 + $0xcc] sm:$0xf] %vm1073, %v3295
      %3437 = vst.msk [vmem:[%s3384 + $0xd0] sm:$0xf] %vm1073, %v3297
      %3438 = vst.msk [vmem:[%s3384 + $0xd4] sm:$0xf] %vm1073, %v3299
      %3439 = vst.msk [vmem:[%s3384 + $0xd8] sm:$0xf] %vm1073, %v3301
      %3440 = vst.msk [vmem:[%s3384 + $0xdc] sm:$0xf] %vm1073, %v3303
      %3441 = vst.msk [vmem:[%s3384 + $0xe0] sm:$0xf] %vm1073, %v3305
      %3442 = vst.msk [vmem:[%s3384 + $0xe4] sm:$0xf] %vm1073, %v3307
      %3443 = vst.msk [vmem:[%s3384 + $0xe8] sm:$0xf] %vm1073, %v3309
      %3444 = vst.msk [vmem:[%s3384 + $0xec] sm:$0xf] %vm1073, %v3311
      %3445 = vst.msk [vmem:[%s3384 + $0xf0] sm:$0xf] %vm1073, %v3313
      %3446 = vst.msk [vmem:[%s3384 + $0xf4] sm:$0xf] %vm1073, %v3315
      %3447 = vst.msk [vmem:[%s3384 + $0xf8] sm:$0xf] %vm1073, %v3317
      %3448 = vst.msk [vmem:[%s3384 + $0xfc] sm:$0xf] %vm1073, %v3319
      %3449 = vrot.lane.b32.xlu0 %v945, 72
      %v3450 = vpop.permute.xlu0 %3449
      %3451 = vrot.lane.b32.xlu0 %v946, 72
      %v3452 = vpop.permute.xlu0 %3451
      %3453 = vrot.lane.b32.xlu0 %v947, 72
      %v3454 = vpop.permute.xlu0 %3453
      %3455 = vrot.lane.b32.xlu0 %v948, 72
      %v3456 = vpop.permute.xlu0 %3455
      %3457 = vrot.lane.b32.xlu0 %v949, 72
      %v3458 = vpop.permute.xlu0 %3457
      %3459 = vrot.lane.b32.xlu0 %v950, 72
      %v3460 = vpop.permute.xlu0 %3459
      %3461 = vrot.lane.b32.xlu0 %v951, 72
      %v3462 = vpop.permute.xlu0 %3461
      %3463 = vrot.lane.b32.xlu0 %v952, 72
      %v3464 = vpop.permute.xlu0 %3463
      %3465 = vrot.lane.b32.xlu0 %v953, 72
      %v3466 = vpop.permute.xlu0 %3465
      %3467 = vrot.lane.b32.xlu0 %v954, 72
      %v3468 = vpop.permute.xlu0 %3467
      %3469 = vrot.lane.b32.xlu0 %v955, 72
      %v3470 = vpop.permute.xlu0 %3469
      %3471 = vrot.lane.b32.xlu0 %v956, 72
      %v3472 = vpop.permute.xlu0 %3471
      %3473 = vrot.lane.b32.xlu0 %v957, 72
      %v3474 = vpop.permute.xlu0 %3473
      %3475 = vrot.lane.b32.xlu0 %v958, 72
      %v3476 = vpop.permute.xlu0 %3475
      %3477 = vrot.lane.b32.xlu0 %v959, 72
      %v3478 = vpop.permute.xlu0 %3477
      %3479 = vrot.lane.b32.xlu0 %v960, 72
      %v3480 = vpop.permute.xlu0 %3479
      %3481 = vrot.lane.b32.xlu0 %v961, 72
      %v3482 = vpop.permute.xlu0 %3481
      %3483 = vrot.lane.b32.xlu0 %v962, 72
      %v3484 = vpop.permute.xlu0 %3483
      %3485 = vrot.lane.b32.xlu0 %v963, 72
      %v3486 = vpop.permute.xlu0 %3485
      %3487 = vrot.lane.b32.xlu0 %v964, 72
      %v3488 = vpop.permute.xlu0 %3487
      %3489 = vrot.lane.b32.xlu0 %v965, 72
      %v3490 = vpop.permute.xlu0 %3489
      %3491 = vrot.lane.b32.xlu0 %v966, 72
      %v3492 = vpop.permute.xlu0 %3491
      %3493 = vrot.lane.b32.xlu0 %v967, 72
      %v3494 = vpop.permute.xlu0 %3493
      %3495 = vrot.lane.b32.xlu0 %v968, 72
      %v3496 = vpop.permute.xlu0 %3495
      %3497 = vrot.lane.b32.xlu0 %v969, 72
      %v3498 = vpop.permute.xlu0 %3497
      %3499 = vrot.lane.b32.xlu0 %v970, 72
      %v3500 = vpop.permute.xlu0 %3499
      %3501 = vrot.lane.b32.xlu0 %v971, 72
      %v3502 = vpop.permute.xlu0 %3501
      %3503 = vrot.lane.b32.xlu0 %v972, 72
      %v3504 = vpop.permute.xlu0 %3503
      %3505 = vrot.lane.b32.xlu0 %v973, 72
      %v3506 = vpop.permute.xlu0 %3505
      %3507 = vrot.lane.b32.xlu0 %v974, 72
      %v3508 = vpop.permute.xlu0 %3507
      %3509 = vrot.lane.b32.xlu0 %v975, 72
      %v3510 = vpop.permute.xlu0 %3509
      %3511 = vrot.lane.b32.xlu0 %v976, 72
      %v3512 = vpop.permute.xlu0 %3511
      %3513 = vrot.lane.b32.xlu0 %v977, 72
      %v3514 = vpop.permute.xlu0 %3513
      %3515 = vrot.lane.b32.xlu0 %v978, 72
      %v3516 = vpop.permute.xlu0 %3515
      %3517 = vrot.lane.b32.xlu0 %v979, 72
      %v3518 = vpop.permute.xlu0 %3517
      %3519 = vrot.lane.b32.xlu0 %v980, 72
      %v3520 = vpop.permute.xlu0 %3519
      %3521 = vrot.lane.b32.xlu0 %v981, 72
      %v3522 = vpop.permute.xlu0 %3521
      %3523 = vrot.lane.b32.xlu0 %v982, 72
      %v3524 = vpop.permute.xlu0 %3523
      %3525 = vrot.lane.b32.xlu0 %v983, 72
      %v3526 = vpop.permute.xlu0 %3525
      %3527 = vrot.lane.b32.xlu0 %v984, 72
      %v3528 = vpop.permute.xlu0 %3527
      %3529 = vrot.lane.b32.xlu0 %v985, 72
      %v3530 = vpop.permute.xlu0 %3529
      %3531 = vrot.lane.b32.xlu0 %v986, 72
      %v3532 = vpop.permute.xlu0 %3531
      %3533 = vrot.lane.b32.xlu0 %v987, 72
      %v3534 = vpop.permute.xlu0 %3533
      %3535 = vrot.lane.b32.xlu0 %v988, 72
      %v3536 = vpop.permute.xlu0 %3535
      %3537 = vrot.lane.b32.xlu0 %v989, 72
      %v3538 = vpop.permute.xlu0 %3537
      %3539 = vrot.lane.b32.xlu0 %v990, 72
      %v3540 = vpop.permute.xlu0 %3539
      %3541 = vrot.lane.b32.xlu0 %v991, 72
      %v3542 = vpop.permute.xlu0 %3541
      %3543 = vrot.lane.b32.xlu0 %v992, 72
      %v3544 = vpop.permute.xlu0 %3543
      %3545 = vrot.lane.b32.xlu0 %v993, 72
      %v3546 = vpop.permute.xlu0 %3545
      %3547 = vrot.lane.b32.xlu0 %v994, 72
      %v3548 = vpop.permute.xlu0 %3547
      %3549 = vrot.lane.b32.xlu0 %v995, 72
      %v3550 = vpop.permute.xlu0 %3549
      %3551 = vrot.lane.b32.xlu0 %v996, 72
      %v3552 = vpop.permute.xlu0 %3551
      %3553 = vrot.lane.b32.xlu0 %v997, 72
      %v3554 = vpop.permute.xlu0 %3553
      %3555 = vrot.lane.b32.xlu0 %v998, 72
      %v3556 = vpop.permute.xlu0 %3555
      %3557 = vrot.lane.b32.xlu0 %v999, 72
      %v3558 = vpop.permute.xlu0 %3557
      %3559 = vrot.lane.b32.xlu0 %v1000, 72
      %v3560 = vpop.permute.xlu0 %3559
      %3561 = vrot.lane.b32.xlu0 %v1001, 72
      %v3562 = vpop.permute.xlu0 %3561
      %3563 = vrot.lane.b32.xlu0 %v1002, 72
      %v3564 = vpop.permute.xlu0 %3563
      %3565 = vrot.lane.b32.xlu0 %v1003, 72
      %v3566 = vpop.permute.xlu0 %3565
      %3567 = vrot.lane.b32.xlu0 %v1004, 72
      %v3568 = vpop.permute.xlu0 %3567
      %3569 = vrot.lane.b32.xlu0 %v1005, 72
      %v3570 = vpop.permute.xlu0 %3569
      %3571 = vrot.lane.b32.xlu0 %v1006, 72
      %v3572 = vpop.permute.xlu0 %3571
      %3573 = vrot.lane.b32.xlu0 %v1007, 72
      %v3574 = vpop.permute.xlu0 %3573
      %3575 = vrot.lane.b32.xlu0 %v1008, 72
      %v3576 = vpop.permute.xlu0 %3575
      %s3641 = scalar_lea.vmem %s299, 768
      %3642 = vst.msk [vmem:[%s3641] sm:$0xf] %vm1073, %v3450
      %3643 = vst.msk [vmem:[%s3641 + $0x4] sm:$0xf] %vm1073, %v3452
      %3644 = vst.msk [vmem:[%s3641 + $0x8] sm:$0xf] %vm1073, %v3454
      %3645 = vst.msk [vmem:[%s3641 + $0xc] sm:$0xf] %vm1073, %v3456
      %3646 = vst.msk [vmem:[%s3641 + $0x10] sm:$0xf] %vm1073, %v3458
      %3647 = vst.msk [vmem:[%s3641 + $0x14] sm:$0xf] %vm1073, %v3460
      %3648 = vst.msk [vmem:[%s3641 + $0x18] sm:$0xf] %vm1073, %v3462
      %3649 = vst.msk [vmem:[%s3641 + $0x1c] sm:$0xf] %vm1073, %v3464
      %3650 = vst.msk [vmem:[%s3641 + $0x20] sm:$0xf] %vm1073, %v3466
      %3651 = vst.msk [vmem:[%s3641 + $0x24] sm:$0xf] %vm1073, %v3468
      %3652 = vst.msk [vmem:[%s3641 + $0x28] sm:$0xf] %vm1073, %v3470
      %3653 = vst.msk [vmem:[%s3641 + $0x2c] sm:$0xf] %vm1073, %v3472
      %3654 = vst.msk [vmem:[%s3641 + $0x30] sm:$0xf] %vm1073, %v3474
      %3655 = vst.msk [vmem:[%s3641 + $0x34] sm:$0xf] %vm1073, %v3476
      %3656 = vst.msk [vmem:[%s3641 + $0x38] sm:$0xf] %vm1073, %v3478
      %3657 = vst.msk [vmem:[%s3641 + $0x3c] sm:$0xf] %vm1073, %v3480
      %3658 = vst.msk [vmem:[%s3641 + $0x40] sm:$0xf] %vm1073, %v3482
      %3659 = vst.msk [vmem:[%s3641 + $0x44] sm:$0xf] %vm1073, %v3484
      %3660 = vst.msk [vmem:[%s3641 + $0x48] sm:$0xf] %vm1073, %v3486
      %3661 = vst.msk [vmem:[%s3641 + $0x4c] sm:$0xf] %vm1073, %v3488
      %3662 = vst.msk [vmem:[%s3641 + $0x50] sm:$0xf] %vm1073, %v3490
      %3663 = vst.msk [vmem:[%s3641 + $0x54] sm:$0xf] %vm1073, %v3492
      %3664 = vst.msk [vmem:[%s3641 + $0x58] sm:$0xf] %vm1073, %v3494
      %3665 = vst.msk [vmem:[%s3641 + $0x5c] sm:$0xf] %vm1073, %v3496
      %3666 = vst.msk [vmem:[%s3641 + $0x60] sm:$0xf] %vm1073, %v3498
      %3667 = vst.msk [vmem:[%s3641 + $0x64] sm:$0xf] %vm1073, %v3500
      %3668 = vst.msk [vmem:[%s3641 + $0x68] sm:$0xf] %vm1073, %v3502
      %3669 = vst.msk [vmem:[%s3641 + $0x6c] sm:$0xf] %vm1073, %v3504
      %3670 = vst.msk [vmem:[%s3641 + $0x70] sm:$0xf] %vm1073, %v3506
      %3671 = vst.msk [vmem:[%s3641 + $0x74] sm:$0xf] %vm1073, %v3508
      %3672 = vst.msk [vmem:[%s3641 + $0x78] sm:$0xf] %vm1073, %v3510
      %3673 = vst.msk [vmem:[%s3641 + $0x7c] sm:$0xf] %vm1073, %v3512
      %3674 = vst.msk [vmem:[%s3641 + $0x80] sm:$0xf] %vm1073, %v3514
      %3675 = vst.msk [vmem:[%s3641 + $0x84] sm:$0xf] %vm1073, %v3516
      %3676 = vst.msk [vmem:[%s3641 + $0x88] sm:$0xf] %vm1073, %v3518
      %3677 = vst.msk [vmem:[%s3641 + $0x8c] sm:$0xf] %vm1073, %v3520
      %3678 = vst.msk [vmem:[%s3641 + $0x90] sm:$0xf] %vm1073, %v3522
      %3679 = vst.msk [vmem:[%s3641 + $0x94] sm:$0xf] %vm1073, %v3524
      %3680 = vst.msk [vmem:[%s3641 + $0x98] sm:$0xf] %vm1073, %v3526
      %3681 = vst.msk [vmem:[%s3641 + $0x9c] sm:$0xf] %vm1073, %v3528
      %3682 = vst.msk [vmem:[%s3641 + $0xa0] sm:$0xf] %vm1073, %v3530
      %3683 = vst.msk [vmem:[%s3641 + $0xa4] sm:$0xf] %vm1073, %v3532
      %3684 = vst.msk [vmem:[%s3641 + $0xa8] sm:$0xf] %vm1073, %v3534
      %3685 = vst.msk [vmem:[%s3641 + $0xac] sm:$0xf] %vm1073, %v3536
      %3686 = vst.msk [vmem:[%s3641 + $0xb0] sm:$0xf] %vm1073, %v3538
      %3687 = vst.msk [vmem:[%s3641 + $0xb4] sm:$0xf] %vm1073, %v3540
      %3688 = vst.msk [vmem:[%s3641 + $0xb8] sm:$0xf] %vm1073, %v3542
      %3689 = vst.msk [vmem:[%s3641 + $0xbc] sm:$0xf] %vm1073, %v3544
      %3690 = vst.msk [vmem:[%s3641 + $0xc0] sm:$0xf] %vm1073, %v3546
      %3691 = vst.msk [vmem:[%s3641 + $0xc4] sm:$0xf] %vm1073, %v3548
      %3692 = vst.msk [vmem:[%s3641 + $0xc8] sm:$0xf] %vm1073, %v3550
      %3693 = vst.msk [vmem:[%s3641 + $0xcc] sm:$0xf] %vm1073, %v3552
      %3694 = vst.msk [vmem:[%s3641 + $0xd0] sm:$0xf] %vm1073, %v3554
      %3695 = vst.msk [vmem:[%s3641 + $0xd4] sm:$0xf] %vm1073, %v3556
      %3696 = vst.msk [vmem:[%s3641 + $0xd8] sm:$0xf] %vm1073, %v3558
      %3697 = vst.msk [vmem:[%s3641 + $0xdc] sm:$0xf] %vm1073, %v3560
      %3698 = vst.msk [vmem:[%s3641 + $0xe0] sm:$0xf] %vm1073, %v3562
      %3699 = vst.msk [vmem:[%s3641 + $0xe4] sm:$0xf] %vm1073, %v3564
      %3700 = vst.msk [vmem:[%s3641 + $0xe8] sm:$0xf] %vm1073, %v3566
      %3701 = vst.msk [vmem:[%s3641 + $0xec] sm:$0xf] %vm1073, %v3568
      %3702 = vst.msk [vmem:[%s3641 + $0xf0] sm:$0xf] %vm1073, %v3570
      %3703 = vst.msk [vmem:[%s3641 + $0xf4] sm:$0xf] %vm1073, %v3572
      %3704 = vst.msk [vmem:[%s3641 + $0xf8] sm:$0xf] %vm1073, %v3574
      %3705 = vst.msk [vmem:[%s3641 + $0xfc] sm:$0xf] %vm1073, %v3576
      %3706 = vrot.lane.b32.xlu0 %v945, 40
      %v3707 = vpop.permute.xlu0 %3706
      %3708 = vrot.lane.b32.xlu0 %v946, 40
      %v3709 = vpop.permute.xlu0 %3708
      %3710 = vrot.lane.b32.xlu0 %v947, 40
      %v3711 = vpop.permute.xlu0 %3710
      %3712 = vrot.lane.b32.xlu0 %v948, 40
      %v3713 = vpop.permute.xlu0 %3712
      %3714 = vrot.lane.b32.xlu0 %v949, 40
      %v3715 = vpop.permute.xlu0 %3714
      %3716 = vrot.lane.b32.xlu0 %v950, 40
      %v3717 = vpop.permute.xlu0 %3716
      %3718 = vrot.lane.b32.xlu0 %v951, 40
      %v3719 = vpop.permute.xlu0 %3718
      %3720 = vrot.lane.b32.xlu0 %v952, 40
      %v3721 = vpop.permute.xlu0 %3720
      %3722 = vrot.lane.b32.xlu0 %v953, 40
      %v3723 = vpop.permute.xlu0 %3722
      %3724 = vrot.lane.b32.xlu0 %v954, 40
      %v3725 = vpop.permute.xlu0 %3724
      %3726 = vrot.lane.b32.xlu0 %v955, 40
      %v3727 = vpop.permute.xlu0 %3726
      %3728 = vrot.lane.b32.xlu0 %v956, 40
      %v3729 = vpop.permute.xlu0 %3728
      %3730 = vrot.lane.b32.xlu0 %v957, 40
      %v3731 = vpop.permute.xlu0 %3730
      %3732 = vrot.lane.b32.xlu0 %v958, 40
      %v3733 = vpop.permute.xlu0 %3732
      %3734 = vrot.lane.b32.xlu0 %v959, 40
      %v3735 = vpop.permute.xlu0 %3734
      %3736 = vrot.lane.b32.xlu0 %v960, 40
      %v3737 = vpop.permute.xlu0 %3736
      %3738 = vrot.lane.b32.xlu0 %v961, 40
      %v3739 = vpop.permute.xlu0 %3738
      %3740 = vrot.lane.b32.xlu0 %v962, 40
      %v3741 = vpop.permute.xlu0 %3740
      %3742 = vrot.lane.b32.xlu0 %v963, 40
      %v3743 = vpop.permute.xlu0 %3742
      %3744 = vrot.lane.b32.xlu0 %v964, 40
      %v3745 = vpop.permute.xlu0 %3744
      %3746 = vrot.lane.b32.xlu0 %v965, 40
      %v3747 = vpop.permute.xlu0 %3746
      %3748 = vrot.lane.b32.xlu0 %v966, 40
      %v3749 = vpop.permute.xlu0 %3748
      %3750 = vrot.lane.b32.xlu0 %v967, 40
      %v3751 = vpop.permute.xlu0 %3750
      %3752 = vrot.lane.b32.xlu0 %v968, 40
      %v3753 = vpop.permute.xlu0 %3752
      %3754 = vrot.lane.b32.xlu0 %v969, 40
      %v3755 = vpop.permute.xlu0 %3754
      %3756 = vrot.lane.b32.xlu0 %v970, 40
      %v3757 = vpop.permute.xlu0 %3756
      %3758 = vrot.lane.b32.xlu0 %v971, 40
      %v3759 = vpop.permute.xlu0 %3758
      %3760 = vrot.lane.b32.xlu0 %v972, 40
      %v3761 = vpop.permute.xlu0 %3760
      %3762 = vrot.lane.b32.xlu0 %v973, 40
      %v3763 = vpop.permute.xlu0 %3762
      %3764 = vrot.lane.b32.xlu0 %v974, 40
      %v3765 = vpop.permute.xlu0 %3764
      %3766 = vrot.lane.b32.xlu0 %v975, 40
      %v3767 = vpop.permute.xlu0 %3766
      %3768 = vrot.lane.b32.xlu0 %v976, 40
      %v3769 = vpop.permute.xlu0 %3768
      %3770 = vrot.lane.b32.xlu0 %v977, 40
      %v3771 = vpop.permute.xlu0 %3770
      %3772 = vrot.lane.b32.xlu0 %v978, 40
      %v3773 = vpop.permute.xlu0 %3772
      %3774 = vrot.lane.b32.xlu0 %v979, 40
      %v3775 = vpop.permute.xlu0 %3774
      %3776 = vrot.lane.b32.xlu0 %v980, 40
      %v3777 = vpop.permute.xlu0 %3776
      %3778 = vrot.lane.b32.xlu0 %v981, 40
      %v3779 = vpop.permute.xlu0 %3778
      %3780 = vrot.lane.b32.xlu0 %v982, 40
      %v3781 = vpop.permute.xlu0 %3780
      %3782 = vrot.lane.b32.xlu0 %v983, 40
      %v3783 = vpop.permute.xlu0 %3782
      %3784 = vrot.lane.b32.xlu0 %v984, 40
      %v3785 = vpop.permute.xlu0 %3784
      %3786 = vrot.lane.b32.xlu0 %v985, 40
      %v3787 = vpop.permute.xlu0 %3786
      %3788 = vrot.lane.b32.xlu0 %v986, 40
      %v3789 = vpop.permute.xlu0 %3788
      %3790 = vrot.lane.b32.xlu0 %v987, 40
      %v3791 = vpop.permute.xlu0 %3790
      %3792 = vrot.lane.b32.xlu0 %v988, 40
      %v3793 = vpop.permute.xlu0 %3792
      %3794 = vrot.lane.b32.xlu0 %v989, 40
      %v3795 = vpop.permute.xlu0 %3794
      %3796 = vrot.lane.b32.xlu0 %v990, 40
      %v3797 = vpop.permute.xlu0 %3796
      %3798 = vrot.lane.b32.xlu0 %v991, 40
      %v3799 = vpop.permute.xlu0 %3798
      %3800 = vrot.lane.b32.xlu0 %v992, 40
      %v3801 = vpop.permute.xlu0 %3800
      %3802 = vrot.lane.b32.xlu0 %v993, 40
      %v3803 = vpop.permute.xlu0 %3802
      %3804 = vrot.lane.b32.xlu0 %v994, 40
      %v3805 = vpop.permute.xlu0 %3804
      %3806 = vrot.lane.b32.xlu0 %v995, 40
      %v3807 = vpop.permute.xlu0 %3806
      %3808 = vrot.lane.b32.xlu0 %v996, 40
      %v3809 = vpop.permute.xlu0 %3808
      %3810 = vrot.lane.b32.xlu0 %v997, 40
      %v3811 = vpop.permute.xlu0 %3810
      %3812 = vrot.lane.b32.xlu0 %v998, 40
      %v3813 = vpop.permute.xlu0 %3812
      %3814 = vrot.lane.b32.xlu0 %v999, 40
      %v3815 = vpop.permute.xlu0 %3814
      %3816 = vrot.lane.b32.xlu0 %v1000, 40
      %v3817 = vpop.permute.xlu0 %3816
      %3818 = vrot.lane.b32.xlu0 %v1001, 40
      %v3819 = vpop.permute.xlu0 %3818
      %3820 = vrot.lane.b32.xlu0 %v1002, 40
      %v3821 = vpop.permute.xlu0 %3820
      %3822 = vrot.lane.b32.xlu0 %v1003, 40
      %v3823 = vpop.permute.xlu0 %3822
      %3824 = vrot.lane.b32.xlu0 %v1004, 40
      %v3825 = vpop.permute.xlu0 %3824
      %3826 = vrot.lane.b32.xlu0 %v1005, 40
      %v3827 = vpop.permute.xlu0 %3826
      %3828 = vrot.lane.b32.xlu0 %v1006, 40
      %v3829 = vpop.permute.xlu0 %3828
      %3830 = vrot.lane.b32.xlu0 %v1007, 40
      %v3831 = vpop.permute.xlu0 %3830
      %3832 = vrot.lane.b32.xlu0 %v1008, 40
      %v3833 = vpop.permute.xlu0 %3832
      %s3898 = scalar_lea.vmem %s309, 768
      %3899 = vst.msk [vmem:[%s3898] sm:$0xf] %vm1073, %v3707
      %3900 = vst.msk [vmem:[%s3898 + $0x4] sm:$0xf] %vm1073, %v3709
      %3901 = vst.msk [vmem:[%s3898 + $0x8] sm:$0xf] %vm1073, %v3711
      %3902 = vst.msk [vmem:[%s3898 + $0xc] sm:$0xf] %vm1073, %v3713
      %3903 = vst.msk [vmem:[%s3898 + $0x10] sm:$0xf] %vm1073, %v3715
      %3904 = vst.msk [vmem:[%s3898 + $0x14] sm:$0xf] %vm1073, %v3717
      %3905 = vst.msk [vmem:[%s3898 + $0x18] sm:$0xf] %vm1073, %v3719
      %3906 = vst.msk [vmem:[%s3898 + $0x1c] sm:$0xf] %vm1073, %v3721
      %3907 = vst.msk [vmem:[%s3898 + $0x20] sm:$0xf] %vm1073, %v3723
      %3908 = vst.msk [vmem:[%s3898 + $0x24] sm:$0xf] %vm1073, %v3725
      %3909 = vst.msk [vmem:[%s3898 + $0x28] sm:$0xf] %vm1073, %v3727
      %3910 = vst.msk [vmem:[%s3898 + $0x2c] sm:$0xf] %vm1073, %v3729
      %3911 = vst.msk [vmem:[%s3898 + $0x30] sm:$0xf] %vm1073, %v3731
      %3912 = vst.msk [vmem:[%s3898 + $0x34] sm:$0xf] %vm1073, %v3733
      %3913 = vst.msk [vmem:[%s3898 + $0x38] sm:$0xf] %vm1073, %v3735
      %3914 = vst.msk [vmem:[%s3898 + $0x3c] sm:$0xf] %vm1073, %v3737
      %3915 = vst.msk [vmem:[%s3898 + $0x40] sm:$0xf] %vm1073, %v3739
      %3916 = vst.msk [vmem:[%s3898 + $0x44] sm:$0xf] %vm1073, %v3741
      %3917 = vst.msk [vmem:[%s3898 + $0x48] sm:$0xf] %vm1073, %v3743
      %3918 = vst.msk [vmem:[%s3898 + $0x4c] sm:$0xf] %vm1073, %v3745
      %3919 = vst.msk [vmem:[%s3898 + $0x50] sm:$0xf] %vm1073, %v3747
      %3920 = vst.msk [vmem:[%s3898 + $0x54] sm:$0xf] %vm1073, %v3749
      %3921 = vst.msk [vmem:[%s3898 + $0x58] sm:$0xf] %vm1073, %v3751
      %3922 = vst.msk [vmem:[%s3898 + $0x5c] sm:$0xf] %vm1073, %v3753
      %3923 = vst.msk [vmem:[%s3898 + $0x60] sm:$0xf] %vm1073, %v3755
      %3924 = vst.msk [vmem:[%s3898 + $0x64] sm:$0xf] %vm1073, %v3757
      %3925 = vst.msk [vmem:[%s3898 + $0x68] sm:$0xf] %vm1073, %v3759
      %3926 = vst.msk [vmem:[%s3898 + $0x6c] sm:$0xf] %vm1073, %v3761
      %3927 = vst.msk [vmem:[%s3898 + $0x70] sm:$0xf] %vm1073, %v3763
      %3928 = vst.msk [vmem:[%s3898 + $0x74] sm:$0xf] %vm1073, %v3765
      %3929 = vst.msk [vmem:[%s3898 + $0x78] sm:$0xf] %vm1073, %v3767
      %3930 = vst.msk [vmem:[%s3898 + $0x7c] sm:$0xf] %vm1073, %v3769
      %3931 = vst.msk [vmem:[%s3898 + $0x80] sm:$0xf] %vm1073, %v3771
      %3932 = vst.msk [vmem:[%s3898 + $0x84] sm:$0xf] %vm1073, %v3773
      %3933 = vst.msk [vmem:[%s3898 + $0x88] sm:$0xf] %vm1073, %v3775
      %3934 = vst.msk [vmem:[%s3898 + $0x8c] sm:$0xf] %vm1073, %v3777
      %3935 = vst.msk [vmem:[%s3898 + $0x90] sm:$0xf] %vm1073, %v3779
      %3936 = vst.msk [vmem:[%s3898 + $0x94] sm:$0xf] %vm1073, %v3781
      %3937 = vst.msk [vmem:[%s3898 + $0x98] sm:$0xf] %vm1073, %v3783
      %3938 = vst.msk [vmem:[%s3898 + $0x9c] sm:$0xf] %vm1073, %v3785
      %3939 = vst.msk [vmem:[%s3898 + $0xa0] sm:$0xf] %vm1073, %v3787
      %3940 = vst.msk [vmem:[%s3898 + $0xa4] sm:$0xf] %vm1073, %v3789
      %3941 = vst.msk [vmem:[%s3898 + $0xa8] sm:$0xf] %vm1073, %v3791
      %3942 = vst.msk [vmem:[%s3898 + $0xac] sm:$0xf] %vm1073, %v3793
      %3943 = vst.msk [vmem:[%s3898 + $0xb0] sm:$0xf] %vm1073, %v3795
      %3944 = vst.msk [vmem:[%s3898 + $0xb4] sm:$0xf] %vm1073, %v3797
      %3945 = vst.msk [vmem:[%s3898 + $0xb8] sm:$0xf] %vm1073, %v3799
      %3946 = vst.msk [vmem:[%s3898 + $0xbc] sm:$0xf] %vm1073, %v3801
      %3947 = vst.msk [vmem:[%s3898 + $0xc0] sm:$0xf] %vm1073, %v3803
      %3948 = vst.msk [vmem:[%s3898 + $0xc4] sm:$0xf] %vm1073, %v3805
      %3949 = vst.msk [vmem:[%s3898 + $0xc8] sm:$0xf] %vm1073, %v3807
      %3950 = vst.msk [vmem:[%s3898 + $0xcc] sm:$0xf] %vm1073, %v3809
      %3951 = vst.msk [vmem:[%s3898 + $0xd0] sm:$0xf] %vm1073, %v3811
      %3952 = vst.msk [vmem:[%s3898 + $0xd4] sm:$0xf] %vm1073, %v3813
      %3953 = vst.msk [vmem:[%s3898 + $0xd8] sm:$0xf] %vm1073, %v3815
      %3954 = vst.msk [vmem:[%s3898 + $0xdc] sm:$0xf] %vm1073, %v3817
      %3955 = vst.msk [vmem:[%s3898 + $0xe0] sm:$0xf] %vm1073, %v3819
      %3956 = vst.msk [vmem:[%s3898 + $0xe4] sm:$0xf] %vm1073, %v3821
      %3957 = vst.msk [vmem:[%s3898 + $0xe8] sm:$0xf] %vm1073, %v3823
      %3958 = vst.msk [vmem:[%s3898 + $0xec] sm:$0xf] %vm1073, %v3825
      %3959 = vst.msk [vmem:[%s3898 + $0xf0] sm:$0xf] %vm1073, %v3827
      %3960 = vst.msk [vmem:[%s3898 + $0xf4] sm:$0xf] %vm1073, %v3829
      %3961 = vst.msk [vmem:[%s3898 + $0xf8] sm:$0xf] %vm1073, %v3831
      %3962 = vst.msk [vmem:[%s3898 + $0xfc] sm:$0xf] %vm1073, %v3833
      %s3963 = smul.u32 64, %s22
      %p3964 = scmp.lt.s32.totalorder %s21, 1
      %s3965 = scalar_select %p3964, %s21, 1
      %p3966 = scmp.lt.s32.totalorder %s3963, 63
      %s3967 = scalar_select %p3966, %s3963, 63
      %s3968 = smul.addr %s3965, 256
      %s3969 = sadd.s32 %s3967, %s3968
      %s3970 = smul.addr %s3969, 4
      %s3971 = scalar_lea.vmem %s3, %s3970
      %s3972 = smul.u32 64, %s22
      %p3973 = scmp.lt.s32.totalorder %s21, 1
      %s3974 = scalar_select %p3973, %s21, 1
      %p3975 = scmp.lt.s32.totalorder %s3972, 63
      %s3976 = scalar_select %p3975, %s3972, 63
      %s3977 = smul.addr %s3974, 256
      %s3978 = sadd.s32 %s3976, %s3977
      %s3979 = smul.addr %s3978, 4
      %s3980 = scalar_lea.vmem %s4, %s3979
      %s3981 = smul.u32 64, %s22
      %p3982 = scmp.lt.s32.totalorder %s21, 1
      %s3983 = scalar_select %p3982, %s21, 1
      %p3984 = scmp.lt.s32.totalorder %s3981, 63
      %s3985 = scalar_select %p3984, %s3981, 63
      %s3986 = smul.addr %s3983, 256
      %s3987 = sadd.s32 %s3985, %s3986
      %s3988 = smul.addr %s3987, 4
      %s3989 = scalar_lea.vmem %s5, %s3988
      // Predicated region
      $region33: #{tpu_custom_call.1} parent=31 // pred_check
        %p3990 = pneg %p119
      $region34: #{tpu_custom_call.1} parent=31 // pred_check_branch
        %3992 = sbr.rel (%p3990) target = $region36
      $region35: #{tpu_custom_call.1} parent=31 // pred_region
        %s3993 = smul.u32 64, %s22
      $region36: #{tpu_custom_call.1} parent=31 // pred_fallthru
        _
      // Predicated region
      $region37: #{tpu_custom_call.1} parent=31 // pred_check
        %p3994 = pneg %p147
      $region38: #{tpu_custom_call.1} parent=31 // pred_check_branch
        %3996 = sbr.rel (%p3994) target = $region40
      $region39: #{tpu_custom_call.1} parent=31 // pred_region
        %s3997 = smul.u32 64, %s22
      $region40: #{tpu_custom_call.1} parent=31 // pred_fallthru
        _
      // Predicated region
      $region41: #{tpu_custom_call.1} parent=31 // pred_check
        %p3998 = pneg %p175
      $region42: #{tpu_custom_call.1} parent=31 // pred_check_branch
        %4000 = sbr.rel (%p3998) target = $region44
      $region43: #{tpu_custom_call.1} parent=31 // pred_region
        %s4001 = smul.u32 64, %s22
      $region44: #{tpu_custom_call.1} parent=31 // pred_fallthru
        _
    $region32: #{tpu_custom_call.1} parent=5 // pred_fallthru
      _
    %p4002 = scmp.le.s32.totalorder 2, %s12
    // Predicated region
    $region45: #{tpu_custom_call.1} parent=5 // pred_check
      %p4003 = pneg %p4002
    $region46: #{tpu_custom_call.1} parent=5 // pred_check_branch
      %4005 = sbr.rel (%p4003) target = $region48
    $region47: #{tpu_custom_call.1} parent=5 // pred_region
      %s4006 = ssub.s32 %s12, 2
      // Predicated region
      $region49: #{tpu_custom_call.1} parent=47 // pred_check
        %p4007 = pneg %p125
      $region50: #{tpu_custom_call.1} parent=47 // pred_check_branch
        %4009 = sbr.rel (%p4007) target = $region52
      $region51: #{tpu_custom_call.1} parent=47 // pred_region
        %s4010 = smul.u32 64, %s24
        %p4011 = scmp.lt.s32.totalorder %s23, 1
        %s4012 = scalar_select %p4011, %s23, 1
        %p4013 = scmp.lt.s32.totalorder %s4010, 63
        %s4014 = scalar_select %p4013, %s4010, 63
        %s4015 = smul.addr %s4012, 256
        %s4016 = sadd.s32 %s4014, %s4015
        %s4017 = smul.addr %s4016, 4
        %s4018 = scalar_lea.vmem %s3, %s4017
      $region52: #{tpu_custom_call.1} parent=47 // pred_fallthru
        _
      // Predicated region
      $region53: #{tpu_custom_call.1} parent=47 // pred_check
        %p4019 = pneg %p153
      $region54: #{tpu_custom_call.1} parent=47 // pred_check_branch
        %4021 = sbr.rel (%p4019) target = $region56
      $region55: #{tpu_custom_call.1} parent=47 // pred_region
        %s4022 = smul.u32 64, %s24
        %p4023 = scmp.lt.s32.totalorder %s23, 1
        %s4024 = scalar_select %p4023, %s23, 1
        %p4025 = scmp.lt.s32.totalorder %s4022, 63
        %s4026 = scalar_select %p4025, %s4022, 63
        %s4027 = smul.addr %s4024, 256
        %s4028 = sadd.s32 %s4026, %s4027
        %s4029 = smul.addr %s4028, 4
        %s4030 = scalar_lea.vmem %s4, %s4029
      $region56: #{tpu_custom_call.1} parent=47 // pred_fallthru
        _
      // Predicated region
      $region57: #{tpu_custom_call.1} parent=47 // pred_check
        %p4031 = pneg %p181
      $region58: #{tpu_custom_call.1} parent=47 // pred_check_branch
        %4033 = sbr.rel (%p4031) target = $region60
      $region59: #{tpu_custom_call.1} parent=47 // pred_region
        %s4034 = smul.u32 64, %s24
        %p4035 = scmp.lt.s32.totalorder %s23, 1
        %s4036 = scalar_select %p4035, %s23, 1
        %p4037 = scmp.lt.s32.totalorder %s4034, 63
        %s4038 = scalar_select %p4037, %s4034, 63
        %s4039 = smul.addr %s4036, 256
        %s4040 = sadd.s32 %s4038, %s4039
        %s4041 = smul.addr %s4040, 4
        %s4042 = scalar_lea.vmem %s5, %s4041
      $region60: #{tpu_custom_call.1} parent=47 // pred_fallthru
        _
    $region48: #{tpu_custom_call.1} parent=5 // pred_fallthru
      _
  $region6: #{tpu_custom_call.1} parent=0 // loop_footer
    %s16 = sadd.s32 1, %s12
  $region7: #{tpu_custom_call.1} parent=0 // loop_footer_branch
    %11 = sbr.rel target = $region3
  $region8: #{tpu_custom_call.1} parent=0 // loop_exit
    _

</llo_original>
